<compile_context>
chip_gen: v5e
topology: v5e:2x2
jax: 0.10.0
libtpu: 0.0.40
codegen_flags: <defaults>
</compile_context>

<pallas_src>
import functools

import jax
import jax.numpy as jnp
import numpy as np
from jax.experimental import pallas as pl
from jax.experimental.pallas import tpu as pltpu

HIDDEN_SIZE = 50        # nn.GRU hidden_size
INPUT_SIZE = 6          # len(features)
OUTPUT_SIZE = 24        # forecast_horizon
LANE = 128              # padded per-gate width (one lane tile)
SUBLANE = 8


def gru_model_kernel(x_ref, wih1_ref, b1i_ref, whh1_ref, b1hn_ref,
                     w2_ref, b2_ref, wfc_ref, bfc_ref,
                     out_ref, gi1_ref, *, T, B, H):
    """x_ref: (T*B, F) time-major rows (batch padded to B, multiple of 8).
    All gate/hidden dims padded so each gate owns one 128-lane block (H=128).
    """
    # ---- hoisted layer-1 input projection for ALL timesteps (one matmul) ----
    gi1_ref[...] = (jnp.dot(x_ref[...], wih1_ref[...],
                            preferred_element_type=jnp.float32)
                    + b1i_ref[...])                               # (T*B, 3H)

    h1 = jnp.zeros((B, H), jnp.float32)
    h2 = jnp.zeros((B, H), jnp.float32)

    # ---- static unroll over time (T is small & fixed at trace time) ----
    for t in range(T):
        # layer 1: only the h-dependent matmul sits on the serial chain
        gi1 = gi1_ref[t * B:(t + 1) * B, :]                       # (B, 3H)
        gh1 = jnp.dot(h1, whh1_ref[...],
                      preferred_element_type=jnp.float32)         # (B, 3H)
        r1 = jax.nn.sigmoid(gi1[:, 0:H] + gh1[:, 0:H])
        z1 = jax.nn.sigmoid(gi1[:, H:2 * H] + gh1[:, H:2 * H])
        n1 = jnp.tanh(gi1[:, 2 * H:3 * H]
                      + r1 * (gh1[:, 2 * H:3 * H] + b1hn_ref[...]))
        h1 = n1 + z1 * (h1 - n1)

        # layer 2: all four matmul blocks fused into ONE dot per step:
        #   g2 = [h1 | h2] @ [[Wi_r Wi_z Wi_n  0  ],
        #                     [Wh_r Wh_z  0   Wh_n]] + [br, bz, b_in, b_hn]
        xcat = jnp.concatenate([h1, h2], axis=1)                  # (B, 2H)
        g2 = (jnp.dot(xcat, w2_ref[...],
                      preferred_element_type=jnp.float32)
              + b2_ref[...])                                      # (B, 4H)
        r2 = jax.nn.sigmoid(g2[:, 0:H])
        z2 = jax.nn.sigmoid(g2[:, H:2 * H])
        n2 = jnp.tanh(g2[:, 2 * H:3 * H] + r2 * g2[:, 3 * H:4 * H])
        h2 = n2 + z2 * (h2 - n2)

    # fc head -> lane-dense (B, 128) slab; wrapper slices out (B, 24)
    out_ref[...] = (jnp.dot(h2, wfc_ref[...],
                            preferred_element_type=jnp.float32)
                    + bfc_ref[...])


@jax.jit
def gru_model_forward(x, kp):
    """x: (B, T, F) float32, batch_first like the PyTorch module."""
    B, T, F = x.shape
    Bp = ((B + SUBLANE - 1) // SUBLANE) * SUBLANE
    if Bp != B:
        x = jnp.concatenate([x, jnp.zeros((Bp - B, T, F), x.dtype)], axis=0)
    # time-major 2-D slab: row t*Bp + b  <-  x[b, t, :]
    x2d = jnp.transpose(x, (1, 0, 2)).reshape(T * Bp, F)

    # TODO(synk): for many independent sequences (v7x dual-TC), add a
    # "parallel" grid axis over batch chunks; a single B=4 call needs none.
    vmem = pl.BlockSpec(memory_space=pltpu.MemorySpace.VMEM)
    kernel = functools.partial(gru_model_kernel, T=T, B=Bp, H=LANE)
    out_p = pl.pallas_call(
        kernel,
        out_shape=jax.ShapeDtypeStruct((Bp, LANE), jnp.float32),
        in_specs=[vmem] * 9,
        out_specs=vmem,
        scratch_shapes=[pltpu.VMEM((T * Bp, 3 * LANE), jnp.float32)],
    )(x2d, kp["wih1p"], kp["b1i"], kp["whh1p"], kp["b1hn"],
      kp["w2"], kp["b2"], kp["wfcp"], kp["bfcp"])
    return out_p[:B, :OUTPUT_SIZE]


def init_params(key, input_size, hidden_size, output_size):
    """Deterministic init matching PyTorch shapes; GRU weights stored
    pre-transposed as (in, 3H) so (B, in) @ (in, 3H)."""
    ks = jax.random.split(key, 10)
    H = hidden_size
    s = 1.0 / np.sqrt(H)

    def u(k, shape):
        return jax.random.uniform(k, shape, jnp.float32, -s, s)

    return {
        "wih1": u(ks[0], (input_size, 3 * H)),
        "whh1": u(ks[1], (H, 3 * H)),
        "bih1": u(ks[2], (1, 3 * H)),
        "bhh1": u(ks[3], (1, 3 * H)),
        "wih2": u(ks[4], (H, 3 * H)),
        "whh2": u(ks[5], (H, 3 * H)),
        "bih2": u(ks[6], (1, 3 * H)),
        "bhh2": u(ks[7], (1, 3 * H)),
        "wfc": u(ks[8], (H, output_size)),
        "bfc": u(ks[9], (1, output_size)),
    }


def prepare_kernel_params(p):
    """Pad/stack raw params into the lane-aligned layout the kernel expects.
    Padding columns/rows are zero so padded hidden lanes stay exactly 0."""
    H, HP = HIDDEN_SIZE, LANE
    F = p["wih1"].shape[0]
    O = p["wfc"].shape[1]

    def a(x):
        return np.asarray(x, np.float32)

    wih1, whh1 = a(p["wih1"]), a(p["whh1"])
    bih1, bhh1 = a(p["bih1"]), a(p["bhh1"])
    wih2, whh2 = a(p["wih2"]), a(p["whh2"])
    bih2, bhh2 = a(p["bih2"]), a(p["bhh2"])
    wfc, bfc = a(p["wfc"]), a(p["bfc"])

    # ----- layer 1: each gate in its own 128-lane block -----
    wih1p = np.zeros((F, 3 * HP), np.float32)
    whh1p = np.zeros((HP, 3 * HP), np.float32)
    for g in range(3):
        wih1p[:, g * HP:g * HP + H] = wih1[:, g * H:(g + 1) * H]
        whh1p[:H, g * HP:g * HP + H] = whh1[:, g * H:(g + 1) * H]
    b1i = np.zeros((1, 3 * HP), np.float32)
    b1i[:, 0:H] = bih1[:, 0:H] + bhh1[:, 0:H]                    # r: b_ir+b_hr
    b1i[:, HP:HP + H] = bih1[:, H:2 * H] + bhh1[:, H:2 * H]      # z: b_iz+b_hz
    b1i[:, 2 * HP:2 * HP + H] = bih1[:, 2 * H:3 * H]             # n: b_in only
    b1hn = np.zeros((1, HP), np.float32)
    b1hn[:, :H] = bhh1[:, 2 * H:3 * H]                           # b_hn (gated by r)

    # ----- layer 2: fused [h1 | h2] weight, gate blocks = [r, z, i_n, h_n] ---
    w2 = np.zeros((2 * HP, 4 * HP), np.float32)
    for g in range(3):
        w2[:H, g * HP:g * HP + H] = wih2[:, g * H:(g + 1) * H]   # i_r, i_z, i_n
    w2[HP:HP + H, 0:H] = whh2[:, 0:H]                            # h_r
    w2[HP:HP + H, HP:HP + H] = whh2[:, H:2 * H]                  # h_z
    w2[HP:HP + H, 3 * HP:3 * HP + H] = whh2[:, 2 * H:3 * H]      # h_n
    b2 = np.zeros((1, 4 * HP), np.float32)
    b2[:, 0:H] = bih2[:, 0:H] + bhh2[:, 0:H]
    b2[:, HP:HP + H] = bih2[:, H:2 * H] + bhh2[:, H:2 * H]
    b2[:, 2 * HP:2 * HP + H] = bih2[:, 2 * H:3 * H]              # b_in
    b2[:, 3 * HP:3 * HP + H] = bhh2[:, 2 * H:3 * H]              # b_hn

    # ----- fc head padded to a lane-dense 128-wide output -----
    wfcp = np.zeros((HP, HP), np.float32)
    wfcp[:H, :O] = wfc
    bfcp = np.zeros((1, HP), np.float32)
    bfcp[:, :O] = bfc

    # TODO(synk): on v6e a bf16 cast of the matmul operands (keep f32 accum)
    # halves weight vreg footprint; kept f32 here for v5e portability.
    return {k: jnp.asarray(v) for k, v in dict(
        wih1p=wih1p, b1i=b1i, whh1p=whh1p, b1hn=b1hn,
        w2=w2, b2=b2, wfcp=wfcp, bfcp=bfcp).items()}


def reference_forward(x, params):
    """Pure-JAX reference with identical GRU semantics, for verification."""
    B, T, F = x.shape
    H = params["whh1"].shape[0]

    def cell(x_t, h, wih, whh, bih, bhh):
        gi = x_t @ wih + bih
        gh = h @ whh + bhh
        r = jax.nn.sigmoid(gi[:, :H] + gh[:, :H])
        z = jax.nn.sigmoid(gi[:, H:2 * H] + gh[:, H:2 * H])
        n = jnp.tanh(gi[:, 2 * H:] + r * gh[:, 2 * H:])
        return (1.0 - z) * n + z * h

    h1 = jnp.zeros((B, H), jnp.float32)
    h2 = jnp.zeros((B, H), jnp.float32)
    for t in range(T):
        h1 = cell(x[:, t, :], h1, params["wih1"], params["whh1"],
                  params["bih1"], params["bhh1"])
        h2 = cell(h1, h2, params["wih2"], params["whh2"],
                  params["bih2"], params["bhh2"])
    return h2 @ params["wfc"] + params["bfc"]


if __name__ == "__main__":
    key = jax.random.PRNGKey(0)
    k_x, k_p = jax.random.split(key)

    B, T = 4, 8
    x = jax.random.normal(k_x, (B, T, INPUT_SIZE), jnp.float32)
    params = init_params(k_p, INPUT_SIZE, HIDDEN_SIZE, OUTPUT_SIZE)
    kparams = prepare_kernel_params(params)

    out = jax.block_until_ready(gru_model_forward(x, kparams))
    assert out.shape == (B, OUTPUT_SIZE), out.shape

    ref = jax.block_until_ready(reference_forward(x, params))
    np.testing.assert_allclose(np.asarray(out), np.asarray(ref),
                               rtol=2e-2, atol=2e-2)

    print("KERNEL_OK")
</pallas_src>

<mosaic_0001>
module attributes {stable_mosaic.version = 11 : i64} {
  func.func @gru_model_kernel(%arg0: memref<64x6xf32, #tpu.memory_space<vmem>>, %arg1: memref<6x384xf32, #tpu.memory_space<vmem>>, %arg2: memref<1x384xf32, #tpu.memory_space<vmem>>, %arg3: memref<128x384xf32, #tpu.memory_space<vmem>>, %arg4: memref<1x128xf32, #tpu.memory_space<vmem>>, %arg5: memref<256x512xf32, #tpu.memory_space<vmem>>, %arg6: memref<1x512xf32, #tpu.memory_space<vmem>>, %arg7: memref<128x128xf32, #tpu.memory_space<vmem>>, %arg8: memref<1x128xf32, #tpu.memory_space<vmem>>, %arg9: memref<8x128xf32, #tpu.memory_space<vmem>>, %arg10: memref<64x384xf32, #tpu.memory_space<vmem>>) attributes {dimension_semantics = [], scalar_prefetch = 0 : i64, scratch_operands = 1 : i64, tpu.core_type = #tpu.core_type<tc>} {
    %c0 = arith.constant 0 : index
    %c0_0 = arith.constant 0 : index
    %0 = vector.load %arg0[%c0, %c0_0] : memref<64x6xf32, #tpu.memory_space<vmem>>, vector<64x6xf32>
    %c0_1 = arith.constant 0 : index
    %c0_2 = arith.constant 0 : index
    %1 = vector.load %arg1[%c0_1, %c0_2] : memref<6x384xf32, #tpu.memory_space<vmem>>, vector<6x384xf32>
    %cst = arith.constant dense<0.000000e+00> : vector<64x384xf32>
    %2 = tpu.matmul %0, %1, %cst {dimension_numbers = #tpu.dot_dimension_numbers<[1], [0], [0], [1], [0, 0, 1, 1], [], []>} : vector<64x6xf32>, vector<6x384xf32>, vector<64x384xf32> -> vector<64x384xf32>
    %c0_3 = arith.constant 0 : index
    %c0_4 = arith.constant 0 : index
    %3 = vector.load %arg2[%c0_3, %c0_4] : memref<1x384xf32, #tpu.memory_space<vmem>>, vector<1x384xf32>
    %4 = vector.broadcast %3 : vector<1x384xf32> to vector<64x384xf32>
    %5 = arith.addf %2, %4 : vector<64x384xf32>
    %c0_5 = arith.constant 0 : index
    %c0_6 = arith.constant 0 : index
    %6 = vector.load %arg10[%c0_5, %c0_6] : memref<64x384xf32, #tpu.memory_space<vmem>>, vector<64x384xf32>
    tpu.vector_store %arg10[%c0_5, %c0_6], %5 {strides = array<i32>} : memref<64x384xf32, #tpu.memory_space<vmem>>, vector<64x384xf32>,
    %cst_7 = arith.constant 0.000000e+00 : f32
    %7 = vector.broadcast %cst_7 : f32 to vector<8x128xf32>
    %cst_8 = arith.constant 0.000000e+00 : f32
    %8 = vector.broadcast %cst_8 : f32 to vector<8x128xf32>
    %c0_9 = arith.constant 0 : index
    %c0_10 = arith.constant 0 : index
    %9 = vector.load %arg10[%c0_9, %c0_10] : memref<64x384xf32, #tpu.memory_space<vmem>>, vector<8x384xf32>
    %c0_11 = arith.constant 0 : index
    %c0_12 = arith.constant 0 : index
    %10 = vector.load %arg3[%c0_11, %c0_12] : memref<128x384xf32, #tpu.memory_space<vmem>>, vector<128x384xf32>
    %cst_13 = arith.constant dense<0.000000e+00> : vector<8x384xf32>
    %11 = tpu.matmul %7, %10, %cst_13 {dimension_numbers = #tpu.dot_dimension_numbers<[1], [0], [0], [1], [0, 0, 1, 1], [], []>} : vector<8x128xf32>, vector<128x384xf32>, vector<8x384xf32> -> vector<8x384xf32>
    %12 = vector.extract_strided_slice %9 {offsets = [0, 0], sizes = [8, 128], strides = [1, 1]} : vector<8x384xf32> to vector<8x128xf32>
    %13 = vector.extract_strided_slice %11 {offsets = [0, 0], sizes = [8, 128], strides = [1, 1]} : vector<8x384xf32> to vector<8x128xf32>
    %14 = arith.addf %12, %13 : vector<8x128xf32>
    %15 = arith.negf %14 : vector<8x128xf32>
    %16 = math.exp %15 : vector<8x128xf32>
    %cst_14 = arith.constant 1.000000e+00 : f32
    %17 = vector.broadcast %cst_14 : f32 to vector<8x128xf32>
    %18 = arith.addf %17, %16 : vector<8x128xf32>
    %19 = arith.divf %17, %18 : vector<8x128xf32>
    %20 = vector.extract_strided_slice %9 {offsets = [0, 128], sizes = [8, 128], strides = [1, 1]} : vector<8x384xf32> to vector<8x128xf32>
    %21 = vector.extract_strided_slice %11 {offsets = [0, 128], sizes = [8, 128], strides = [1, 1]} : vector<8x384xf32> to vector<8x128xf32>
    %22 = arith.addf %20, %21 : vector<8x128xf32>
    %23 = arith.negf %22 : vector<8x128xf32>
    %24 = math.exp %23 : vector<8x128xf32>
    %cst_15 = arith.constant 1.000000e+00 : f32
    %25 = vector.broadcast %cst_15 : f32 to vector<8x128xf32>
    %26 = arith.addf %25, %24 : vector<8x128xf32>
    %27 = arith.divf %25, %26 : vector<8x128xf32>
    %28 = vector.extract_strided_slice %9 {offsets = [0, 256], sizes = [8, 128], strides = [1, 1]} : vector<8x384xf32> to vector<8x128xf32>
    %29 = vector.extract_strided_slice %11 {offsets = [0, 256], sizes = [8, 128], strides = [1, 1]} : vector<8x384xf32> to vector<8x128xf32>
    %c0_16 = arith.constant 0 : index
    %c0_17 = arith.constant 0 : index
    %30 = vector.load %arg4[%c0_16, %c0_17] : memref<1x128xf32, #tpu.memory_space<vmem>>, vector<1x128xf32>
    %31 = vector.broadcast %30 : vector<1x128xf32> to vector<8x128xf32>
    %32 = arith.addf %29, %31 : vector<8x128xf32>
    %33 = arith.mulf %19, %32 : vector<8x128xf32>
    %34 = arith.addf %28, %33 : vector<8x128xf32>
    %35 = math.tanh %34 : vector<8x128xf32>
    %36 = arith.subf %7, %35 : vector<8x128xf32>
    %37 = arith.mulf %27, %36 : vector<8x128xf32>
    %38 = arith.addf %35, %37 : vector<8x128xf32>
    %39 = tpu.concatenate %38, %8 in 1 : vector<8x128xf32>, vector<8x128xf32> -> vector<8x256xf32>
    %c0_18 = arith.constant 0 : index
    %c0_19 = arith.constant 0 : index
    %40 = vector.load %arg5[%c0_18, %c0_19] : memref<256x512xf32, #tpu.memory_space<vmem>>, vector<256x512xf32>
    %cst_20 = arith.constant dense<0.000000e+00> : vector<8x512xf32>
    %41 = tpu.matmul %39, %40, %cst_20 {dimension_numbers = #tpu.dot_dimension_numbers<[1], [0], [0], [1], [0, 0, 1, 1], [], []>} : vector<8x256xf32>, vector<256x512xf32>, vector<8x512xf32> -> vector<8x512xf32>
    %c0_21 = arith.constant 0 : index
    %c0_22 = arith.constant 0 : index
    %42 = vector.load %arg6[%c0_21, %c0_22] : memref<1x512xf32, #tpu.memory_space<vmem>>, vector<1x512xf32>
    %43 = vector.broadcast %42 : vector<1x512xf32> to vector<8x512xf32>
    %44 = arith.addf %41, %43 : vector<8x512xf32>
    %45 = vector.extract_strided_slice %44 {offsets = [0, 0], sizes = [8, 128], strides = [1, 1]} : vector<8x512xf32> to vector<8x128xf32>
    %46 = arith.negf %45 : vector<8x128xf32>
    %47 = math.exp %46 : vector<8x128xf32>
    %cst_23 = arith.constant 1.000000e+00 : f32
    %48 = vector.broadcast %cst_23 : f32 to vector<8x128xf32>
    %49 = arith.addf %48, %47 : vector<8x128xf32>
    %50 = arith.divf %48, %49 : vector<8x128xf32>
    %51 = vector.extract_strided_slice %44 {offsets = [0, 128], sizes = [8, 128], strides = [1, 1]} : vector<8x512xf32> to vector<8x128xf32>
    %52 = arith.negf %51 : vector<8x128xf32>
    %53 = math.exp %52 : vector<8x128xf32>
    %cst_24 = arith.constant 1.000000e+00 : f32
    %54 = vector.broadcast %cst_24 : f32 to vector<8x128xf32>
    %55 = arith.addf %54, %53 : vector<8x128xf32>
    %56 = arith.divf %54, %55 : vector<8x128xf32>
    %57 = vector.extract_strided_slice %44 {offsets = [0, 256], sizes = [8, 128], strides = [1, 1]} : vector<8x512xf32> to vector<8x128xf32>
    %58 = vector.extract_strided_slice %44 {offsets = [0, 384], sizes = [8, 128], strides = [1, 1]} : vector<8x512xf32> to vector<8x128xf32>
    %59 = arith.mulf %50, %58 : vector<8x128xf32>
    %60 = arith.addf %57, %59 : vector<8x128xf32>
    %61 = math.tanh %60 : vector<8x128xf32>
    %62 = arith.subf %8, %61 : vector<8x128xf32>
    %63 = arith.mulf %56, %62 : vector<8x128xf32>
    %64 = arith.addf %61, %63 : vector<8x128xf32>
    %c8 = arith.constant 8 : index
    %c0_25 = arith.constant 0 : index
    %65 = vector.load %arg10[%c8, %c0_25] : memref<64x384xf32, #tpu.memory_space<vmem>>, vector<8x384xf32>
    %c0_26 = arith.constant 0 : index
    %c0_27 = arith.constant 0 : index
    %66 = vector.load %arg3[%c0_26, %c0_27] : memref<128x384xf32, #tpu.memory_space<vmem>>, vector<128x384xf32>
    %cst_28 = arith.constant dense<0.000000e+00> : vector<8x384xf32>
    %67 = tpu.matmul %38, %66, %cst_28 {dimension_numbers = #tpu.dot_dimension_numbers<[1], [0], [0], [1], [0, 0, 1, 1], [], []>} : vector<8x128xf32>, vector<128x384xf32>, vector<8x384xf32> -> vector<8x384xf32>
    %68 = vector.extract_strided_slice %65 {offsets = [0, 0], sizes = [8, 128], strides = [1, 1]} : vector<8x384xf32> to vector<8x128xf32>
    %69 = vector.extract_strided_slice %67 {offsets = [0, 0], sizes = [8, 128], strides = [1, 1]} : vector<8x384xf32> to vector<8x128xf32>
    %70 = arith.addf %68, %69 : vector<8x128xf32>
    %71 = arith.negf %70 : vector<8x128xf32>
    %72 = math.exp %71 : vector<8x128xf32>
    %cst_29 = arith.constant 1.000000e+00 : f32
    %73 = vector.broadcast %cst_29 : f32 to vector<8x128xf32>
    %74 = arith.addf %73, %72 : vector<8x128xf32>
    %75 = arith.divf %73, %74 : vector<8x128xf32>
    %76 = vector.extract_strided_slice %65 {offsets = [0, 128], sizes = [8, 128], strides = [1, 1]} : vector<8x384xf32> to vector<8x128xf32>
    %77 = vector.extract_strided_slice %67 {offsets = [0, 128], sizes = [8, 128], strides = [1, 1]} : vector<8x384xf32> to vector<8x128xf32>
    %78 = arith.addf %76, %77 : vector<8x128xf32>
    %79 = arith.negf %78 : vector<8x128xf32>
    %80 = math.exp %79 : vector<8x128xf32>
    %cst_30 = arith.constant 1.000000e+00 : f32
    %81 = vector.broadcast %cst_30 : f32 to vector<8x128xf32>
    %82 = arith.addf %81, %80 : vector<8x128xf32>
    %83 = arith.divf %81, %82 : vector<8x128xf32>
    %84 = vector.extract_strided_slice %65 {offsets = [0, 256], sizes = [8, 128], strides = [1, 1]} : vector<8x384xf32> to vector<8x128xf32>
    %85 = vector.extract_strided_slice %67 {offsets = [0, 256], sizes = [8, 128], strides = [1, 1]} : vector<8x384xf32> to vector<8x128xf32>
    %c0_31 = arith.constant 0 : index
    %c0_32 = arith.constant 0 : index
    %86 = vector.load %arg4[%c0_31, %c0_32] : memref<1x128xf32, #tpu.memory_space<vmem>>, vector<1x128xf32>
    %87 = vector.broadcast %86 : vector<1x128xf32> to vector<8x128xf32>
    %88 = arith.addf %85, %87 : vector<8x128xf32>
    %89 = arith.mulf %75, %88 : vector<8x128xf32>
    %90 = arith.addf %84, %89 : vector<8x128xf32>
    %91 = math.tanh %90 : vector<8x128xf32>
    %92 = arith.subf %38, %91 : vector<8x128xf32>
    %93 = arith.mulf %83, %92 : vector<8x128xf32>
    %94 = arith.addf %91, %93 : vector<8x128xf32>
    %95 = tpu.concatenate %94, %64 in 1 : vector<8x128xf32>, vector<8x128xf32> -> vector<8x256xf32>
    %c0_33 = arith.constant 0 : index
    %c0_34 = arith.constant 0 : index
    %96 = vector.load %arg5[%c0_33, %c0_34] : memref<256x512xf32, #tpu.memory_space<vmem>>, vector<256x512xf32>
    %cst_35 = arith.constant dense<0.000000e+00> : vector<8x512xf32>
    %97 = tpu.matmul %95, %96, %cst_35 {dimension_numbers = #tpu.dot_dimension_numbers<[1], [0], [0], [1], [0, 0, 1, 1], [], []>} : vector<8x256xf32>, vector<256x512xf32>, vector<8x512xf32> -> vector<8x512xf32>
    %c0_36 = arith.constant 0 : index
    %c0_37 = arith.constant 0 : index
    %98 = vector.load %arg6[%c0_36, %c0_37] : memref<1x512xf32, #tpu.memory_space<vmem>>, vector<1x512xf32>
    %99 = vector.broadcast %98 : vector<1x512xf32> to vector<8x512xf32>
    %100 = arith.addf %97, %99 : vector<8x512xf32>
    %101 = vector.extract_strided_slice %100 {offsets = [0, 0], sizes = [8, 128], strides = [1, 1]} : vector<8x512xf32> to vector<8x128xf32>
    %102 = arith.negf %101 : vector<8x128xf32>
    %103 = math.exp %102 : vector<8x128xf32>
    %cst_38 = arith.constant 1.000000e+00 : f32
    %104 = vector.broadcast %cst_38 : f32 to vector<8x128xf32>
    %105 = arith.addf %104, %103 : vector<8x128xf32>
    %106 = arith.divf %104, %105 : vector<8x128xf32>
    %107 = vector.extract_strided_slice %100 {offsets = [0, 128], sizes = [8, 128], strides = [1, 1]} : vector<8x512xf32> to vector<8x128xf32>
    %108 = arith.negf %107 : vector<8x128xf32>
    %109 = math.exp %108 : vector<8x128xf32>
    %cst_39 = arith.constant 1.000000e+00 : f32
    %110 = vector.broadcast %cst_39 : f32 to vector<8x128xf32>
    %111 = arith.addf %110, %109 : vector<8x128xf32>
    %112 = arith.divf %110, %111 : vector<8x128xf32>
    %113 = vector.extract_strided_slice %100 {offsets = [0, 256], sizes = [8, 128], strides = [1, 1]} : vector<8x512xf32> to vector<8x128xf32>
    %114 = vector.extract_strided_slice %100 {offsets = [0, 384], sizes = [8, 128], strides = [1, 1]} : vector<8x512xf32> to vector<8x128xf32>
    %115 = arith.mulf %106, %114 : vector<8x128xf32>
    %116 = arith.addf %113, %115 : vector<8x128xf32>
    %117 = math.tanh %116 : vector<8x128xf32>
    %118 = arith.subf %64, %117 : vector<8x128xf32>
    %119 = arith.mulf %112, %118 : vector<8x128xf32>
    %120 = arith.addf %117, %119 : vector<8x128xf32>
    %c16 = arith.constant 16 : index
    %c0_40 = arith.constant 0 : index
    %121 = vector.load %arg10[%c16, %c0_40] : memref<64x384xf32, #tpu.memory_space<vmem>>, vector<8x384xf32>
    %c0_41 = arith.constant 0 : index
    %c0_42 = arith.constant 0 : index
    %122 = vector.load %arg3[%c0_41, %c0_42] : memref<128x384xf32, #tpu.memory_space<vmem>>, vector<128x384xf32>
    %cst_43 = arith.constant dense<0.000000e+00> : vector<8x384xf32>
    %123 = tpu.matmul %94, %122, %cst_43 {dimension_numbers = #tpu.dot_dimension_numbers<[1], [0], [0], [1], [0, 0, 1, 1], [], []>} : vector<8x128xf32>, vector<128x384xf32>, vector<8x384xf32> -> vector<8x384xf32>
    %124 = vector.extract_strided_slice %121 {offsets = [0, 0], sizes = [8, 128], strides = [1, 1]} : vector<8x384xf32> to vector<8x128xf32>
    %125 = vector.extract_strided_slice %123 {offsets = [0, 0], sizes = [8, 128], strides = [1, 1]} : vector<8x384xf32> to vector<8x128xf32>
    %126 = arith.addf %124, %125 : vector<8x128xf32>
    %127 = arith.negf %126 : vector<8x128xf32>
    %128 = math.exp %127 : vector<8x128xf32>
    %cst_44 = arith.constant 1.000000e+00 : f32
    %129 = vector.broadcast %cst_44 : f32 to vector<8x128xf32>
    %130 = arith.addf %129, %128 : vector<8x128xf32>
    %131 = arith.divf %129, %130 : vector<8x128xf32>
    %132 = vector.extract_strided_slice %121 {offsets = [0, 128], sizes = [8, 128], strides = [1, 1]} : vector<8x384xf32> to vector<8x128xf32>
    %133 = vector.extract_strided_slice %123 {offsets = [0, 128], sizes = [8, 128], strides = [1, 1]} : vector<8x384xf32> to vector<8x128xf32>
    %134 = arith.addf %132, %133 : vector<8x128xf32>
    %135 = arith.negf %134 : vector<8x128xf32>
    %136 = math.exp %135 : vector<8x128xf32>
    %cst_45 = arith.constant 1.000000e+00 : f32
    %137 = vector.broadcast %cst_45 : f32 to vector<8x128xf32>
    %138 = arith.addf %137, %136 : vector<8x128xf32>
    %139 = arith.divf %137, %138 : vector<8x128xf32>
    %140 = vector.extract_strided_slice %121 {offsets = [0, 256], sizes = [8, 128], strides = [1, 1]} : vector<8x384xf32> to vector<8x128xf32>
    %141 = vector.extract_strided_slice %123 {offsets = [0, 256], sizes = [8, 128], strides = [1, 1]} : vector<8x384xf32> to vector<8x128xf32>
    %c0_46 = arith.constant 0 : index
    %c0_47 = arith.constant 0 : index
    %142 = vector.load %arg4[%c0_46, %c0_47] : memref<1x128xf32, #tpu.memory_space<vmem>>, vector<1x128xf32>
    %143 = vector.broadcast %142 : vector<1x128xf32> to vector<8x128xf32>
    %144 = arith.addf %141, %143 : vector<8x128xf32>
    %145 = arith.mulf %131, %144 : vector<8x128xf32>
    %146 = arith.addf %140, %145 : vector<8x128xf32>
    %147 = math.tanh %146 : vector<8x128xf32>
    %148 = arith.subf %94, %147 : vector<8x128xf32>
    %149 = arith.mulf %139, %148 : vector<8x128xf32>
    %150 = arith.addf %147, %149 : vector<8x128xf32>
    %151 = tpu.concatenate %150, %120 in 1 : vector<8x128xf32>, vector<8x128xf32> -> vector<8x256xf32>
    %c0_48 = arith.constant 0 : index
    %c0_49 = arith.constant 0 : index
    %152 = vector.load %arg5[%c0_48, %c0_49] : memref<256x512xf32, #tpu.memory_space<vmem>>, vector<256x512xf32>
    %cst_50 = arith.constant dense<0.000000e+00> : vector<8x512xf32>
    %153 = tpu.matmul %151, %152, %cst_50 {dimension_numbers = #tpu.dot_dimension_numbers<[1], [0], [0], [1], [0, 0, 1, 1], [], []>} : vector<8x256xf32>, vector<256x512xf32>, vector<8x512xf32> -> vector<8x512xf32>
    %c0_51 = arith.constant 0 : index
    %c0_52 = arith.constant 0 : index
    %154 = vector.load %arg6[%c0_51, %c0_52] : memref<1x512xf32, #tpu.memory_space<vmem>>, vector<1x512xf32>
    %155 = vector.broadcast %154 : vector<1x512xf32> to vector<8x512xf32>
    %156 = arith.addf %153, %155 : vector<8x512xf32>
    %157 = vector.extract_strided_slice %156 {offsets = [0, 0], sizes = [8, 128], strides = [1, 1]} : vector<8x512xf32> to vector<8x128xf32>
    %158 = arith.negf %157 : vector<8x128xf32>
    %159 = math.exp %158 : vector<8x128xf32>
    %cst_53 = arith.constant 1.000000e+00 : f32
    %160 = vector.broadcast %cst_53 : f32 to vector<8x128xf32>
    %161 = arith.addf %160, %159 : vector<8x128xf32>
    %162 = arith.divf %160, %161 : vector<8x128xf32>
    %163 = vector.extract_strided_slice %156 {offsets = [0, 128], sizes = [8, 128], strides = [1, 1]} : vector<8x512xf32> to vector<8x128xf32>
    %164 = arith.negf %163 : vector<8x128xf32>
    %165 = math.exp %164 : vector<8x128xf32>
    %cst_54 = arith.constant 1.000000e+00 : f32
    %166 = vector.broadcast %cst_54 : f32 to vector<8x128xf32>
    %167 = arith.addf %166, %165 : vector<8x128xf32>
    %168 = arith.divf %166, %167 : vector<8x128xf32>
    %169 = vector.extract_strided_slice %156 {offsets = [0, 256], sizes = [8, 128], strides = [1, 1]} : vector<8x512xf32> to vector<8x128xf32>
    %170 = vector.extract_strided_slice %156 {offsets = [0, 384], sizes = [8, 128], strides = [1, 1]} : vector<8x512xf32> to vector<8x128xf32>
    %171 = arith.mulf %162, %170 : vector<8x128xf32>
    %172 = arith.addf %169, %171 : vector<8x128xf32>
    %173 = math.tanh %172 : vector<8x128xf32>
    %174 = arith.subf %120, %173 : vector<8x128xf32>
    %175 = arith.mulf %168, %174 : vector<8x128xf32>
    %176 = arith.addf %173, %175 : vector<8x128xf32>
    %c24 = arith.constant 24 : index
    %c0_55 = arith.constant 0 : index
    %177 = vector.load %arg10[%c24, %c0_55] : memref<64x384xf32, #tpu.memory_space<vmem>>, vector<8x384xf32>
    %c0_56 = arith.constant 0 : index
    %c0_57 = arith.constant 0 : index
    %178 = vector.load %arg3[%c0_56, %c0_57] : memref<128x384xf32, #tpu.memory_space<vmem>>, vector<128x384xf32>
    %cst_58 = arith.constant dense<0.000000e+00> : vector<8x384xf32>
    %179 = tpu.matmul %150, %178, %cst_58 {dimension_numbers = #tpu.dot_dimension_numbers<[1], [0], [0], [1], [0, 0, 1, 1], [], []>} : vector<8x128xf32>, vector<128x384xf32>, vector<8x384xf32> -> vector<8x384xf32>
    %180 = vector.extract_strided_slice %177 {offsets = [0, 0], sizes = [8, 128], strides = [1, 1]} : vector<8x384xf32> to vector<8x128xf32>
    %181 = vector.extract_strided_slice %179 {offsets = [0, 0], sizes = [8, 128], strides = [1, 1]} : vector<8x384xf32> to vector<8x128xf32>
    %182 = arith.addf %180, %181 : vector<8x128xf32>
    %183 = arith.negf %182 : vector<8x128xf32>
    %184 = math.exp %183 : vector<8x128xf32>
    %cst_59 = arith.constant 1.000000e+00 : f32
    %185 = vector.broadcast %cst_59 : f32 to vector<8x128xf32>
    %186 = arith.addf %185, %184 : vector<8x128xf32>
    %187 = arith.divf %185, %186 : vector<8x128xf32>
    %188 = vector.extract_strided_slice %177 {offsets = [0, 128], sizes = [8, 128], strides = [1, 1]} : vector<8x384xf32> to vector<8x128xf32>
    %189 = vector.extract_strided_slice %179 {offsets = [0, 128], sizes = [8, 128], strides = [1, 1]} : vector<8x384xf32> to vector<8x128xf32>
    %190 = arith.addf %188, %189 : vector<8x128xf32>
    %191 = arith.negf %190 : vector<8x128xf32>
    %192 = math.exp %191 : vector<8x128xf32>
    %cst_60 = arith.constant 1.000000e+00 : f32
    %193 = vector.broadcast %cst_60 : f32 to vector<8x128xf32>
    %194 = arith.addf %193, %192 : vector<8x128xf32>
    %195 = arith.divf %193, %194 : vector<8x128xf32>
    %196 = vector.extract_strided_slice %177 {offsets = [0, 256], sizes = [8, 128], strides = [1, 1]} : vector<8x384xf32> to vector<8x128xf32>
    %197 = vector.extract_strided_slice %179 {offsets = [0, 256], sizes = [8, 128], strides = [1, 1]} : vector<8x384xf32> to vector<8x128xf32>
    %c0_61 = arith.constant 0 : index
    %c0_62 = arith.constant 0 : index
    %198 = vector.load %arg4[%c0_61, %c0_62] : memref<1x128xf32, #tpu.memory_space<vmem>>, vector<1x128xf32>
    %199 = vector.broadcast %198 : vector<1x128xf32> to vector<8x128xf32>
    %200 = arith.addf %197, %199 : vector<8x128xf32>
    %201 = arith.mulf %187, %200 : vector<8x128xf32>
    %202 = arith.addf %196, %201 : vector<8x128xf32>
    %203 = math.tanh %202 : vector<8x128xf32>
    %204 = arith.subf %150, %203 : vector<8x128xf32>
    %205 = arith.mulf %195, %204 : vector<8x128xf32>
    %206 = arith.addf %203, %205 : vector<8x128xf32>
    %207 = tpu.concatenate %206, %176 in 1 : vector<8x128xf32>, vector<8x128xf32> -> vector<8x256xf32>
    %c0_63 = arith.constant 0 : index
    %c0_64 = arith.constant 0 : index
    %208 = vector.load %arg5[%c0_63, %c0_64] : memref<256x512xf32, #tpu.memory_space<vmem>>, vector<256x512xf32>
    %cst_65 = arith.constant dense<0.000000e+00> : vector<8x512xf32>
    %209 = tpu.matmul %207, %208, %cst_65 {dimension_numbers = #tpu.dot_dimension_numbers<[1], [0], [0], [1], [0, 0, 1, 1], [], []>} : vector<8x256xf32>, vector<256x512xf32>, vector<8x512xf32> -> vector<8x512xf32>
    %c0_66 = arith.constant 0 : index
    %c0_67 = arith.constant 0 : index
    %210 = vector.load %arg6[%c0_66, %c0_67] : memref<1x512xf32, #tpu.memory_space<vmem>>, vector<1x512xf32>
    %211 = vector.broadcast %210 : vector<1x512xf32> to vector<8x512xf32>
    %212 = arith.addf %209, %211 : vector<8x512xf32>
    %213 = vector.extract_strided_slice %212 {offsets = [0, 0], sizes = [8, 128], strides = [1, 1]} : vector<8x512xf32> to vector<8x128xf32>
    %214 = arith.negf %213 : vector<8x128xf32>
    %215 = math.exp %214 : vector<8x128xf32>
    %cst_68 = arith.constant 1.000000e+00 : f32
    %216 = vector.broadcast %cst_68 : f32 to vector<8x128xf32>
    %217 = arith.addf %216, %215 : vector<8x128xf32>
    %218 = arith.divf %216, %217 : vector<8x128xf32>
    %219 = vector.extract_strided_slice %212 {offsets = [0, 128], sizes = [8, 128], strides = [1, 1]} : vector<8x512xf32> to vector<8x128xf32>
    %220 = arith.negf %219 : vector<8x128xf32>
    %221 = math.exp %220 : vector<8x128xf32>
    %cst_69 = arith.constant 1.000000e+00 : f32
    %222 = vector.broadcast %cst_69 : f32 to vector<8x128xf32>
    %223 = arith.addf %222, %221 : vector<8x128xf32>
    %224 = arith.divf %222, %223 : vector<8x128xf32>
    %225 = vector.extract_strided_slice %212 {offsets = [0, 256], sizes = [8, 128], strides = [1, 1]} : vector<8x512xf32> to vector<8x128xf32>
    %226 = vector.extract_strided_slice %212 {offsets = [0, 384], sizes = [8, 128], strides = [1, 1]} : vector<8x512xf32> to vector<8x128xf32>
    %227 = arith.mulf %218, %226 : vector<8x128xf32>
    %228 = arith.addf %225, %227 : vector<8x128xf32>
    %229 = math.tanh %228 : vector<8x128xf32>
    %230 = arith.subf %176, %229 : vector<8x128xf32>
    %231 = arith.mulf %224, %230 : vector<8x128xf32>
    %232 = arith.addf %229, %231 : vector<8x128xf32>
    %c32 = arith.constant 32 : index
    %c0_70 = arith.constant 0 : index
    %233 = vector.load %arg10[%c32, %c0_70] : memref<64x384xf32, #tpu.memory_space<vmem>>, vector<8x384xf32>
    %c0_71 = arith.constant 0 : index
    %c0_72 = arith.constant 0 : index
    %234 = vector.load %arg3[%c0_71, %c0_72] : memref<128x384xf32, #tpu.memory_space<vmem>>, vector<128x384xf32>
    %cst_73 = arith.constant dense<0.000000e+00> : vector<8x384xf32>
    %235 = tpu.matmul %206, %234, %cst_73 {dimension_numbers = #tpu.dot_dimension_numbers<[1], [0], [0], [1], [0, 0, 1, 1], [], []>} : vector<8x128xf32>, vector<128x384xf32>, vector<8x384xf32> -> vector<8x384xf32>
    %236 = vector.extract_strided_slice %233 {offsets = [0, 0], sizes = [8, 128], strides = [1, 1]} : vector<8x384xf32> to vector<8x128xf32>
    %237 = vector.extract_strided_slice %235 {offsets = [0, 0], sizes = [8, 128], strides = [1, 1]} : vector<8x384xf32> to vector<8x128xf32>
    %238 = arith.addf %236, %237 : vector<8x128xf32>
    %239 = arith.negf %238 : vector<8x128xf32>
    %240 = math.exp %239 : vector<8x128xf32>
    %cst_74 = arith.constant 1.000000e+00 : f32
    %241 = vector.broadcast %cst_74 : f32 to vector<8x128xf32>
    %242 = arith.addf %241, %240 : vector<8x128xf32>
    %243 = arith.divf %241, %242 : vector<8x128xf32>
    %244 = vector.extract_strided_slice %233 {offsets = [0, 128], sizes = [8, 128], strides = [1, 1]} : vector<8x384xf32> to vector<8x128xf32>
    %245 = vector.extract_strided_slice %235 {offsets = [0, 128], sizes = [8, 128], strides = [1, 1]} : vector<8x384xf32> to vector<8x128xf32>
    %246 = arith.addf %244, %245 : vector<8x128xf32>
    %247 = arith.negf %246 : vector<8x128xf32>
    %248 = math.exp %247 : vector<8x128xf32>
    %cst_75 = arith.constant 1.000000e+00 : f32
    %249 = vector.broadcast %cst_75 : f32 to vector<8x128xf32>
    %250 = arith.addf %249, %248 : vector<8x128xf32>
    %251 = arith.divf %249, %250 : vector<8x128xf32>
    %252 = vector.extract_strided_slice %233 {offsets = [0, 256], sizes = [8, 128], strides = [1, 1]} : vector<8x384xf32> to vector<8x128xf32>
    %253 = vector.extract_strided_slice %235 {offsets = [0, 256], sizes = [8, 128], strides = [1, 1]} : vector<8x384xf32> to vector<8x128xf32>
    %c0_76 = arith.constant 0 : index
    %c0_77 = arith.constant 0 : index
    %254 = vector.load %arg4[%c0_76, %c0_77] : memref<1x128xf32, #tpu.memory_space<vmem>>, vector<1x128xf32>
    %255 = vector.broadcast %254 : vector<1x128xf32> to vector<8x128xf32>
    %256 = arith.addf %253, %255 : vector<8x128xf32>
    %257 = arith.mulf %243, %256 : vector<8x128xf32>
    %258 = arith.addf %252, %257 : vector<8x128xf32>
    %259 = math.tanh %258 : vector<8x128xf32>
    %260 = arith.subf %206, %259 : vector<8x128xf32>
    %261 = arith.mulf %251, %260 : vector<8x128xf32>
    %262 = arith.addf %259, %261 : vector<8x128xf32>
    %263 = tpu.concatenate %262, %232 in 1 : vector<8x128xf32>, vector<8x128xf32> -> vector<8x256xf32>
    %c0_78 = arith.constant 0 : index
    %c0_79 = arith.constant 0 : index
    %264 = vector.load %arg5[%c0_78, %c0_79] : memref<256x512xf32, #tpu.memory_space<vmem>>, vector<256x512xf32>
    %cst_80 = arith.constant dense<0.000000e+00> : vector<8x512xf32>
    %265 = tpu.matmul %263, %264, %cst_80 {dimension_numbers = #tpu.dot_dimension_numbers<[1], [0], [0], [1], [0, 0, 1, 1], [], []>} : vector<8x256xf32>, vector<256x512xf32>, vector<8x512xf32> -> vector<8x512xf32>
    %c0_81 = arith.constant 0 : index
    %c0_82 = arith.constant 0 : index
    %266 = vector.load %arg6[%c0_81, %c0_82] : memref<1x512xf32, #tpu.memory_space<vmem>>, vector<1x512xf32>
    %267 = vector.broadcast %266 : vector<1x512xf32> to vector<8x512xf32>
    %268 = arith.addf %265, %267 : vector<8x512xf32>
    %269 = vector.extract_strided_slice %268 {offsets = [0, 0], sizes = [8, 128], strides = [1, 1]} : vector<8x512xf32> to vector<8x128xf32>
    %270 = arith.negf %269 : vector<8x128xf32>
    %271 = math.exp %270 : vector<8x128xf32>
    %cst_83 = arith.constant 1.000000e+00 : f32
    %272 = vector.broadcast %cst_83 : f32 to vector<8x128xf32>
    %273 = arith.addf %272, %271 : vector<8x128xf32>
    %274 = arith.divf %272, %273 : vector<8x128xf32>
    %275 = vector.extract_strided_slice %268 {offsets = [0, 128], sizes = [8, 128], strides = [1, 1]} : vector<8x512xf32> to vector<8x128xf32>
    %276 = arith.negf %275 : vector<8x128xf32>
    %277 = math.exp %276 : vector<8x128xf32>
    %cst_84 = arith.constant 1.000000e+00 : f32
    %278 = vector.broadcast %cst_84 : f32 to vector<8x128xf32>
    %279 = arith.addf %278, %277 : vector<8x128xf32>
    %280 = arith.divf %278, %279 : vector<8x128xf32>
    %281 = vector.extract_strided_slice %268 {offsets = [0, 256], sizes = [8, 128], strides = [1, 1]} : vector<8x512xf32> to vector<8x128xf32>
    %282 = vector.extract_strided_slice %268 {offsets = [0, 384], sizes = [8, 128], strides = [1, 1]} : vector<8x512xf32> to vector<8x128xf32>
    %283 = arith.mulf %274, %282 : vector<8x128xf32>
    %284 = arith.addf %281, %283 : vector<8x128xf32>
    %285 = math.tanh %284 : vector<8x128xf32>
    %286 = arith.subf %232, %285 : vector<8x128xf32>
    %287 = arith.mulf %280, %286 : vector<8x128xf32>
    %288 = arith.addf %285, %287 : vector<8x128xf32>
    %c40 = arith.constant 40 : index
    %c0_85 = arith.constant 0 : index
    %289 = vector.load %arg10[%c40, %c0_85] : memref<64x384xf32, #tpu.memory_space<vmem>>, vector<8x384xf32>
    %c0_86 = arith.constant 0 : index
    %c0_87 = arith.constant 0 : index
    %290 = vector.load %arg3[%c0_86, %c0_87] : memref<128x384xf32, #tpu.memory_space<vmem>>, vector<128x384xf32>
    %cst_88 = arith.constant dense<0.000000e+00> : vector<8x384xf32>
    %291 = tpu.matmul %262, %290, %cst_88 {dimension_numbers = #tpu.dot_dimension_numbers<[1], [0], [0], [1], [0, 0, 1, 1], [], []>} : vector<8x128xf32>, vector<128x384xf32>, vector<8x384xf32> -> vector<8x384xf32>
    %292 = vector.extract_strided_slice %289 {offsets = [0, 0], sizes = [8, 128], strides = [1, 1]} : vector<8x384xf32> to vector<8x128xf32>
    %293 = vector.extract_strided_slice %291 {offsets = [0, 0], sizes = [8, 128], strides = [1, 1]} : vector<8x384xf32> to vector<8x128xf32>
    %294 = arith.addf %292, %293 : vector<8x128xf32>
    %295 = arith.negf %294 : vector<8x128xf32>
    %296 = math.exp %295 : vector<8x128xf32>
    %cst_89 = arith.constant 1.000000e+00 : f32
    %297 = vector.broadcast %cst_89 : f32 to vector<8x128xf32>
    %298 = arith.addf %297, %296 : vector<8x128xf32>
    %299 = arith.divf %297, %298 : vector<8x128xf32>
    %300 = vector.extract_strided_slice %289 {offsets = [0, 128], sizes = [8, 128], strides = [1, 1]} : vector<8x384xf32> to vector<8x128xf32>
    %301 = vector.extract_strided_slice %291 {offsets = [0, 128], sizes = [8, 128], strides = [1, 1]} : vector<8x384xf32> to vector<8x128xf32>
    %302 = arith.addf %300, %301 : vector<8x128xf32>
    %303 = arith.negf %302 : vector<8x128xf32>
    %304 = math.exp %303 : vector<8x128xf32>
    %cst_90 = arith.constant 1.000000e+00 : f32
    %305 = vector.broadcast %cst_90 : f32 to vector<8x128xf32>
    %306 = arith.addf %305, %304 : vector<8x128xf32>
    %307 = arith.divf %305, %306 : vector<8x128xf32>
    %308 = vector.extract_strided_slice %289 {offsets = [0, 256], sizes = [8, 128], strides = [1, 1]} : vector<8x384xf32> to vector<8x128xf32>
    %309 = vector.extract_strided_slice %291 {offsets = [0, 256], sizes = [8, 128], strides = [1, 1]} : vector<8x384xf32> to vector<8x128xf32>
    %c0_91 = arith.constant 0 : index
    %c0_92 = arith.constant 0 : index
    %310 = vector.load %arg4[%c0_91, %c0_92] : memref<1x128xf32, #tpu.memory_space<vmem>>, vector<1x128xf32>
    %311 = vector.broadcast %310 : vector<1x128xf32> to vector<8x128xf32>
    %312 = arith.addf %309, %311 : vector<8x128xf32>
    %313 = arith.mulf %299, %312 : vector<8x128xf32>
    %314 = arith.addf %308, %313 : vector<8x128xf32>
    %315 = math.tanh %314 : vector<8x128xf32>
    %316 = arith.subf %262, %315 : vector<8x128xf32>
    %317 = arith.mulf %307, %316 : vector<8x128xf32>
    %318 = arith.addf %315, %317 : vector<8x128xf32>
    %319 = tpu.concatenate %318, %288 in 1 : vector<8x128xf32>, vector<8x128xf32> -> vector<8x256xf32>
    %c0_93 = arith.constant 0 : index
    %c0_94 = arith.constant 0 : index
    %320 = vector.load %arg5[%c0_93, %c0_94] : memref<256x512xf32, #tpu.memory_space<vmem>>, vector<256x512xf32>
    %cst_95 = arith.constant dense<0.000000e+00> : vector<8x512xf32>
    %321 = tpu.matmul %319, %320, %cst_95 {dimension_numbers = #tpu.dot_dimension_numbers<[1], [0], [0], [1], [0, 0, 1, 1], [], []>} : vector<8x256xf32>, vector<256x512xf32>, vector<8x512xf32> -> vector<8x512xf32>
    %c0_96 = arith.constant 0 : index
    %c0_97 = arith.constant 0 : index
    %322 = vector.load %arg6[%c0_96, %c0_97] : memref<1x512xf32, #tpu.memory_space<vmem>>, vector<1x512xf32>
    %323 = vector.broadcast %322 : vector<1x512xf32> to vector<8x512xf32>
    %324 = arith.addf %321, %323 : vector<8x512xf32>
    %325 = vector.extract_strided_slice %324 {offsets = [0, 0], sizes = [8, 128], strides = [1, 1]} : vector<8x512xf32> to vector<8x128xf32>
    %326 = arith.negf %325 : vector<8x128xf32>
    %327 = math.exp %326 : vector<8x128xf32>
    %cst_98 = arith.constant 1.000000e+00 : f32
    %328 = vector.broadcast %cst_98 : f32 to vector<8x128xf32>
    %329 = arith.addf %328, %327 : vector<8x128xf32>
    %330 = arith.divf %328, %329 : vector<8x128xf32>
    %331 = vector.extract_strided_slice %324 {offsets = [0, 128], sizes = [8, 128], strides = [1, 1]} : vector<8x512xf32> to vector<8x128xf32>
    %332 = arith.negf %331 : vector<8x128xf32>
    %333 = math.exp %332 : vector<8x128xf32>
    %cst_99 = arith.constant 1.000000e+00 : f32
    %334 = vector.broadcast %cst_99 : f32 to vector<8x128xf32>
    %335 = arith.addf %334, %333 : vector<8x128xf32>
    %336 = arith.divf %334, %335 : vector<8x128xf32>
    %337 = vector.extract_strided_slice %324 {offsets = [0, 256], sizes = [8, 128], strides = [1, 1]} : vector<8x512xf32> to vector<8x128xf32>
    %338 = vector.extract_strided_slice %324 {offsets = [0, 384], sizes = [8, 128], strides = [1, 1]} : vector<8x512xf32> to vector<8x128xf32>
    %339 = arith.mulf %330, %338 : vector<8x128xf32>
    %340 = arith.addf %337, %339 : vector<8x128xf32>
    %341 = math.tanh %340 : vector<8x128xf32>
    %342 = arith.subf %288, %341 : vector<8x128xf32>
    %343 = arith.mulf %336, %342 : vector<8x128xf32>
    %344 = arith.addf %341, %343 : vector<8x128xf32>
    %c48 = arith.constant 48 : index
    %c0_100 = arith.constant 0 : index
    %345 = vector.load %arg10[%c48, %c0_100] : memref<64x384xf32, #tpu.memory_space<vmem>>, vector<8x384xf32>
    %c0_101 = arith.constant 0 : index
    %c0_102 = arith.constant 0 : index
    %346 = vector.load %arg3[%c0_101, %c0_102] : memref<128x384xf32, #tpu.memory_space<vmem>>, vector<128x384xf32>
    %cst_103 = arith.constant dense<0.000000e+00> : vector<8x384xf32>
    %347 = tpu.matmul %318, %346, %cst_103 {dimension_numbers = #tpu.dot_dimension_numbers<[1], [0], [0], [1], [0, 0, 1, 1], [], []>} : vector<8x128xf32>, vector<128x384xf32>, vector<8x384xf32> -> vector<8x384xf32>
    %348 = vector.extract_strided_slice %345 {offsets = [0, 0], sizes = [8, 128], strides = [1, 1]} : vector<8x384xf32> to vector<8x128xf32>
    %349 = vector.extract_strided_slice %347 {offsets = [0, 0], sizes = [8, 128], strides = [1, 1]} : vector<8x384xf32> to vector<8x128xf32>
    %350 = arith.addf %348, %349 : vector<8x128xf32>
    %351 = arith.negf %350 : vector<8x128xf32>
    %352 = math.exp %351 : vector<8x128xf32>
    %cst_104 = arith.constant 1.000000e+00 : f32
    %353 = vector.broadcast %cst_104 : f32 to vector<8x128xf32>
    %354 = arith.addf %353, %352 : vector<8x128xf32>
    %355 = arith.divf %353, %354 : vector<8x128xf32>
    %356 = vector.extract_strided_slice %345 {offsets = [0, 128], sizes = [8, 128], strides = [1, 1]} : vector<8x384xf32> to vector<8x128xf32>
    %357 = vector.extract_strided_slice %347 {offsets = [0, 128], sizes = [8, 128], strides = [1, 1]} : vector<8x384xf32> to vector<8x128xf32>
    %358 = arith.addf %356, %357 : vector<8x128xf32>
    %359 = arith.negf %358 : vector<8x128xf32>
    %360 = math.exp %359 : vector<8x128xf32>
    %cst_105 = arith.constant 1.000000e+00 : f32
    %361 = vector.broadcast %cst_105 : f32 to vector<8x128xf32>
    %362 = arith.addf %361, %360 : vector<8x128xf32>
    %363 = arith.divf %361, %362 : vector<8x128xf32>
    %364 = vector.extract_strided_slice %345 {offsets = [0, 256], sizes = [8, 128], strides = [1, 1]} : vector<8x384xf32> to vector<8x128xf32>
    %365 = vector.extract_strided_slice %347 {offsets = [0, 256], sizes = [8, 128], strides = [1, 1]} : vector<8x384xf32> to vector<8x128xf32>
    %c0_106 = arith.constant 0 : index
    %c0_107 = arith.constant 0 : index
    %366 = vector.load %arg4[%c0_106, %c0_107] : memref<1x128xf32, #tpu.memory_space<vmem>>, vector<1x128xf32>
    %367 = vector.broadcast %366 : vector<1x128xf32> to vector<8x128xf32>
    %368 = arith.addf %365, %367 : vector<8x128xf32>
    %369 = arith.mulf %355, %368 : vector<8x128xf32>
    %370 = arith.addf %364, %369 : vector<8x128xf32>
    %371 = math.tanh %370 : vector<8x128xf32>
    %372 = arith.subf %318, %371 : vector<8x128xf32>
    %373 = arith.mulf %363, %372 : vector<8x128xf32>
    %374 = arith.addf %371, %373 : vector<8x128xf32>
    %375 = tpu.concatenate %374, %344 in 1 : vector<8x128xf32>, vector<8x128xf32> -> vector<8x256xf32>
    %c0_108 = arith.constant 0 : index
    %c0_109 = arith.constant 0 : index
    %376 = vector.load %arg5[%c0_108, %c0_109] : memref<256x512xf32, #tpu.memory_space<vmem>>, vector<256x512xf32>
    %cst_110 = arith.constant dense<0.000000e+00> : vector<8x512xf32>
    %377 = tpu.matmul %375, %376, %cst_110 {dimension_numbers = #tpu.dot_dimension_numbers<[1], [0], [0], [1], [0, 0, 1, 1], [], []>} : vector<8x256xf32>, vector<256x512xf32>, vector<8x512xf32> -> vector<8x512xf32>
    %c0_111 = arith.constant 0 : index
    %c0_112 = arith.constant 0 : index
    %378 = vector.load %arg6[%c0_111, %c0_112] : memref<1x512xf32, #tpu.memory_space<vmem>>, vector<1x512xf32>
    %379 = vector.broadcast %378 : vector<1x512xf32> to vector<8x512xf32>
    %380 = arith.addf %377, %379 : vector<8x512xf32>
    %381 = vector.extract_strided_slice %380 {offsets = [0, 0], sizes = [8, 128], strides = [1, 1]} : vector<8x512xf32> to vector<8x128xf32>
    %382 = arith.negf %381 : vector<8x128xf32>
    %383 = math.exp %382 : vector<8x128xf32>
    %cst_113 = arith.constant 1.000000e+00 : f32
    %384 = vector.broadcast %cst_113 : f32 to vector<8x128xf32>
    %385 = arith.addf %384, %383 : vector<8x128xf32>
    %386 = arith.divf %384, %385 : vector<8x128xf32>
    %387 = vector.extract_strided_slice %380 {offsets = [0, 128], sizes = [8, 128], strides = [1, 1]} : vector<8x512xf32> to vector<8x128xf32>
    %388 = arith.negf %387 : vector<8x128xf32>
    %389 = math.exp %388 : vector<8x128xf32>
    %cst_114 = arith.constant 1.000000e+00 : f32
    %390 = vector.broadcast %cst_114 : f32 to vector<8x128xf32>
    %391 = arith.addf %390, %389 : vector<8x128xf32>
    %392 = arith.divf %390, %391 : vector<8x128xf32>
    %393 = vector.extract_strided_slice %380 {offsets = [0, 256], sizes = [8, 128], strides = [1, 1]} : vector<8x512xf32> to vector<8x128xf32>
    %394 = vector.extract_strided_slice %380 {offsets = [0, 384], sizes = [8, 128], strides = [1, 1]} : vector<8x512xf32> to vector<8x128xf32>
    %395 = arith.mulf %386, %394 : vector<8x128xf32>
    %396 = arith.addf %393, %395 : vector<8x128xf32>
    %397 = math.tanh %396 : vector<8x128xf32>
    %398 = arith.subf %344, %397 : vector<8x128xf32>
    %399 = arith.mulf %392, %398 : vector<8x128xf32>
    %400 = arith.addf %397, %399 : vector<8x128xf32>
    %c56 = arith.constant 56 : index
    %c0_115 = arith.constant 0 : index
    %401 = vector.load %arg10[%c56, %c0_115] : memref<64x384xf32, #tpu.memory_space<vmem>>, vector<8x384xf32>
    %c0_116 = arith.constant 0 : index
    %c0_117 = arith.constant 0 : index
    %402 = vector.load %arg3[%c0_116, %c0_117] : memref<128x384xf32, #tpu.memory_space<vmem>>, vector<128x384xf32>
    %cst_118 = arith.constant dense<0.000000e+00> : vector<8x384xf32>
    %403 = tpu.matmul %374, %402, %cst_118 {dimension_numbers = #tpu.dot_dimension_numbers<[1], [0], [0], [1], [0, 0, 1, 1], [], []>} : vector<8x128xf32>, vector<128x384xf32>, vector<8x384xf32> -> vector<8x384xf32>
    %404 = vector.extract_strided_slice %401 {offsets = [0, 0], sizes = [8, 128], strides = [1, 1]} : vector<8x384xf32> to vector<8x128xf32>
    %405 = vector.extract_strided_slice %403 {offsets = [0, 0], sizes = [8, 128], strides = [1, 1]} : vector<8x384xf32> to vector<8x128xf32>
    %406 = arith.addf %404, %405 : vector<8x128xf32>
    %407 = arith.negf %406 : vector<8x128xf32>
    %408 = math.exp %407 : vector<8x128xf32>
    %cst_119 = arith.constant 1.000000e+00 : f32
    %409 = vector.broadcast %cst_119 : f32 to vector<8x128xf32>
    %410 = arith.addf %409, %408 : vector<8x128xf32>
    %411 = arith.divf %409, %410 : vector<8x128xf32>
    %412 = vector.extract_strided_slice %401 {offsets = [0, 128], sizes = [8, 128], strides = [1, 1]} : vector<8x384xf32> to vector<8x128xf32>
    %413 = vector.extract_strided_slice %403 {offsets = [0, 128], sizes = [8, 128], strides = [1, 1]} : vector<8x384xf32> to vector<8x128xf32>
    %414 = arith.addf %412, %413 : vector<8x128xf32>
    %415 = arith.negf %414 : vector<8x128xf32>
    %416 = math.exp %415 : vector<8x128xf32>
    %cst_120 = arith.constant 1.000000e+00 : f32
    %417 = vector.broadcast %cst_120 : f32 to vector<8x128xf32>
    %418 = arith.addf %417, %416 : vector<8x128xf32>
    %419 = arith.divf %417, %418 : vector<8x128xf32>
    %420 = vector.extract_strided_slice %401 {offsets = [0, 256], sizes = [8, 128], strides = [1, 1]} : vector<8x384xf32> to vector<8x128xf32>
    %421 = vector.extract_strided_slice %403 {offsets = [0, 256], sizes = [8, 128], strides = [1, 1]} : vector<8x384xf32> to vector<8x128xf32>
    %c0_121 = arith.constant 0 : index
    %c0_122 = arith.constant 0 : index
    %422 = vector.load %arg4[%c0_121, %c0_122] : memref<1x128xf32, #tpu.memory_space<vmem>>, vector<1x128xf32>
    %423 = vector.broadcast %422 : vector<1x128xf32> to vector<8x128xf32>
    %424 = arith.addf %421, %423 : vector<8x128xf32>
    %425 = arith.mulf %411, %424 : vector<8x128xf32>
    %426 = arith.addf %420, %425 : vector<8x128xf32>
    %427 = math.tanh %426 : vector<8x128xf32>
    %428 = arith.subf %374, %427 : vector<8x128xf32>
    %429 = arith.mulf %419, %428 : vector<8x128xf32>
    %430 = arith.addf %427, %429 : vector<8x128xf32>
    %431 = tpu.concatenate %430, %400 in 1 : vector<8x128xf32>, vector<8x128xf32> -> vector<8x256xf32>
    %c0_123 = arith.constant 0 : index
    %c0_124 = arith.constant 0 : index
    %432 = vector.load %arg5[%c0_123, %c0_124] : memref<256x512xf32, #tpu.memory_space<vmem>>, vector<256x512xf32>
    %cst_125 = arith.constant dense<0.000000e+00> : vector<8x512xf32>
    %433 = tpu.matmul %431, %432, %cst_125 {dimension_numbers = #tpu.dot_dimension_numbers<[1], [0], [0], [1], [0, 0, 1, 1], [], []>} : vector<8x256xf32>, vector<256x512xf32>, vector<8x512xf32> -> vector<8x512xf32>
    %c0_126 = arith.constant 0 : index
    %c0_127 = arith.constant 0 : index
    %434 = vector.load %arg6[%c0_126, %c0_127] : memref<1x512xf32, #tpu.memory_space<vmem>>, vector<1x512xf32>
    %435 = vector.broadcast %434 : vector<1x512xf32> to vector<8x512xf32>
    %436 = arith.addf %433, %435 : vector<8x512xf32>
    %437 = vector.extract_strided_slice %436 {offsets = [0, 0], sizes = [8, 128], strides = [1, 1]} : vector<8x512xf32> to vector<8x128xf32>
    %438 = arith.negf %437 : vector<8x128xf32>
    %439 = math.exp %438 : vector<8x128xf32>
    %cst_128 = arith.constant 1.000000e+00 : f32
    %440 = vector.broadcast %cst_128 : f32 to vector<8x128xf32>
    %441 = arith.addf %440, %439 : vector<8x128xf32>
    %442 = arith.divf %440, %441 : vector<8x128xf32>
    %443 = vector.extract_strided_slice %436 {offsets = [0, 128], sizes = [8, 128], strides = [1, 1]} : vector<8x512xf32> to vector<8x128xf32>
    %444 = arith.negf %443 : vector<8x128xf32>
    %445 = math.exp %444 : vector<8x128xf32>
    %cst_129 = arith.constant 1.000000e+00 : f32
    %446 = vector.broadcast %cst_129 : f32 to vector<8x128xf32>
    %447 = arith.addf %446, %445 : vector<8x128xf32>
    %448 = arith.divf %446, %447 : vector<8x128xf32>
    %449 = vector.extract_strided_slice %436 {offsets = [0, 256], sizes = [8, 128], strides = [1, 1]} : vector<8x512xf32> to vector<8x128xf32>
    %450 = vector.extract_strided_slice %436 {offsets = [0, 384], sizes = [8, 128], strides = [1, 1]} : vector<8x512xf32> to vector<8x128xf32>
    %451 = arith.mulf %442, %450 : vector<8x128xf32>
    %452 = arith.addf %449, %451 : vector<8x128xf32>
    %453 = math.tanh %452 : vector<8x128xf32>
    %454 = arith.subf %400, %453 : vector<8x128xf32>
    %455 = arith.mulf %448, %454 : vector<8x128xf32>
    %456 = arith.addf %453, %455 : vector<8x128xf32>
    %c0_130 = arith.constant 0 : index
    %c0_131 = arith.constant 0 : index
    %457 = vector.load %arg7[%c0_130, %c0_131] : memref<128x128xf32, #tpu.memory_space<vmem>>, vector<128x128xf32>
    %cst_132 = arith.constant dense<0.000000e+00> : vector<8x128xf32>
    %458 = tpu.matmul %456, %457, %cst_132 {dimension_numbers = #tpu.dot_dimension_numbers<[1], [0], [0], [1], [0, 0, 1, 1], [], []>} : vector<8x128xf32>, vector<128x128xf32>, vector<8x128xf32> -> vector<8x128xf32>
    %c0_133 = arith.constant 0 : index
    %c0_134 = arith.constant 0 : index
    %459 = vector.load %arg8[%c0_133, %c0_134] : memref<1x128xf32, #tpu.memory_space<vmem>>, vector<1x128xf32>
    %460 = vector.broadcast %459 : vector<1x128xf32> to vector<8x128xf32>
    %461 = arith.addf %458, %460 : vector<8x128xf32>
    %c0_135 = arith.constant 0 : index
    %c0_136 = arith.constant 0 : index
    %462 = vector.load %arg9[%c0_135, %c0_136] : memref<8x128xf32, #tpu.memory_space<vmem>>, vector<8x128xf32>
    tpu.vector_store %arg9[%c0_135, %c0_136], %461 {strides = array<i32>} : memref<8x128xf32, #tpu.memory_space<vmem>>, vector<8x128xf32>,
    return
  }
}

</mosaic_0001>

<llo_original>
// kernel: gru_model_forward.1
$region0: #{gru_model_forward.1}
  #allocation0 [shape = 'u32[]', space=smem, size = 0x4, offset = 0x4, fixed_abs, tag = 'smem constant byte address 0x4 - core index']
  #allocation1 [shape = 'u32[72,128]{1,0:T(1,128)}', space=vmem, size = 0x9000, scoped, tag = 'internal scratch']
  #allocation2 [shape = 'f32[64,384]{1,0:T(8,128)}', space=vmem, size = 0x18000, scoped, tag = 'scratch operand']
  %s0 = inlined_call_operand.vmem [shape: f32[64,6], index: 0, kind: input, shape index: {}]
  %s1 = inlined_call_operand.vmem [shape: f32[6,384], index: 1, kind: input, shape index: {}]
  %s2 = inlined_call_operand.vmem [shape: f32[1,384], index: 2, kind: input, shape index: {}]
  %s3 = inlined_call_operand.hbm [shape: f32[128,384], index: 3, kind: input, shape index: {}]
  %s4 = inlined_call_operand.vmem [shape: f32[1,128], index: 4, kind: input, shape index: {}]
  %s5 = inlined_call_operand.hbm [shape: f32[256,512], index: 5, kind: input, shape index: {}]
  %s6 = inlined_call_operand.vmem [shape: f32[1,512], index: 6, kind: input, shape index: {}]
  %s7 = inlined_call_operand.vmem [shape: f32[128,128], index: 7, kind: input, shape index: {}]
  %s8 = inlined_call_operand.vmem [shape: f32[1,128], index: 8, kind: input, shape index: {}]
  %s9 = inlined_call_operand.vmem [shape: f32[8,128], index: 9, kind: output, shape index: {}]
  %s10 = sld [smem:[#allocation0]]
  $region54: #{gru_model_forward.1} parent=0
    _
  %s12 = ssub.s32 1, %s10
  %s13 = scalar_select 0, %s12, %s10
  $region1: #{gru_model_forward.1} parent=0
    #allocation3 [shape = 'u8[196608]{0}', space=vmem, size = 0x30000, scoped, tag = 'input window, operand 3, single buffered']
    #allocation4 [shape = 's32[1]{0}', space=sflag, size = 0x4, scoped, tag = 'scoped memory for gru_model_forward.1']
    #allocation5 [shape = 'u8[524288]{0}', space=vmem, size = 0x80000, scoped, tag = 'input window, operand 5, single buffered']
    #allocation6 [shape = 's32[1]{0}', space=sflag, size = 0x4, scoped, tag = 'scoped memory for gru_model_forward.1']
    %14 = vsyncpa [#allocation4], 0
    %15 = vsyncpa [#allocation6], 0
    // Predicated region
    $region2: #{gru_model_forward.1} parent=1 // pred_check
      _
    $region3: #{gru_model_forward.1} parent=1 // pred_check_branch
      %17 = sbr.rel (0) target = $region5
    $region4: #{gru_model_forward.1} parent=1 // pred_region
      _
    $region5: #{gru_model_forward.1} parent=1 // pred_fallthru
      _
    // Predicated region
    $region6: #{gru_model_forward.1} parent=1 // pred_check
      _
    $region7: #{gru_model_forward.1} parent=1 // pred_check_branch
      %19 = sbr.rel (0) target = $region9
    $region8: #{gru_model_forward.1} parent=1 // pred_region
      _
    $region9: #{gru_model_forward.1} parent=1 // pred_fallthru
      _
    // Predicated region
    $region10: #{gru_model_forward.1} parent=1 // pred_check
      _
    $region11: #{gru_model_forward.1} parent=1 // pred_check_branch
      %21 = sbr.rel (0) target = $region13
    $region12: #{gru_model_forward.1} parent=1 // pred_region
      _
    $region13: #{gru_model_forward.1} parent=1 // pred_fallthru
      _
    // Predicated region
    $region14: #{gru_model_forward.1} parent=1 // pred_check
      _
    $region15: #{gru_model_forward.1} parent=1 // pred_check_branch
      %23 = sbr.rel (0) target = $region17
    $region16: #{gru_model_forward.1} parent=1 // pred_region
      %25 = vsyncadd [#allocation4], 0
      %s26 = sshll.u32 %s3, 4
      %s27 = int_to_ptr.hbm [resolvable:$true] %s26
      %s28 = sshll.u32 [#allocation3], 4
      %s29 = int_to_ptr.vmem [resolvable:$true] %s28
      %34 = dma.hbm_to_vmem [thread:$0]  %s27, 6144, %s29, [#allocation4], 384, 384, 24
    $region17: #{gru_model_forward.1} parent=1 // pred_fallthru
      _
    // Predicated region
    $region18: #{gru_model_forward.1} parent=1 // pred_check
      _
    $region19: #{gru_model_forward.1} parent=1 // pred_check_branch
      %36 = sbr.rel (0) target = $region21
    $region20: #{gru_model_forward.1} parent=1 // pred_region
      _
    $region21: #{gru_model_forward.1} parent=1 // pred_fallthru
      _
    // Predicated region
    $region22: #{gru_model_forward.1} parent=1 // pred_check
      _
    $region23: #{gru_model_forward.1} parent=1 // pred_check_branch
      %38 = sbr.rel (0) target = $region25
    $region24: #{gru_model_forward.1} parent=1 // pred_region
      %40 = vsyncadd [#allocation6], 0
      %s41 = sshll.u32 %s5, 4
      %s42 = int_to_ptr.hbm [resolvable:$true] %s41
      %s43 = sshll.u32 [#allocation5], 4
      %s44 = int_to_ptr.vmem [resolvable:$true] %s43
      %49 = dma.hbm_to_vmem [thread:$0]  %s42, 16384, %s44, [#allocation6], 512, 512, 32
    $region25: #{gru_model_forward.1} parent=1 // pred_fallthru
      _
    // Predicated region
    $region26: #{gru_model_forward.1} parent=1 // pred_check
      _
    $region27: #{gru_model_forward.1} parent=1 // pred_check_branch
      %51 = sbr.rel (0) target = $region29
    $region28: #{gru_model_forward.1} parent=1 // pred_region
      _
    $region29: #{gru_model_forward.1} parent=1 // pred_fallthru
      _
    // Predicated region
    $region30: #{gru_model_forward.1} parent=1 // pred_check
      _
    $region31: #{gru_model_forward.1} parent=1 // pred_check_branch
      %53 = sbr.rel (0) target = $region33
    $region32: #{gru_model_forward.1} parent=1 // pred_region
      _
    $region33: #{gru_model_forward.1} parent=1 // pred_fallthru
      _
    // Predicated region
    $region34: #{gru_model_forward.1} parent=1 // pred_check
      _
    $region35: #{gru_model_forward.1} parent=1 // pred_check_branch
      %55 = sbr.rel (0) target = $region37
    $region36: #{gru_model_forward.1} parent=1 // pred_region
      _
    $region37: #{gru_model_forward.1} parent=1 // pred_fallthru
      _
    // Predicated region
    $region38: #{gru_model_forward.1} parent=1 // pred_check
      _
    $region39: #{gru_model_forward.1} parent=1 // pred_check_branch
      %57 = sbr.rel (0) target = $region41
    $region40: #{gru_model_forward.1} parent=1 // pred_region
      %59 = dma.done [#allocation4], 6144
    $region41: #{gru_model_forward.1} parent=1 // pred_fallthru
      _
    // Predicated region
    $region42: #{gru_model_forward.1} parent=1 // pred_check
      _
    $region43: #{gru_model_forward.1} parent=1 // pred_check_branch
      %61 = sbr.rel (0) target = $region45
    $region44: #{gru_model_forward.1} parent=1 // pred_region
      %63 = dma.done [#allocation6], 16384
    $region45: #{gru_model_forward.1} parent=1 // pred_fallthru
      _
    %v64 = vld [vmem:[%s0] sm:$0xff]
    %v65 = vld [vmem:[%s0 + $0x8] sm:$0xff]
    %v66 = vld [vmem:[%s0 + $0x10] sm:$0xff]
    %v67 = vld [vmem:[%s0 + $0x18] sm:$0xff]
    %v68 = vld [vmem:[%s0 + $0x20] sm:$0xff]
    %v69 = vld [vmem:[%s0 + $0x28] sm:$0xff]
    %v70 = vld [vmem:[%s0 + $0x30] sm:$0xff]
    %v71 = vld [vmem:[%s0 + $0x38] sm:$0xff]
    %v72 = vld [vmem:[%s1] sm:$0x3f]
    %v73 = vld [vmem:[%s1 + $0x8] sm:$0x3f]
    %v74 = vld [vmem:[%s1 + $0x10] sm:$0x3f]
    %v75 = vld [vmem:[%s2] sm:$0x7]
    %v77 = vperm.slane %v75, 0
    %v78 = vperm.slane %v75, 1
    %v79 = vperm.slane %v75, 2
    %vm83 = vcmask 48128
    %v85 = vsel %vm83, %v64, 0
    %v88 = vsel %vm83, %v65, 0
    %v91 = vsel %vm83, %v66, 0
    %v94 = vsel %vm83, %v67, 0
    %v97 = vsel %vm83, %v68, 0
    %v100 = vsel %vm83, %v69, 0
    %v103 = vsel %vm83, %v70, 0
    %v106 = vsel %vm83, %v71, 0
    %vm108 = vcmask 1045504
    %v110 = vsel %vm108, %v72, 0
    %v113 = vsel %vm108, %v73, 0
    %v116 = vsel %vm108, %v74, 0
    %118 = vmatpush.msra.mxu0 0.0
    %119 = vmatpush.msra.mxu0 0.0
    %120 = vmatpush.msra.mxu0 0.0
    %121 = vmatpush.msra.mxu0 0.0
    %122 = vmatpush.msra.mxu0 0.0
    %123 = vmatpush.msra.mxu0 0.0
    %124 = vmatpush.msra.mxu0 0.0
    %125 = vmatpush.msra.mxu0 0.0
    %126 = vmatpush.msra.mxu0 0.0
    %127 = vmatpush.msra.mxu0 0.0
    %128 = vmatpush.msra.mxu0 0.0
    %129 = vmatpush.msra.mxu0 0.0
    %130 = vmatpush.msra.mxu0 0.0
    %131 = vmatpush.msra.mxu0 0.0
    %132 = vmatpush.msra.mxu0 0.0
    %133 = vmatpush.msra.mxu0 %v110
    %134 = vmatmul.f32.gmra.mxu0 %v85
    %v135 = vpop.f32.mrf.mxu0
    %v136 = vadd.f32 %v77, %v135
    %137 = vmatmul.f32.gmra.mxu0 %v88
    %v138 = vpop.f32.mrf.mxu0
    %v139 = vadd.f32 %v77, %v138
    %140 = vmatmul.f32.gmra.mxu0 %v91
    %v141 = vpop.f32.mrf.mxu0
    %v142 = vadd.f32 %v77, %v141
    %143 = vmatmul.f32.gmra.mxu0 %v94
    %v144 = vpop.f32.mrf.mxu0
    %v145 = vadd.f32 %v77, %v144
    %146 = vmatmul.f32.gmra.mxu0 %v97
    %v147 = vpop.f32.mrf.mxu0
    %v148 = vadd.f32 %v77, %v147
    %149 = vmatmul.f32.gmra.mxu0 %v100
    %v150 = vpop.f32.mrf.mxu0
    %v151 = vadd.f32 %v77, %v150
    %152 = vmatmul.f32.gmra.mxu0 %v103
    %v153 = vpop.f32.mrf.mxu0
    %v154 = vadd.f32 %v77, %v153
    %155 = vmatmul.f32.gmra.mxu0 %v106
    %v156 = vpop.f32.mrf.mxu0
    %v157 = vadd.f32 %v77, %v156
    %158 = vdwg.mxu0
    %159 = vmatpush.msra.mxu0 0.0
    %160 = vmatpush.msra.mxu0 0.0
    %161 = vmatpush.msra.mxu0 0.0
    %162 = vmatpush.msra.mxu0 0.0
    %163 = vmatpush.msra.mxu0 0.0
    %164 = vmatpush.msra.mxu0 0.0
    %165 = vmatpush.msra.mxu0 0.0
    %166 = vmatpush.msra.mxu0 0.0
    %167 = vmatpush.msra.mxu0 0.0
    %168 = vmatpush.msra.mxu0 0.0
    %169 = vmatpush.msra.mxu0 0.0
    %170 = vmatpush.msra.mxu0 0.0
    %171 = vmatpush.msra.mxu0 0.0
    %172 = vmatpush.msra.mxu0 0.0
    %173 = vmatpush.msra.mxu0 0.0
    %174 = vmatpush.msra.mxu0 %v113
    %175 = vmatmul.f32.gmra.mxu0 %v85
    %v176 = vpop.f32.mrf.mxu0
    %v177 = vadd.f32 %v78, %v176
    %178 = vmatmul.f32.gmra.mxu0 %v88
    %v179 = vpop.f32.mrf.mxu0
    %v180 = vadd.f32 %v78, %v179
    %181 = vmatmul.f32.gmra.mxu0 %v91
    %v182 = vpop.f32.mrf.mxu0
    %v183 = vadd.f32 %v78, %v182
    %184 = vmatmul.f32.gmra.mxu0 %v94
    %v185 = vpop.f32.mrf.mxu0
    %v186 = vadd.f32 %v78, %v185
    %187 = vmatmul.f32.gmra.mxu0 %v97
    %v188 = vpop.f32.mrf.mxu0
    %v189 = vadd.f32 %v78, %v188
    %190 = vmatmul.f32.gmra.mxu0 %v100
    %v191 = vpop.f32.mrf.mxu0
    %v192 = vadd.f32 %v78, %v191
    %193 = vmatmul.f32.gmra.mxu0 %v103
    %v194 = vpop.f32.mrf.mxu0
    %v195 = vadd.f32 %v78, %v194
    %196 = vmatmul.f32.gmra.mxu0 %v106
    %v197 = vpop.f32.mrf.mxu0
    %v198 = vadd.f32 %v78, %v197
    %199 = vdwg.mxu0
    %200 = vmatpush.msra.mxu0 0.0
    %201 = vmatpush.msra.mxu0 0.0
    %202 = vmatpush.msra.mxu0 0.0
    %203 = vmatpush.msra.mxu0 0.0
    %204 = vmatpush.msra.mxu0 0.0
    %205 = vmatpush.msra.mxu0 0.0
    %206 = vmatpush.msra.mxu0 0.0
    %207 = vmatpush.msra.mxu0 0.0
    %208 = vmatpush.msra.mxu0 0.0
    %209 = vmatpush.msra.mxu0 0.0
    %210 = vmatpush.msra.mxu0 0.0
    %211 = vmatpush.msra.mxu0 0.0
    %212 = vmatpush.msra.mxu0 0.0
    %213 = vmatpush.msra.mxu0 0.0
    %214 = vmatpush.msra.mxu0 0.0
    %215 = vmatpush.msra.mxu0 %v116
    %216 = vmatmul.f32.gmra.mxu0 %v85
    %v217 = vpop.f32.mrf.mxu0
    %v218 = vadd.f32 %v79, %v217
    %219 = vmatmul.f32.gmra.mxu0 %v88
    %v220 = vpop.f32.mrf.mxu0
    %v221 = vadd.f32 %v79, %v220
    %222 = vmatmul.f32.gmra.mxu0 %v91
    %v223 = vpop.f32.mrf.mxu0
    %v224 = vadd.f32 %v79, %v223
    %225 = vmatmul.f32.gmra.mxu0 %v94
    %v226 = vpop.f32.mrf.mxu0
    %v227 = vadd.f32 %v79, %v226
    %228 = vmatmul.f32.gmra.mxu0 %v97
    %v229 = vpop.f32.mrf.mxu0
    %v230 = vadd.f32 %v79, %v229
    %231 = vmatmul.f32.gmra.mxu0 %v100
    %v232 = vpop.f32.mrf.mxu0
    %v233 = vadd.f32 %v79, %v232
    %234 = vmatmul.f32.gmra.mxu0 %v103
    %v235 = vpop.f32.mrf.mxu0
    %v236 = vadd.f32 %v79, %v235
    %237 = vmatmul.f32.gmra.mxu0 %v106
    %v238 = vpop.f32.mrf.mxu0
    %v239 = vadd.f32 %v79, %v238
    %240 = vdwg.mxu0
    %241 = vst [vmem:[#allocation2] sm:$0xff] %v136
    %242 = vst [vmem:[#allocation2 + $0x8] sm:$0xff] %v177
    %243 = vst [vmem:[#allocation2 + $0x10] sm:$0xff] %v218
    %244 = vst [vmem:[#allocation2 + $0x18] sm:$0xff] %v139
    %245 = vst [vmem:[#allocation2 + $0x20] sm:$0xff] %v180
    %246 = vst [vmem:[#allocation2 + $0x28] sm:$0xff] %v221
    %247 = vst [vmem:[#allocation2 + $0x30] sm:$0xff] %v142
    %248 = vst [vmem:[#allocation2 + $0x38] sm:$0xff] %v183
    %249 = vst [vmem:[#allocation2 + $0x40] sm:$0xff] %v224
    %250 = vst [vmem:[#allocation2 + $0x48] sm:$0xff] %v145
    %251 = vst [vmem:[#allocation2 + $0x50] sm:$0xff] %v186
    %252 = vst [vmem:[#allocation2 + $0x58] sm:$0xff] %v227
    %253 = vst [vmem:[#allocation2 + $0x60] sm:$0xff] %v148
    %254 = vst [vmem:[#allocation2 + $0x68] sm:$0xff] %v189
    %255 = vst [vmem:[#allocation2 + $0x70] sm:$0xff] %v230
    %256 = vst [vmem:[#allocation2 + $0x78] sm:$0xff] %v151
    %257 = vst [vmem:[#allocation2 + $0x80] sm:$0xff] %v192
    %258 = vst [vmem:[#allocation2 + $0x88] sm:$0xff] %v233
    %259 = vst [vmem:[#allocation2 + $0x90] sm:$0xff] %v154
    %260 = vst [vmem:[#allocation2 + $0x98] sm:$0xff] %v195
    %261 = vst [vmem:[#allocation2 + $0xa0] sm:$0xff] %v236
    %262 = vst [vmem:[#allocation2 + $0xa8] sm:$0xff] %v157
    %263 = vst [vmem:[#allocation2 + $0xb0] sm:$0xff] %v198
    %264 = vst [vmem:[#allocation2 + $0xb8] sm:$0xff] %v239
    %v265 = vld [vmem:[#allocation2] sm:$0xff]
    %v266 = vld [vmem:[#allocation2 + $0x8] sm:$0xff]
    %v267 = vld [vmem:[#allocation2 + $0x10] sm:$0xff]
    %v268 = vld [vmem:[#allocation3] sm:$0xff]
    %v269 = vld [vmem:[#allocation3 + $0x8] sm:$0xff]
    %v270 = vld [vmem:[#allocation3 + $0x10] sm:$0xff]
    %v271 = vld [vmem:[#allocation3 + $0x18] sm:$0xff]
    %v272 = vld [vmem:[#allocation3 + $0x20] sm:$0xff]
    %v273 = vld [vmem:[#allocation3 + $0x28] sm:$0xff]
    %v274 = vld [vmem:[#allocation3 + $0x30] sm:$0xff]
    %v275 = vld [vmem:[#allocation3 + $0x38] sm:$0xff]
    %v276 = vld [vmem:[#allocation3 + $0x40] sm:$0xff]
    %v277 = vld [vmem:[#allocation3 + $0x48] sm:$0xff]
    %v278 = vld [vmem:[#allocation3 + $0x50] sm:$0xff]
    %v279 = vld [vmem:[#allocation3 + $0x58] sm:$0xff]
    %v280 = vld [vmem:[#allocation3 + $0x60] sm:$0xff]
    %v281 = vld [vmem:[#allocation3 + $0x68] sm:$0xff]
    %v282 = vld [vmem:[#allocation3 + $0x70] sm:$0xff]
    %v283 = vld [vmem:[#allocation3 + $0x78] sm:$0xff]
    %v284 = vld [vmem:[#allocation3 + $0x80] sm:$0xff]
    %v285 = vld [vmem:[#allocation3 + $0x88] sm:$0xff]
    %v286 = vld [vmem:[#allocation3 + $0x90] sm:$0xff]
    %v287 = vld [vmem:[#allocation3 + $0x98] sm:$0xff]
    %v288 = vld [vmem:[#allocation3 + $0xa0] sm:$0xff]
    %v289 = vld [vmem:[#allocation3 + $0xa8] sm:$0xff]
    %v290 = vld [vmem:[#allocation3 + $0xb0] sm:$0xff]
    %v291 = vld [vmem:[#allocation3 + $0xb8] sm:$0xff]
    %v292 = vld [vmem:[#allocation3 + $0xc0] sm:$0xff]
    %v293 = vld [vmem:[#allocation3 + $0xc8] sm:$0xff]
    %v294 = vld [vmem:[#allocation3 + $0xd0] sm:$0xff]
    %v295 = vld [vmem:[#allocation3 + $0xd8] sm:$0xff]
    %v296 = vld [vmem:[#allocation3 + $0xe0] sm:$0xff]
    %v297 = vld [vmem:[#allocation3 + $0xe8] sm:$0xff]
    %v298 = vld [vmem:[#allocation3 + $0xf0] sm:$0xff]
    %v299 = vld [vmem:[#allocation3 + $0xf8] sm:$0xff]
    %v300 = vld [vmem:[#allocation3 + $0x100] sm:$0xff]
    %v301 = vld [vmem:[#allocation3 + $0x108] sm:$0xff]
    %v302 = vld [vmem:[#allocation3 + $0x110] sm:$0xff]
    %v303 = vld [vmem:[#allocation3 + $0x118] sm:$0xff]
    %v304 = vld [vmem:[#allocation3 + $0x120] sm:$0xff]
    %v305 = vld [vmem:[#allocation3 + $0x128] sm:$0xff]
    %v306 = vld [vmem:[#allocation3 + $0x130] sm:$0xff]
    %v307 = vld [vmem:[#allocation3 + $0x138] sm:$0xff]
    %v308 = vld [vmem:[#allocation3 + $0x140] sm:$0xff]
    %v309 = vld [vmem:[#allocation3 + $0x148] sm:$0xff]
    %v310 = vld [vmem:[#allocation3 + $0x150] sm:$0xff]
    %v311 = vld [vmem:[#allocation3 + $0x158] sm:$0xff]
    %v312 = vld [vmem:[#allocation3 + $0x160] sm:$0xff]
    %v313 = vld [vmem:[#allocation3 + $0x168] sm:$0xff]
    %v314 = vld [vmem:[#allocation3 + $0x170] sm:$0xff]
    %v315 = vld [vmem:[#allocation3 + $0x178] sm:$0xff]
    %316 = vmatpush.msra.mxu0 %v313
    %317 = vmatpush.msra.mxu0 %v310
    %318 = vmatpush.msra.mxu0 %v307
    %319 = vmatpush.msra.mxu0 %v304
    %320 = vmatpush.msra.mxu0 %v301
    %321 = vmatpush.msra.mxu0 %v298
    %322 = vmatpush.msra.mxu0 %v295
    %323 = vmatpush.msra.mxu0 %v292
    %324 = vmatpush.msra.mxu0 %v289
    %325 = vmatpush.msra.mxu0 %v286
    %326 = vmatpush.msra.mxu0 %v283
    %327 = vmatpush.msra.mxu0 %v280
    %328 = vmatpush.msra.mxu0 %v277
    %329 = vmatpush.msra.mxu0 %v274
    %330 = vmatpush.msra.mxu0 %v271
    %331 = vmatpush.msra.mxu0 %v268
    %332 = vmatmul.f32.gmra.mxu0 0.0
    %v333 = vpop.f32.mrf.mxu0
    %v334 = vadd.f32 0.0, %v333
    %335 = vdwg.mxu0
    %336 = vmatpush.msra.mxu0 %v314
    %337 = vmatpush.msra.mxu0 %v311
    %338 = vmatpush.msra.mxu0 %v308
    %339 = vmatpush.msra.mxu0 %v305
    %340 = vmatpush.msra.mxu0 %v302
    %341 = vmatpush.msra.mxu0 %v299
    %342 = vmatpush.msra.mxu0 %v296
    %343 = vmatpush.msra.mxu0 %v293
    %344 = vmatpush.msra.mxu0 %v290
    %345 = vmatpush.msra.mxu0 %v287
    %346 = vmatpush.msra.mxu0 %v284
    %347 = vmatpush.msra.mxu0 %v281
    %348 = vmatpush.msra.mxu0 %v278
    %349 = vmatpush.msra.mxu0 %v275
    %350 = vmatpush.msra.mxu0 %v272
    %351 = vmatpush.msra.mxu0 %v269
    %352 = vmatmul.f32.gmra.mxu0 0.0
    %v353 = vpop.f32.mrf.mxu0
    %v354 = vadd.f32 0.0, %v353
    %355 = vdwg.mxu0
    %356 = vmatpush.msra.mxu0 %v315
    %357 = vmatpush.msra.mxu0 %v312
    %358 = vmatpush.msra.mxu0 %v309
    %359 = vmatpush.msra.mxu0 %v306
    %360 = vmatpush.msra.mxu0 %v303
    %361 = vmatpush.msra.mxu0 %v300
    %362 = vmatpush.msra.mxu0 %v297
    %363 = vmatpush.msra.mxu0 %v294
    %364 = vmatpush.msra.mxu0 %v291
    %365 = vmatpush.msra.mxu0 %v288
    %366 = vmatpush.msra.mxu0 %v285
    %367 = vmatpush.msra.mxu0 %v282
    %368 = vmatpush.msra.mxu0 %v279
    %369 = vmatpush.msra.mxu0 %v276
    %370 = vmatpush.msra.mxu0 %v273
    %371 = vmatpush.msra.mxu0 %v270
    %372 = vmatmul.f32.gmra.mxu0 0.0
    %v373 = vpop.f32.mrf.mxu0
    %v374 = vadd.f32 0.0, %v373
    %375 = vdwg.mxu0
    %v376 = vadd.f32 %v265, %v334
    %v377 = vxor.u32 %v376, 2147483648
    %v378 = vmul.f32 %v377, 1.442695
    %v379 = vpow.pop %v378
    %v380 = vadd.f32 %v379, 1.0
    %v381 = vrcp.pop %v380
    %v382 = vmul.f32 %v380, %v381
    %v383 = vsub.f32 1.0, %v382
    %v384 = vmul.f32 %v381, %v383
    %v385 = vadd.f32 %v381, %v384
    %vm386 = vweird.f32 %v380
    %vm387 = vweird.f32 %v381
    %vm388 = vmor %vm386, %vm387
    %v389 = vsel %vm388, %v381, %v385
    %v390 = vand.u32 2147483647, %v380
    %vm391 = vcmp.eq.f32.partialorder %v390, 8.507059e+37
    %v392 = vand.u32 %v380, 2147483648
    %v393 = vor.u32 1.1754944e-38, %v392
    %v394 = vsel %vm391, %v393, %v389
    %v395 = vmul.f32 1.0, %v394
    %v396 = vadd.f32 %v266, %v354
    %v397 = vxor.u32 %v396, 2147483648
    %v398 = vmul.f32 %v397, 1.442695
    %v399 = vpow.pop %v398
    %v400 = vadd.f32 %v399, 1.0
    %v401 = vrcp.pop %v400
    %v402 = vmul.f32 %v400, %v401
    %v403 = vsub.f32 1.0, %v402
    %v404 = vmul.f32 %v401, %v403
    %v405 = vadd.f32 %v401, %v404
    %vm406 = vweird.f32 %v400
    %vm407 = vweird.f32 %v401
    %vm408 = vmor %vm406, %vm407
    %v409 = vsel %vm408, %v401, %v405
    %v410 = vand.u32 2147483647, %v400
    %vm411 = vcmp.eq.f32.partialorder %v410, 8.507059e+37
    %v412 = vand.u32 %v400, 2147483648
    %v413 = vor.u32 1.1754944e-38, %v412
    %v414 = vsel %vm411, %v413, %v409
    %v415 = vmul.f32 1.0, %v414
    %v416 = vld [vmem:[%s4] sm:$0x1]
    %v418 = vperm.slane %v416, 0
    %v420 = vadd.f32 %v374, %v418
    %v421 = vmul.f32 %v395, %v420
    %v422 = vadd.f32 %v267, %v421
    %v423 = vtanh.pop %v422
    %v424 = vsub.f32 0.0, %v423
    %v425 = vmul.f32 %v415, %v424
    %v426 = vadd.f32 %v423, %v425
    %v427 = vld [vmem:[#allocation5] sm:$0xff]
    %v428 = vld [vmem:[#allocation5 + $0x8] sm:$0xff]
    %v429 = vld [vmem:[#allocation5 + $0x10] sm:$0xff]
    %v430 = vld [vmem:[#allocation5 + $0x18] sm:$0xff]
    %v431 = vld [vmem:[#allocation5 + $0x20] sm:$0xff]
    %v432 = vld [vmem:[#allocation5 + $0x28] sm:$0xff]
    %v433 = vld [vmem:[#allocation5 + $0x30] sm:$0xff]
    %v434 = vld [vmem:[#allocation5 + $0x38] sm:$0xff]
    %v435 = vld [vmem:[#allocation5 + $0x40] sm:$0xff]
    %v436 = vld [vmem:[#allocation5 + $0x48] sm:$0xff]
    %v437 = vld [vmem:[#allocation5 + $0x50] sm:$0xff]
    %v438 = vld [vmem:[#allocation5 + $0x58] sm:$0xff]
    %v439 = vld [vmem:[#allocation5 + $0x60] sm:$0xff]
    %v440 = vld [vmem:[#allocation5 + $0x68] sm:$0xff]
    %v441 = vld [vmem:[#allocation5 + $0x70] sm:$0xff]
    %v442 = vld [vmem:[#allocation5 + $0x78] sm:$0xff]
    %v443 = vld [vmem:[#allocation5 + $0x80] sm:$0xff]
    %v444 = vld [vmem:[#allocation5 + $0x88] sm:$0xff]
    %v445 = vld [vmem:[#allocation5 + $0x90] sm:$0xff]
    %v446 = vld [vmem:[#allocation5 + $0x98] sm:$0xff]
    %v447 = vld [vmem:[#allocation5 + $0xa0] sm:$0xff]
    %v448 = vld [vmem:[#allocation5 + $0xa8] sm:$0xff]
    %v449 = vld [vmem:[#allocation5 + $0xb0] sm:$0xff]
    %v450 = vld [vmem:[#allocation5 + $0xb8] sm:$0xff]
    %v451 = vld [vmem:[#allocation5 + $0xc0] sm:$0xff]
    %v452 = vld [vmem:[#allocation5 + $0xc8] sm:$0xff]
    %v453 = vld [vmem:[#allocation5 + $0xd0] sm:$0xff]
    %v454 = vld [vmem:[#allocation5 + $0xd8] sm:$0xff]
    %v455 = vld [vmem:[#allocation5 + $0xe0] sm:$0xff]
    %v456 = vld [vmem:[#allocation5 + $0xe8] sm:$0xff]
    %v457 = vld [vmem:[#allocation5 + $0xf0] sm:$0xff]
    %v458 = vld [vmem:[#allocation5 + $0xf8] sm:$0xff]
    %v459 = vld [vmem:[#allocation5 + $0x100] sm:$0xff]
    %v460 = vld [vmem:[#allocation5 + $0x108] sm:$0xff]
    %v461 = vld [vmem:[#allocation5 + $0x110] sm:$0xff]
    %v462 = vld [vmem:[#allocation5 + $0x118] sm:$0xff]
    %v463 = vld [vmem:[#allocation5 + $0x120] sm:$0xff]
    %v464 = vld [vmem:[#allocation5 + $0x128] sm:$0xff]
    %v465 = vld [vmem:[#allocation5 + $0x130] sm:$0xff]
    %v466 = vld [vmem:[#allocation5 + $0x138] sm:$0xff]
    %v467 = vld [vmem:[#allocation5 + $0x140] sm:$0xff]
    %v468 = vld [vmem:[#allocation5 + $0x148] sm:$0xff]
    %v469 = vld [vmem:[#allocation5 + $0x150] sm:$0xff]
    %v470 = vld [vmem:[#allocation5 + $0x158] sm:$0xff]
    %v471 = vld [vmem:[#allocation5 + $0x160] sm:$0xff]
    %v472 = vld [vmem:[#allocation5 + $0x168] sm:$0xff]
    %v473 = vld [vmem:[#allocation5 + $0x170] sm:$0xff]
    %v474 = vld [vmem:[#allocation5 + $0x178] sm:$0xff]
    %v475 = vld [vmem:[#allocation5 + $0x180] sm:$0xff]
    %v476 = vld [vmem:[#allocation5 + $0x188] sm:$0xff]
    %v477 = vld [vmem:[#allocation5 + $0x190] sm:$0xff]
    %v478 = vld [vmem:[#allocation5 + $0x198] sm:$0xff]
    %v479 = vld [vmem:[#allocation5 + $0x1a0] sm:$0xff]
    %v480 = vld [vmem:[#allocation5 + $0x1a8] sm:$0xff]
    %v481 = vld [vmem:[#allocation5 + $0x1b0] sm:$0xff]
    %v482 = vld [vmem:[#allocation5 + $0x1b8] sm:$0xff]
    %v483 = vld [vmem:[#allocation5 + $0x1c0] sm:$0xff]
    %v484 = vld [vmem:[#allocation5 + $0x1c8] sm:$0xff]
    %v485 = vld [vmem:[#allocation5 + $0x1d0] sm:$0xff]
    %v486 = vld [vmem:[#allocation5 + $0x1d8] sm:$0xff]
    %v487 = vld [vmem:[#allocation5 + $0x1e0] sm:$0xff]
    %v488 = vld [vmem:[#allocation5 + $0x1e8] sm:$0xff]
    %v489 = vld [vmem:[#allocation5 + $0x1f0] sm:$0xff]
    %v490 = vld [vmem:[#allocation5 + $0x1f8] sm:$0xff]
    %v491 = vld [vmem:[#allocation5 + $0x200] sm:$0xff]
    %v492 = vld [vmem:[#allocation5 + $0x208] sm:$0xff]
    %v493 = vld [vmem:[#allocation5 + $0x210] sm:$0xff]
    %v494 = vld [vmem:[#allocation5 + $0x218] sm:$0xff]
    %v495 = vld [vmem:[#allocation5 + $0x220] sm:$0xff]
    %v496 = vld [vmem:[#allocation5 + $0x228] sm:$0xff]
    %v497 = vld [vmem:[#allocation5 + $0x230] sm:$0xff]
    %v498 = vld [vmem:[#allocation5 + $0x238] sm:$0xff]
    %v499 = vld [vmem:[#allocation5 + $0x240] sm:$0xff]
    %v500 = vld [vmem:[#allocation5 + $0x248] sm:$0xff]
    %v501 = vld [vmem:[#allocation5 + $0x250] sm:$0xff]
    %v502 = vld [vmem:[#allocation5 + $0x258] sm:$0xff]
    %v503 = vld [vmem:[#allocation5 + $0x260] sm:$0xff]
    %v504 = vld [vmem:[#allocation5 + $0x268] sm:$0xff]
    %v505 = vld [vmem:[#allocation5 + $0x270] sm:$0xff]
    %v506 = vld [vmem:[#allocation5 + $0x278] sm:$0xff]
    %v507 = vld [vmem:[#allocation5 + $0x280] sm:$0xff]
    %v508 = vld [vmem:[#allocation5 + $0x288] sm:$0xff]
    %v509 = vld [vmem:[#allocation5 + $0x290] sm:$0xff]
    %v510 = vld [vmem:[#allocation5 + $0x298] sm:$0xff]
    %v511 = vld [vmem:[#allocation5 + $0x2a0] sm:$0xff]
    %v512 = vld [vmem:[#allocation5 + $0x2a8] sm:$0xff]
    %v513 = vld [vmem:[#allocation5 + $0x2b0] sm:$0xff]
    %v514 = vld [vmem:[#allocation5 + $0x2b8] sm:$0xff]
    %v515 = vld [vmem:[#allocation5 + $0x2c0] sm:$0xff]
    %v516 = vld [vmem:[#allocation5 + $0x2c8] sm:$0xff]
    %v517 = vld [vmem:[#allocation5 + $0x2d0] sm:$0xff]
    %v518 = vld [vmem:[#allocation5 + $0x2d8] sm:$0xff]
    %v519 = vld [vmem:[#allocation5 + $0x2e0] sm:$0xff]
    %v520 = vld [vmem:[#allocation5 + $0x2e8] sm:$0xff]
    %v521 = vld [vmem:[#allocation5 + $0x2f0] sm:$0xff]
    %v522 = vld [vmem:[#allocation5 + $0x2f8] sm:$0xff]
    %v523 = vld [vmem:[#allocation5 + $0x300] sm:$0xff]
    %v524 = vld [vmem:[#allocation5 + $0x308] sm:$0xff]
    %v525 = vld [vmem:[#allocation5 + $0x310] sm:$0xff]
    %v526 = vld [vmem:[#allocation5 + $0x318] sm:$0xff]
    %v527 = vld [vmem:[#allocation5 + $0x320] sm:$0xff]
    %v528 = vld [vmem:[#allocation5 + $0x328] sm:$0xff]
    %v529 = vld [vmem:[#allocation5 + $0x330] sm:$0xff]
    %v530 = vld [vmem:[#allocation5 + $0x338] sm:$0xff]
    %v531 = vld [vmem:[#allocation5 + $0x340] sm:$0xff]
    %v532 = vld [vmem:[#allocation5 + $0x348] sm:$0xff]
    %v533 = vld [vmem:[#allocation5 + $0x350] sm:$0xff]
    %v534 = vld [vmem:[#allocation5 + $0x358] sm:$0xff]
    %v535 = vld [vmem:[#allocation5 + $0x360] sm:$0xff]
    %v536 = vld [vmem:[#allocation5 + $0x368] sm:$0xff]
    %v537 = vld [vmem:[#allocation5 + $0x370] sm:$0xff]
    %v538 = vld [vmem:[#allocation5 + $0x378] sm:$0xff]
    %v539 = vld [vmem:[#allocation5 + $0x380] sm:$0xff]
    %v540 = vld [vmem:[#allocation5 + $0x388] sm:$0xff]
    %v541 = vld [vmem:[#allocation5 + $0x390] sm:$0xff]
    %v542 = vld [vmem:[#allocation5 + $0x398] sm:$0xff]
    %v543 = vld [vmem:[#allocation5 + $0x3a0] sm:$0xff]
    %v544 = vld [vmem:[#allocation5 + $0x3a8] sm:$0xff]
    %v545 = vld [vmem:[#allocation5 + $0x3b0] sm:$0xff]
    %v546 = vld [vmem:[#allocation5 + $0x3b8] sm:$0xff]
    %v547 = vld [vmem:[#allocation5 + $0x3c0] sm:$0xff]
    %v548 = vld [vmem:[#allocation5 + $0x3c8] sm:$0xff]
    %v549 = vld [vmem:[#allocation5 + $0x3d0] sm:$0xff]
    %v550 = vld [vmem:[#allocation5 + $0x3d8] sm:$0xff]
    %v551 = vld [vmem:[#allocation5 + $0x3e0] sm:$0xff]
    %v552 = vld [vmem:[#allocation5 + $0x3e8] sm:$0xff]
    %v553 = vld [vmem:[#allocation5 + $0x3f0] sm:$0xff]
    %v554 = vld [vmem:[#allocation5 + $0x3f8] sm:$0xff]
    %v555 = vld [vmem:[%s6] sm:$0xf]
    %v557 = vperm.slane %v555, 0
    %v558 = vperm.slane %v555, 1
    %v559 = vperm.slane %v555, 2
    %v560 = vperm.slane %v555, 3
    %565 = vmatpush.msra.mxu0 %v487
    %566 = vmatpush.msra.mxu0 %v483
    %567 = vmatpush.msra.mxu0 %v479
    %568 = vmatpush.msra.mxu0 %v475
    %569 = vmatpush.msra.mxu0 %v471
    %570 = vmatpush.msra.mxu0 %v467
    %571 = vmatpush.msra.mxu0 %v463
    %572 = vmatpush.msra.mxu0 %v459
    %573 = vmatpush.msra.mxu0 %v455
    %574 = vmatpush.msra.mxu0 %v451
    %575 = vmatpush.msra.mxu0 %v447
    %576 = vmatpush.msra.mxu0 %v443
    %577 = vmatpush.msra.mxu0 %v439
    %578 = vmatpush.msra.mxu0 %v435
    %579 = vmatpush.msra.mxu0 %v431
    %580 = vmatpush.msra.mxu0 %v427
    %581 = vmatmul.f32.gmra.mxu0 %v426
    %v582 = vpop.f32.mrf.mxu0
    %v583 = vadd.f32 %v557, %v582
    %584 = vdwg.mxu0
    %585 = vmatpush.msra.mxu0 %v551
    %586 = vmatpush.msra.mxu0 %v547
    %587 = vmatpush.msra.mxu0 %v543
    %588 = vmatpush.msra.mxu0 %v539
    %589 = vmatpush.msra.mxu0 %v535
    %590 = vmatpush.msra.mxu0 %v531
    %591 = vmatpush.msra.mxu0 %v527
    %592 = vmatpush.msra.mxu0 %v523
    %593 = vmatpush.msra.mxu0 %v519
    %594 = vmatpush.msra.mxu0 %v515
    %595 = vmatpush.msra.mxu0 %v511
    %596 = vmatpush.msra.mxu0 %v507
    %597 = vmatpush.msra.mxu0 %v503
    %598 = vmatpush.msra.mxu0 %v499
    %599 = vmatpush.msra.mxu0 %v495
    %600 = vmatpush.msra.mxu0 %v491
    %601 = vmatmul.f32.gmra.mxu0 0.0
    %v602 = vpop.f32.mrf.mxu0
    %v603 = vadd.f32 %v583, %v602
    %604 = vdwg.mxu0
    %605 = vmatpush.msra.mxu0 %v488
    %606 = vmatpush.msra.mxu0 %v484
    %607 = vmatpush.msra.mxu0 %v480
    %608 = vmatpush.msra.mxu0 %v476
    %609 = vmatpush.msra.mxu0 %v472
    %610 = vmatpush.msra.mxu0 %v468
    %611 = vmatpush.msra.mxu0 %v464
    %612 = vmatpush.msra.mxu0 %v460
    %613 = vmatpush.msra.mxu0 %v456
    %614 = vmatpush.msra.mxu0 %v452
    %615 = vmatpush.msra.mxu0 %v448
    %616 = vmatpush.msra.mxu0 %v444
    %617 = vmatpush.msra.mxu0 %v440
    %618 = vmatpush.msra.mxu0 %v436
    %619 = vmatpush.msra.mxu0 %v432
    %620 = vmatpush.msra.mxu0 %v428
    %621 = vmatmul.f32.gmra.mxu0 %v426
    %v622 = vpop.f32.mrf.mxu0
    %v623 = vadd.f32 %v558, %v622
    %624 = vdwg.mxu0
    %625 = vmatpush.msra.mxu0 %v552
    %626 = vmatpush.msra.mxu0 %v548
    %627 = vmatpush.msra.mxu0 %v544
    %628 = vmatpush.msra.mxu0 %v540
    %629 = vmatpush.msra.mxu0 %v536
    %630 = vmatpush.msra.mxu0 %v532
    %631 = vmatpush.msra.mxu0 %v528
    %632 = vmatpush.msra.mxu0 %v524
    %633 = vmatpush.msra.mxu0 %v520
    %634 = vmatpush.msra.mxu0 %v516
    %635 = vmatpush.msra.mxu0 %v512
    %636 = vmatpush.msra.mxu0 %v508
    %637 = vmatpush.msra.mxu0 %v504
    %638 = vmatpush.msra.mxu0 %v500
    %639 = vmatpush.msra.mxu0 %v496
    %640 = vmatpush.msra.mxu0 %v492
    %641 = vmatmul.f32.gmra.mxu0 0.0
    %v642 = vpop.f32.mrf.mxu0
    %v643 = vadd.f32 %v623, %v642
    %644 = vdwg.mxu0
    %645 = vmatpush.msra.mxu0 %v489
    %646 = vmatpush.msra.mxu0 %v485
    %647 = vmatpush.msra.mxu0 %v481
    %648 = vmatpush.msra.mxu0 %v477
    %649 = vmatpush.msra.mxu0 %v473
    %650 = vmatpush.msra.mxu0 %v469
    %651 = vmatpush.msra.mxu0 %v465
    %652 = vmatpush.msra.mxu0 %v461
    %653 = vmatpush.msra.mxu0 %v457
    %654 = vmatpush.msra.mxu0 %v453
    %655 = vmatpush.msra.mxu0 %v449
    %656 = vmatpush.msra.mxu0 %v445
    %657 = vmatpush.msra.mxu0 %v441
    %658 = vmatpush.msra.mxu0 %v437
    %659 = vmatpush.msra.mxu0 %v433
    %660 = vmatpush.msra.mxu0 %v429
    %661 = vmatmul.f32.gmra.mxu0 %v426
    %v662 = vpop.f32.mrf.mxu0
    %v663 = vadd.f32 %v559, %v662
    %664 = vdwg.mxu0
    %665 = vmatpush.msra.mxu0 %v553
    %666 = vmatpush.msra.mxu0 %v549
    %667 = vmatpush.msra.mxu0 %v545
    %668 = vmatpush.msra.mxu0 %v541
    %669 = vmatpush.msra.mxu0 %v537
    %670 = vmatpush.msra.mxu0 %v533
    %671 = vmatpush.msra.mxu0 %v529
    %672 = vmatpush.msra.mxu0 %v525
    %673 = vmatpush.msra.mxu0 %v521
    %674 = vmatpush.msra.mxu0 %v517
    %675 = vmatpush.msra.mxu0 %v513
    %676 = vmatpush.msra.mxu0 %v509
    %677 = vmatpush.msra.mxu0 %v505
    %678 = vmatpush.msra.mxu0 %v501
    %679 = vmatpush.msra.mxu0 %v497
    %680 = vmatpush.msra.mxu0 %v493
    %681 = vmatmul.f32.gmra.mxu0 0.0
    %v682 = vpop.f32.mrf.mxu0
    %v683 = vadd.f32 %v663, %v682
    %684 = vdwg.mxu0
    %685 = vmatpush.msra.mxu0 %v490
    %686 = vmatpush.msra.mxu0 %v486
    %687 = vmatpush.msra.mxu0 %v482
    %688 = vmatpush.msra.mxu0 %v478
    %689 = vmatpush.msra.mxu0 %v474
    %690 = vmatpush.msra.mxu0 %v470
    %691 = vmatpush.msra.mxu0 %v466
    %692 = vmatpush.msra.mxu0 %v462
    %693 = vmatpush.msra.mxu0 %v458
    %694 = vmatpush.msra.mxu0 %v454
    %695 = vmatpush.msra.mxu0 %v450
    %696 = vmatpush.msra.mxu0 %v446
    %697 = vmatpush.msra.mxu0 %v442
    %698 = vmatpush.msra.mxu0 %v438
    %699 = vmatpush.msra.mxu0 %v434
    %700 = vmatpush.msra.mxu0 %v430
    %701 = vmatmul.f32.gmra.mxu0 %v426
    %v702 = vpop.f32.mrf.mxu0
    %v703 = vadd.f32 %v560, %v702
    %704 = vdwg.mxu0
    %705 = vmatpush.msra.mxu0 %v554
    %706 = vmatpush.msra.mxu0 %v550
    %707 = vmatpush.msra.mxu0 %v546
    %708 = vmatpush.msra.mxu0 %v542
    %709 = vmatpush.msra.mxu0 %v538
    %710 = vmatpush.msra.mxu0 %v534
    %711 = vmatpush.msra.mxu0 %v530
    %712 = vmatpush.msra.mxu0 %v526
    %713 = vmatpush.msra.mxu0 %v522
    %714 = vmatpush.msra.mxu0 %v518
    %715 = vmatpush.msra.mxu0 %v514
    %716 = vmatpush.msra.mxu0 %v510
    %717 = vmatpush.msra.mxu0 %v506
    %718 = vmatpush.msra.mxu0 %v502
    %719 = vmatpush.msra.mxu0 %v498
    %720 = vmatpush.msra.mxu0 %v494
    %721 = vmatmul.f32.gmra.mxu0 0.0
    %v722 = vpop.f32.mrf.mxu0
    %v723 = vadd.f32 %v703, %v722
    %724 = vdwg.mxu0
    %v725 = vxor.u32 %v603, 2147483648
    %v726 = vmul.f32 %v725, 1.442695
    %v727 = vpow.pop %v726
    %v728 = vadd.f32 %v727, 1.0
    %v729 = vrcp.pop %v728
    %v730 = vmul.f32 %v728, %v729
    %v731 = vsub.f32 1.0, %v730
    %v732 = vmul.f32 %v729, %v731
    %v733 = vadd.f32 %v729, %v732
    %vm734 = vweird.f32 %v728
    %vm735 = vweird.f32 %v729
    %vm736 = vmor %vm734, %vm735
    %v737 = vsel %vm736, %v729, %v733
    %v738 = vand.u32 2147483647, %v728
    %vm739 = vcmp.eq.f32.partialorder %v738, 8.507059e+37
    %v740 = vand.u32 %v728, 2147483648
    %v741 = vor.u32 1.1754944e-38, %v740
    %v742 = vsel %vm739, %v741, %v737
    %v743 = vmul.f32 1.0, %v742
    %v744 = vxor.u32 %v643, 2147483648
    %v745 = vmul.f32 %v744, 1.442695
    %v746 = vpow.pop %v745
    %v747 = vadd.f32 %v746, 1.0
    %v748 = vrcp.pop %v747
    %v749 = vmul.f32 %v747, %v748
    %v750 = vsub.f32 1.0, %v749
    %v751 = vmul.f32 %v748, %v750
    %v752 = vadd.f32 %v748, %v751
    %vm753 = vweird.f32 %v747
    %vm754 = vweird.f32 %v748
    %vm755 = vmor %vm753, %vm754
    %v756 = vsel %vm755, %v748, %v752
    %v757 = vand.u32 2147483647, %v747
    %vm758 = vcmp.eq.f32.partialorder %v757, 8.507059e+37
    %v759 = vand.u32 %v747, 2147483648
    %v760 = vor.u32 1.1754944e-38, %v759
    %v761 = vsel %vm758, %v760, %v756
    %v762 = vmul.f32 1.0, %v761
    %v763 = vmul.f32 %v743, %v723
    %v764 = vadd.f32 %v683, %v763
    %v765 = vtanh.pop %v764
    %v766 = vsub.f32 0.0, %v765
    %v767 = vmul.f32 %v762, %v766
    %v768 = vadd.f32 %v765, %v767
    %v769 = vld [vmem:[#allocation2 + $0x18] sm:$0xff]
    %v770 = vld [vmem:[#allocation2 + $0x20] sm:$0xff]
    %v771 = vld [vmem:[#allocation2 + $0x28] sm:$0xff]
    %772 = vmatpush.msra.mxu0 %v313
    %773 = vmatpush.msra.mxu0 %v310
    %774 = vmatpush.msra.mxu0 %v307
    %775 = vmatpush.msra.mxu0 %v304
    %776 = vmatpush.msra.mxu0 %v301
    %777 = vmatpush.msra.mxu0 %v298
    %778 = vmatpush.msra.mxu0 %v295
    %779 = vmatpush.msra.mxu0 %v292
    %780 = vmatpush.msra.mxu0 %v289
    %781 = vmatpush.msra.mxu0 %v286
    %782 = vmatpush.msra.mxu0 %v283
    %783 = vmatpush.msra.mxu0 %v280
    %784 = vmatpush.msra.mxu0 %v277
    %785 = vmatpush.msra.mxu0 %v274
    %786 = vmatpush.msra.mxu0 %v271
    %787 = vmatpush.msra.mxu0 %v268
    %788 = vmatmul.f32.gmra.mxu0 %v426
    %v789 = vpop.f32.mrf.mxu0
    %v790 = vadd.f32 0.0, %v789
    %791 = vdwg.mxu0
    %792 = vmatpush.msra.mxu0 %v314
    %793 = vmatpush.msra.mxu0 %v311
    %794 = vmatpush.msra.mxu0 %v308
    %795 = vmatpush.msra.mxu0 %v305
    %796 = vmatpush.msra.mxu0 %v302
    %797 = vmatpush.msra.mxu0 %v299
    %798 = vmatpush.msra.mxu0 %v296
    %799 = vmatpush.msra.mxu0 %v293
    %800 = vmatpush.msra.mxu0 %v290
    %801 = vmatpush.msra.mxu0 %v287
    %802 = vmatpush.msra.mxu0 %v284
    %803 = vmatpush.msra.mxu0 %v281
    %804 = vmatpush.msra.mxu0 %v278
    %805 = vmatpush.msra.mxu0 %v275
    %806 = vmatpush.msra.mxu0 %v272
    %807 = vmatpush.msra.mxu0 %v269
    %808 = vmatmul.f32.gmra.mxu0 %v426
    %v809 = vpop.f32.mrf.mxu0
    %v810 = vadd.f32 0.0, %v809
    %811 = vdwg.mxu0
    %812 = vmatpush.msra.mxu0 %v315
    %813 = vmatpush.msra.mxu0 %v312
    %814 = vmatpush.msra.mxu0 %v309
    %815 = vmatpush.msra.mxu0 %v306
    %816 = vmatpush.msra.mxu0 %v303
    %817 = vmatpush.msra.mxu0 %v300
    %818 = vmatpush.msra.mxu0 %v297
    %819 = vmatpush.msra.mxu0 %v294
    %820 = vmatpush.msra.mxu0 %v291
    %821 = vmatpush.msra.mxu0 %v288
    %822 = vmatpush.msra.mxu0 %v285
    %823 = vmatpush.msra.mxu0 %v282
    %824 = vmatpush.msra.mxu0 %v279
    %825 = vmatpush.msra.mxu0 %v276
    %826 = vmatpush.msra.mxu0 %v273
    %827 = vmatpush.msra.mxu0 %v270
    %828 = vmatmul.f32.gmra.mxu0 %v426
    %v829 = vpop.f32.mrf.mxu0
    %v830 = vadd.f32 0.0, %v829
    %831 = vdwg.mxu0
    %v832 = vadd.f32 %v769, %v790
    %v833 = vxor.u32 %v832, 2147483648
    %v834 = vmul.f32 %v833, 1.442695
    %v835 = vpow.pop %v834
    %v836 = vadd.f32 %v835, 1.0
    %v837 = vrcp.pop %v836
    %v838 = vmul.f32 %v836, %v837
    %v839 = vsub.f32 1.0, %v838
    %v840 = vmul.f32 %v837, %v839
    %v841 = vadd.f32 %v837, %v840
    %vm842 = vweird.f32 %v836
    %vm843 = vweird.f32 %v837
    %vm844 = vmor %vm842, %vm843
    %v845 = vsel %vm844, %v837, %v841
    %v846 = vand.u32 2147483647, %v836
    %vm847 = vcmp.eq.f32.partialorder %v846, 8.507059e+37
    %v848 = vand.u32 %v836, 2147483648
    %v849 = vor.u32 1.1754944e-38, %v848
    %v850 = vsel %vm847, %v849, %v845
    %v851 = vmul.f32 1.0, %v850
    %v852 = vadd.f32 %v770, %v810
    %v853 = vxor.u32 %v852, 2147483648
    %v854 = vmul.f32 %v853, 1.442695
    %v855 = vpow.pop %v854
    %v856 = vadd.f32 %v855, 1.0
    %v857 = vrcp.pop %v856
    %v858 = vmul.f32 %v856, %v857
    %v859 = vsub.f32 1.0, %v858
    %v860 = vmul.f32 %v857, %v859
    %v861 = vadd.f32 %v857, %v860
    %vm862 = vweird.f32 %v856
    %vm863 = vweird.f32 %v857
    %vm864 = vmor %vm862, %vm863
    %v865 = vsel %vm864, %v857, %v861
    %v866 = vand.u32 2147483647, %v856
    %vm867 = vcmp.eq.f32.partialorder %v866, 8.507059e+37
    %v868 = vand.u32 %v856, 2147483648
    %v869 = vor.u32 1.1754944e-38, %v868
    %v870 = vsel %vm867, %v869, %v865
    %v871 = vmul.f32 1.0, %v870
    %v872 = vadd.f32 %v830, %v418
    %v873 = vmul.f32 %v851, %v872
    %v874 = vadd.f32 %v771, %v873
    %v875 = vtanh.pop %v874
    %v876 = vsub.f32 %v426, %v875
    %v877 = vmul.f32 %v871, %v876
    %v878 = vadd.f32 %v875, %v877
    %879 = vmatpush.msra.mxu0 %v487
    %880 = vmatpush.msra.mxu0 %v483
    %881 = vmatpush.msra.mxu0 %v479
    %882 = vmatpush.msra.mxu0 %v475
    %883 = vmatpush.msra.mxu0 %v471
    %884 = vmatpush.msra.mxu0 %v467
    %885 = vmatpush.msra.mxu0 %v463
    %886 = vmatpush.msra.mxu0 %v459
    %887 = vmatpush.msra.mxu0 %v455
    %888 = vmatpush.msra.mxu0 %v451
    %889 = vmatpush.msra.mxu0 %v447
    %890 = vmatpush.msra.mxu0 %v443
    %891 = vmatpush.msra.mxu0 %v439
    %892 = vmatpush.msra.mxu0 %v435
    %893 = vmatpush.msra.mxu0 %v431
    %894 = vmatpush.msra.mxu0 %v427
    %895 = vmatmul.f32.gmra.mxu0 %v878
    %v896 = vpop.f32.mrf.mxu0
    %v897 = vadd.f32 %v557, %v896
    %898 = vdwg.mxu0
    %899 = vmatpush.msra.mxu0 %v551
    %900 = vmatpush.msra.mxu0 %v547
    %901 = vmatpush.msra.mxu0 %v543
    %902 = vmatpush.msra.mxu0 %v539
    %903 = vmatpush.msra.mxu0 %v535
    %904 = vmatpush.msra.mxu0 %v531
    %905 = vmatpush.msra.mxu0 %v527
    %906 = vmatpush.msra.mxu0 %v523
    %907 = vmatpush.msra.mxu0 %v519
    %908 = vmatpush.msra.mxu0 %v515
    %909 = vmatpush.msra.mxu0 %v511
    %910 = vmatpush.msra.mxu0 %v507
    %911 = vmatpush.msra.mxu0 %v503
    %912 = vmatpush.msra.mxu0 %v499
    %913 = vmatpush.msra.mxu0 %v495
    %914 = vmatpush.msra.mxu0 %v491
    %915 = vmatmul.f32.gmra.mxu0 %v768
    %v916 = vpop.f32.mrf.mxu0
    %v917 = vadd.f32 %v897, %v916
    %918 = vdwg.mxu0
    %919 = vmatpush.msra.mxu0 %v488
    %920 = vmatpush.msra.mxu0 %v484
    %921 = vmatpush.msra.mxu0 %v480
    %922 = vmatpush.msra.mxu0 %v476
    %923 = vmatpush.msra.mxu0 %v472
    %924 = vmatpush.msra.mxu0 %v468
    %925 = vmatpush.msra.mxu0 %v464
    %926 = vmatpush.msra.mxu0 %v460
    %927 = vmatpush.msra.mxu0 %v456
    %928 = vmatpush.msra.mxu0 %v452
    %929 = vmatpush.msra.mxu0 %v448
    %930 = vmatpush.msra.mxu0 %v444
    %931 = vmatpush.msra.mxu0 %v440
    %932 = vmatpush.msra.mxu0 %v436
    %933 = vmatpush.msra.mxu0 %v432
    %934 = vmatpush.msra.mxu0 %v428
    %935 = vmatmul.f32.gmra.mxu0 %v878
    %v936 = vpop.f32.mrf.mxu0
    %v937 = vadd.f32 %v558, %v936
    %938 = vdwg.mxu0
    %939 = vmatpush.msra.mxu0 %v552
    %940 = vmatpush.msra.mxu0 %v548
    %941 = vmatpush.msra.mxu0 %v544
    %942 = vmatpush.msra.mxu0 %v540
    %943 = vmatpush.msra.mxu0 %v536
    %944 = vmatpush.msra.mxu0 %v532
    %945 = vmatpush.msra.mxu0 %v528
    %946 = vmatpush.msra.mxu0 %v524
    %947 = vmatpush.msra.mxu0 %v520
    %948 = vmatpush.msra.mxu0 %v516
    %949 = vmatpush.msra.mxu0 %v512
    %950 = vmatpush.msra.mxu0 %v508
    %951 = vmatpush.msra.mxu0 %v504
    %952 = vmatpush.msra.mxu0 %v500
    %953 = vmatpush.msra.mxu0 %v496
    %954 = vmatpush.msra.mxu0 %v492
    %955 = vmatmul.f32.gmra.mxu0 %v768
    %v956 = vpop.f32.mrf.mxu0
    %v957 = vadd.f32 %v937, %v956
    %958 = vdwg.mxu0
    %959 = vmatpush.msra.mxu0 %v489
    %960 = vmatpush.msra.mxu0 %v485
    %961 = vmatpush.msra.mxu0 %v481
    %962 = vmatpush.msra.mxu0 %v477
    %963 = vmatpush.msra.mxu0 %v473
    %964 = vmatpush.msra.mxu0 %v469
    %965 = vmatpush.msra.mxu0 %v465
    %966 = vmatpush.msra.mxu0 %v461
    %967 = vmatpush.msra.mxu0 %v457
    %968 = vmatpush.msra.mxu0 %v453
    %969 = vmatpush.msra.mxu0 %v449
    %970 = vmatpush.msra.mxu0 %v445
    %971 = vmatpush.msra.mxu0 %v441
    %972 = vmatpush.msra.mxu0 %v437
    %973 = vmatpush.msra.mxu0 %v433
    %974 = vmatpush.msra.mxu0 %v429
    %975 = vmatmul.f32.gmra.mxu0 %v878
    %v976 = vpop.f32.mrf.mxu0
    %v977 = vadd.f32 %v559, %v976
    %978 = vdwg.mxu0
    %979 = vmatpush.msra.mxu0 %v553
    %980 = vmatpush.msra.mxu0 %v549
    %981 = vmatpush.msra.mxu0 %v545
    %982 = vmatpush.msra.mxu0 %v541
    %983 = vmatpush.msra.mxu0 %v537
    %984 = vmatpush.msra.mxu0 %v533
    %985 = vmatpush.msra.mxu0 %v529
    %986 = vmatpush.msra.mxu0 %v525
    %987 = vmatpush.msra.mxu0 %v521
    %988 = vmatpush.msra.mxu0 %v517
    %989 = vmatpush.msra.mxu0 %v513
    %990 = vmatpush.msra.mxu0 %v509
    %991 = vmatpush.msra.mxu0 %v505
    %992 = vmatpush.msra.mxu0 %v501
    %993 = vmatpush.msra.mxu0 %v497
    %994 = vmatpush.msra.mxu0 %v493
    %995 = vmatmul.f32.gmra.mxu0 %v768
    %v996 = vpop.f32.mrf.mxu0
    %v997 = vadd.f32 %v977, %v996
    %998 = vdwg.mxu0
    %999 = vmatpush.msra.mxu0 %v490
    %1000 = vmatpush.msra.mxu0 %v486
    %1001 = vmatpush.msra.mxu0 %v482
    %1002 = vmatpush.msra.mxu0 %v478
    %1003 = vmatpush.msra.mxu0 %v474
    %1004 = vmatpush.msra.mxu0 %v470
    %1005 = vmatpush.msra.mxu0 %v466
    %1006 = vmatpush.msra.mxu0 %v462
    %1007 = vmatpush.msra.mxu0 %v458
    %1008 = vmatpush.msra.mxu0 %v454
    %1009 = vmatpush.msra.mxu0 %v450
    %1010 = vmatpush.msra.mxu0 %v446
    %1011 = vmatpush.msra.mxu0 %v442
    %1012 = vmatpush.msra.mxu0 %v438
    %1013 = vmatpush.msra.mxu0 %v434
    %1014 = vmatpush.msra.mxu0 %v430
    %1015 = vmatmul.f32.gmra.mxu0 %v878
    %v1016 = vpop.f32.mrf.mxu0
    %v1017 = vadd.f32 %v560, %v1016
    %1018 = vdwg.mxu0
    %1019 = vmatpush.msra.mxu0 %v554
    %1020 = vmatpush.msra.mxu0 %v550
    %1021 = vmatpush.msra.mxu0 %v546
    %1022 = vmatpush.msra.mxu0 %v542
    %1023 = vmatpush.msra.mxu0 %v538
    %1024 = vmatpush.msra.mxu0 %v534
    %1025 = vmatpush.msra.mxu0 %v530
    %1026 = vmatpush.msra.mxu0 %v526
    %1027 = vmatpush.msra.mxu0 %v522
    %1028 = vmatpush.msra.mxu0 %v518
    %1029 = vmatpush.msra.mxu0 %v514
    %1030 = vmatpush.msra.mxu0 %v510
    %1031 = vmatpush.msra.mxu0 %v506
    %1032 = vmatpush.msra.mxu0 %v502
    %1033 = vmatpush.msra.mxu0 %v498
    %1034 = vmatpush.msra.mxu0 %v494
    %1035 = vmatmul.f32.gmra.mxu0 %v768
    %v1036 = vpop.f32.mrf.mxu0
    %v1037 = vadd.f32 %v1017, %v1036
    %1038 = vdwg.mxu0
    %v1039 = vxor.u32 %v917, 2147483648
    %v1040 = vmul.f32 %v1039, 1.442695
    %v1041 = vpow.pop %v1040
    %v1042 = vadd.f32 %v1041, 1.0
    %v1043 = vrcp.pop %v1042
    %v1044 = vmul.f32 %v1042, %v1043
    %v1045 = vsub.f32 1.0, %v1044
    %v1046 = vmul.f32 %v1043, %v1045
    %v1047 = vadd.f32 %v1043, %v1046
    %vm1048 = vweird.f32 %v1042
    %vm1049 = vweird.f32 %v1043
    %vm1050 = vmor %vm1048, %vm1049
    %v1051 = vsel %vm1050, %v1043, %v1047
    %v1052 = vand.u32 2147483647, %v1042
    %vm1053 = vcmp.eq.f32.partialorder %v1052, 8.507059e+37
    %v1054 = vand.u32 %v1042, 2147483648
    %v1055 = vor.u32 1.1754944e-38, %v1054
    %v1056 = vsel %vm1053, %v1055, %v1051
    %v1057 = vmul.f32 1.0, %v1056
    %v1058 = vxor.u32 %v957, 2147483648
    %v1059 = vmul.f32 %v1058, 1.442695
    %v1060 = vpow.pop %v1059
    %v1061 = vadd.f32 %v1060, 1.0
    %v1062 = vrcp.pop %v1061
    %v1063 = vmul.f32 %v1061, %v1062
    %v1064 = vsub.f32 1.0, %v1063
    %v1065 = vmul.f32 %v1062, %v1064
    %v1066 = vadd.f32 %v1062, %v1065
    %vm1067 = vweird.f32 %v1061
    %vm1068 = vweird.f32 %v1062
    %vm1069 = vmor %vm1067, %vm1068
    %v1070 = vsel %vm1069, %v1062, %v1066
    %v1071 = vand.u32 2147483647, %v1061
    %vm1072 = vcmp.eq.f32.partialorder %v1071, 8.507059e+37
    %v1073 = vand.u32 %v1061, 2147483648
    %v1074 = vor.u32 1.1754944e-38, %v1073
    %v1075 = vsel %vm1072, %v1074, %v1070
    %v1076 = vmul.f32 1.0, %v1075
    %v1077 = vmul.f32 %v1057, %v1037
    %v1078 = vadd.f32 %v997, %v1077
    %v1079 = vtanh.pop %v1078
    %v1080 = vsub.f32 %v768, %v1079
    %v1081 = vmul.f32 %v1076, %v1080
    %v1082 = vadd.f32 %v1079, %v1081
    %v1083 = vld [vmem:[#allocation2 + $0x30] sm:$0xff]
    %v1084 = vld [vmem:[#allocation2 + $0x38] sm:$0xff]
    %v1085 = vld [vmem:[#allocation2 + $0x40] sm:$0xff]
    %1086 = vmatpush.msra.mxu0 %v313
    %1087 = vmatpush.msra.mxu0 %v310
    %1088 = vmatpush.msra.mxu0 %v307
    %1089 = vmatpush.msra.mxu0 %v304
    %1090 = vmatpush.msra.mxu0 %v301
    %1091 = vmatpush.msra.mxu0 %v298
    %1092 = vmatpush.msra.mxu0 %v295
    %1093 = vmatpush.msra.mxu0 %v292
    %1094 = vmatpush.msra.mxu0 %v289
    %1095 = vmatpush.msra.mxu0 %v286
    %1096 = vmatpush.msra.mxu0 %v283
    %1097 = vmatpush.msra.mxu0 %v280
    %1098 = vmatpush.msra.mxu0 %v277
    %1099 = vmatpush.msra.mxu0 %v274
    %1100 = vmatpush.msra.mxu0 %v271
    %1101 = vmatpush.msra.mxu0 %v268
    %1102 = vmatmul.f32.gmra.mxu0 %v878
    %v1103 = vpop.f32.mrf.mxu0
    %v1104 = vadd.f32 0.0, %v1103
    %1105 = vdwg.mxu0
    %1106 = vmatpush.msra.mxu0 %v314
    %1107 = vmatpush.msra.mxu0 %v311
    %1108 = vmatpush.msra.mxu0 %v308
    %1109 = vmatpush.msra.mxu0 %v305
    %1110 = vmatpush.msra.mxu0 %v302
    %1111 = vmatpush.msra.mxu0 %v299
    %1112 = vmatpush.msra.mxu0 %v296
    %1113 = vmatpush.msra.mxu0 %v293
    %1114 = vmatpush.msra.mxu0 %v290
    %1115 = vmatpush.msra.mxu0 %v287
    %1116 = vmatpush.msra.mxu0 %v284
    %1117 = vmatpush.msra.mxu0 %v281
    %1118 = vmatpush.msra.mxu0 %v278
    %1119 = vmatpush.msra.mxu0 %v275
    %1120 = vmatpush.msra.mxu0 %v272
    %1121 = vmatpush.msra.mxu0 %v269
    %1122 = vmatmul.f32.gmra.mxu0 %v878
    %v1123 = vpop.f32.mrf.mxu0
    %v1124 = vadd.f32 0.0, %v1123
    %1125 = vdwg.mxu0
    %1126 = vmatpush.msra.mxu0 %v315
    %1127 = vmatpush.msra.mxu0 %v312
    %1128 = vmatpush.msra.mxu0 %v309
    %1129 = vmatpush.msra.mxu0 %v306
    %1130 = vmatpush.msra.mxu0 %v303
    %1131 = vmatpush.msra.mxu0 %v300
    %1132 = vmatpush.msra.mxu0 %v297
    %1133 = vmatpush.msra.mxu0 %v294
    %1134 = vmatpush.msra.mxu0 %v291
    %1135 = vmatpush.msra.mxu0 %v288
    %1136 = vmatpush.msra.mxu0 %v285
    %1137 = vmatpush.msra.mxu0 %v282
    %1138 = vmatpush.msra.mxu0 %v279
    %1139 = vmatpush.msra.mxu0 %v276
    %1140 = vmatpush.msra.mxu0 %v273
    %1141 = vmatpush.msra.mxu0 %v270
    %1142 = vmatmul.f32.gmra.mxu0 %v878
    %v1143 = vpop.f32.mrf.mxu0
    %v1144 = vadd.f32 0.0, %v1143
    %1145 = vdwg.mxu0
    %v1146 = vadd.f32 %v1083, %v1104
    %v1147 = vxor.u32 %v1146, 2147483648
    %v1148 = vmul.f32 %v1147, 1.442695
    %v1149 = vpow.pop %v1148
    %v1150 = vadd.f32 %v1149, 1.0
    %v1151 = vrcp.pop %v1150
    %v1152 = vmul.f32 %v1150, %v1151
    %v1153 = vsub.f32 1.0, %v1152
    %v1154 = vmul.f32 %v1151, %v1153
    %v1155 = vadd.f32 %v1151, %v1154
    %vm1156 = vweird.f32 %v1150
    %vm1157 = vweird.f32 %v1151
    %vm1158 = vmor %vm1156, %vm1157
    %v1159 = vsel %vm1158, %v1151, %v1155
    %v1160 = vand.u32 2147483647, %v1150
    %vm1161 = vcmp.eq.f32.partialorder %v1160, 8.507059e+37
    %v1162 = vand.u32 %v1150, 2147483648
    %v1163 = vor.u32 1.1754944e-38, %v1162
    %v1164 = vsel %vm1161, %v1163, %v1159
    %v1165 = vmul.f32 1.0, %v1164
    %v1166 = vadd.f32 %v1084, %v1124
    %v1167 = vxor.u32 %v1166, 2147483648
    %v1168 = vmul.f32 %v1167, 1.442695
    %v1169 = vpow.pop %v1168
    %v1170 = vadd.f32 %v1169, 1.0
    %v1171 = vrcp.pop %v1170
    %v1172 = vmul.f32 %v1170, %v1171
    %v1173 = vsub.f32 1.0, %v1172
    %v1174 = vmul.f32 %v1171, %v1173
    %v1175 = vadd.f32 %v1171, %v1174
    %vm1176 = vweird.f32 %v1170
    %vm1177 = vweird.f32 %v1171
    %vm1178 = vmor %vm1176, %vm1177
    %v1179 = vsel %vm1178, %v1171, %v1175
    %v1180 = vand.u32 2147483647, %v1170
    %vm1181 = vcmp.eq.f32.partialorder %v1180, 8.507059e+37
    %v1182 = vand.u32 %v1170, 2147483648
    %v1183 = vor.u32 1.1754944e-38, %v1182
    %v1184 = vsel %vm1181, %v1183, %v1179
    %v1185 = vmul.f32 1.0, %v1184
    %v1186 = vadd.f32 %v1144, %v418
    %v1187 = vmul.f32 %v1165, %v1186
    %v1188 = vadd.f32 %v1085, %v1187
    %v1189 = vtanh.pop %v1188
    %v1190 = vsub.f32 %v878, %v1189
    %v1191 = vmul.f32 %v1185, %v1190
    %v1192 = vadd.f32 %v1189, %v1191
    %1193 = vmatpush.msra.mxu0 %v487
    %1194 = vmatpush.msra.mxu0 %v483
    %1195 = vmatpush.msra.mxu0 %v479
    %1196 = vmatpush.msra.mxu0 %v475
    %1197 = vmatpush.msra.mxu0 %v471
    %1198 = vmatpush.msra.mxu0 %v467
    %1199 = vmatpush.msra.mxu0 %v463
    %1200 = vmatpush.msra.mxu0 %v459
    %1201 = vmatpush.msra.mxu0 %v455
    %1202 = vmatpush.msra.mxu0 %v451
    %1203 = vmatpush.msra.mxu0 %v447
    %1204 = vmatpush.msra.mxu0 %v443
    %1205 = vmatpush.msra.mxu0 %v439
    %1206 = vmatpush.msra.mxu0 %v435
    %1207 = vmatpush.msra.mxu0 %v431
    %1208 = vmatpush.msra.mxu0 %v427
    %1209 = vmatmul.f32.gmra.mxu0 %v1192
    %v1210 = vpop.f32.mrf.mxu0
    %v1211 = vadd.f32 %v557, %v1210
    %1212 = vdwg.mxu0
    %1213 = vmatpush.msra.mxu0 %v551
    %1214 = vmatpush.msra.mxu0 %v547
    %1215 = vmatpush.msra.mxu0 %v543
    %1216 = vmatpush.msra.mxu0 %v539
    %1217 = vmatpush.msra.mxu0 %v535
    %1218 = vmatpush.msra.mxu0 %v531
    %1219 = vmatpush.msra.mxu0 %v527
    %1220 = vmatpush.msra.mxu0 %v523
    %1221 = vmatpush.msra.mxu0 %v519
    %1222 = vmatpush.msra.mxu0 %v515
    %1223 = vmatpush.msra.mxu0 %v511
    %1224 = vmatpush.msra.mxu0 %v507
    %1225 = vmatpush.msra.mxu0 %v503
    %1226 = vmatpush.msra.mxu0 %v499
    %1227 = vmatpush.msra.mxu0 %v495
    %1228 = vmatpush.msra.mxu0 %v491
    %1229 = vmatmul.f32.gmra.mxu0 %v1082
    %v1230 = vpop.f32.mrf.mxu0
    %v1231 = vadd.f32 %v1211, %v1230
    %1232 = vdwg.mxu0
    %1233 = vmatpush.msra.mxu0 %v488
    %1234 = vmatpush.msra.mxu0 %v484
    %1235 = vmatpush.msra.mxu0 %v480
    %1236 = vmatpush.msra.mxu0 %v476
    %1237 = vmatpush.msra.mxu0 %v472
    %1238 = vmatpush.msra.mxu0 %v468
    %1239 = vmatpush.msra.mxu0 %v464
    %1240 = vmatpush.msra.mxu0 %v460
    %1241 = vmatpush.msra.mxu0 %v456
    %1242 = vmatpush.msra.mxu0 %v452
    %1243 = vmatpush.msra.mxu0 %v448
    %1244 = vmatpush.msra.mxu0 %v444
    %1245 = vmatpush.msra.mxu0 %v440
    %1246 = vmatpush.msra.mxu0 %v436
    %1247 = vmatpush.msra.mxu0 %v432
    %1248 = vmatpush.msra.mxu0 %v428
    %1249 = vmatmul.f32.gmra.mxu0 %v1192
    %v1250 = vpop.f32.mrf.mxu0
    %v1251 = vadd.f32 %v558, %v1250
    %1252 = vdwg.mxu0
    %1253 = vmatpush.msra.mxu0 %v552
    %1254 = vmatpush.msra.mxu0 %v548
    %1255 = vmatpush.msra.mxu0 %v544
    %1256 = vmatpush.msra.mxu0 %v540
    %1257 = vmatpush.msra.mxu0 %v536
    %1258 = vmatpush.msra.mxu0 %v532
    %1259 = vmatpush.msra.mxu0 %v528
    %1260 = vmatpush.msra.mxu0 %v524
    %1261 = vmatpush.msra.mxu0 %v520
    %1262 = vmatpush.msra.mxu0 %v516
    %1263 = vmatpush.msra.mxu0 %v512
    %1264 = vmatpush.msra.mxu0 %v508
    %1265 = vmatpush.msra.mxu0 %v504
    %1266 = vmatpush.msra.mxu0 %v500
    %1267 = vmatpush.msra.mxu0 %v496
    %1268 = vmatpush.msra.mxu0 %v492
    %1269 = vmatmul.f32.gmra.mxu0 %v1082
    %v1270 = vpop.f32.mrf.mxu0
    %v1271 = vadd.f32 %v1251, %v1270
    %1272 = vdwg.mxu0
    %1273 = vmatpush.msra.mxu0 %v489
    %1274 = vmatpush.msra.mxu0 %v485
    %1275 = vmatpush.msra.mxu0 %v481
    %1276 = vmatpush.msra.mxu0 %v477
    %1277 = vmatpush.msra.mxu0 %v473
    %1278 = vmatpush.msra.mxu0 %v469
    %1279 = vmatpush.msra.mxu0 %v465
    %1280 = vmatpush.msra.mxu0 %v461
    %1281 = vmatpush.msra.mxu0 %v457
    %1282 = vmatpush.msra.mxu0 %v453
    %1283 = vmatpush.msra.mxu0 %v449
    %1284 = vmatpush.msra.mxu0 %v445
    %1285 = vmatpush.msra.mxu0 %v441
    %1286 = vmatpush.msra.mxu0 %v437
    %1287 = vmatpush.msra.mxu0 %v433
    %1288 = vmatpush.msra.mxu0 %v429
    %1289 = vmatmul.f32.gmra.mxu0 %v1192
    %v1290 = vpop.f32.mrf.mxu0
    %v1291 = vadd.f32 %v559, %v1290
    %1292 = vdwg.mxu0
    %1293 = vmatpush.msra.mxu0 %v553
    %1294 = vmatpush.msra.mxu0 %v549
    %1295 = vmatpush.msra.mxu0 %v545
    %1296 = vmatpush.msra.mxu0 %v541
    %1297 = vmatpush.msra.mxu0 %v537
    %1298 = vmatpush.msra.mxu0 %v533
    %1299 = vmatpush.msra.mxu0 %v529
    %1300 = vmatpush.msra.mxu0 %v525
    %1301 = vmatpush.msra.mxu0 %v521
    %1302 = vmatpush.msra.mxu0 %v517
    %1303 = vmatpush.msra.mxu0 %v513
    %1304 = vmatpush.msra.mxu0 %v509
    %1305 = vmatpush.msra.mxu0 %v505
    %1306 = vmatpush.msra.mxu0 %v501
    %1307 = vmatpush.msra.mxu0 %v497
    %1308 = vmatpush.msra.mxu0 %v493
    %1309 = vmatmul.f32.gmra.mxu0 %v1082
    %v1310 = vpop.f32.mrf.mxu0
    %v1311 = vadd.f32 %v1291, %v1310
    %1312 = vdwg.mxu0
    %1313 = vmatpush.msra.mxu0 %v490
    %1314 = vmatpush.msra.mxu0 %v486
    %1315 = vmatpush.msra.mxu0 %v482
    %1316 = vmatpush.msra.mxu0 %v478
    %1317 = vmatpush.msra.mxu0 %v474
    %1318 = vmatpush.msra.mxu0 %v470
    %1319 = vmatpush.msra.mxu0 %v466
    %1320 = vmatpush.msra.mxu0 %v462
    %1321 = vmatpush.msra.mxu0 %v458
    %1322 = vmatpush.msra.mxu0 %v454
    %1323 = vmatpush.msra.mxu0 %v450
    %1324 = vmatpush.msra.mxu0 %v446
    %1325 = vmatpush.msra.mxu0 %v442
    %1326 = vmatpush.msra.mxu0 %v438
    %1327 = vmatpush.msra.mxu0 %v434
    %1328 = vmatpush.msra.mxu0 %v430
    %1329 = vmatmul.f32.gmra.mxu0 %v1192
    %v1330 = vpop.f32.mrf.mxu0
    %v1331 = vadd.f32 %v560, %v1330
    %1332 = vdwg.mxu0
    %1333 = vmatpush.msra.mxu0 %v554
    %1334 = vmatpush.msra.mxu0 %v550
    %1335 = vmatpush.msra.mxu0 %v546
    %1336 = vmatpush.msra.mxu0 %v542
    %1337 = vmatpush.msra.mxu0 %v538
    %1338 = vmatpush.msra.mxu0 %v534
    %1339 = vmatpush.msra.mxu0 %v530
    %1340 = vmatpush.msra.mxu0 %v526
    %1341 = vmatpush.msra.mxu0 %v522
    %1342 = vmatpush.msra.mxu0 %v518
    %1343 = vmatpush.msra.mxu0 %v514
    %1344 = vmatpush.msra.mxu0 %v510
    %1345 = vmatpush.msra.mxu0 %v506
    %1346 = vmatpush.msra.mxu0 %v502
    %1347 = vmatpush.msra.mxu0 %v498
    %1348 = vmatpush.msra.mxu0 %v494
    %1349 = vmatmul.f32.gmra.mxu0 %v1082
    %v1350 = vpop.f32.mrf.mxu0
    %v1351 = vadd.f32 %v1331, %v1350
    %1352 = vdwg.mxu0
    %v1353 = vxor.u32 %v1231, 2147483648
    %v1354 = vmul.f32 %v1353, 1.442695
    %v1355 = vpow.pop %v1354
    %v1356 = vadd.f32 %v1355, 1.0
    %v1357 = vrcp.pop %v1356
    %v1358 = vmul.f32 %v1356, %v1357
    %v1359 = vsub.f32 1.0, %v1358
    %v1360 = vmul.f32 %v1357, %v1359
    %v1361 = vadd.f32 %v1357, %v1360
    %vm1362 = vweird.f32 %v1356
    %vm1363 = vweird.f32 %v1357
    %vm1364 = vmor %vm1362, %vm1363
    %v1365 = vsel %vm1364, %v1357, %v1361
    %v1366 = vand.u32 2147483647, %v1356
    %vm1367 = vcmp.eq.f32.partialorder %v1366, 8.507059e+37
    %v1368 = vand.u32 %v1356, 2147483648
    %v1369 = vor.u32 1.1754944e-38, %v1368
    %v1370 = vsel %vm1367, %v1369, %v1365
    %v1371 = vmul.f32 1.0, %v1370
    %v1372 = vxor.u32 %v1271, 2147483648
    %v1373 = vmul.f32 %v1372, 1.442695
    %v1374 = vpow.pop %v1373
    %v1375 = vadd.f32 %v1374, 1.0
    %v1376 = vrcp.pop %v1375
    %v1377 = vmul.f32 %v1375, %v1376
    %v1378 = vsub.f32 1.0, %v1377
    %v1379 = vmul.f32 %v1376, %v1378
    %v1380 = vadd.f32 %v1376, %v1379
    %vm1381 = vweird.f32 %v1375
    %vm1382 = vweird.f32 %v1376
    %vm1383 = vmor %vm1381, %vm1382
    %v1384 = vsel %vm1383, %v1376, %v1380
    %v1385 = vand.u32 2147483647, %v1375
    %vm1386 = vcmp.eq.f32.partialorder %v1385, 8.507059e+37
    %v1387 = vand.u32 %v1375, 2147483648
    %v1388 = vor.u32 1.1754944e-38, %v1387
    %v1389 = vsel %vm1386, %v1388, %v1384
    %v1390 = vmul.f32 1.0, %v1389
    %v1391 = vmul.f32 %v1371, %v1351
    %v1392 = vadd.f32 %v1311, %v1391
    %v1393 = vtanh.pop %v1392
    %v1394 = vsub.f32 %v1082, %v1393
    %v1395 = vmul.f32 %v1390, %v1394
    %v1396 = vadd.f32 %v1393, %v1395
    %v1397 = vld [vmem:[#allocation2 + $0x48] sm:$0xff]
    %v1398 = vld [vmem:[#allocation2 + $0x50] sm:$0xff]
    %v1399 = vld [vmem:[#allocation2 + $0x58] sm:$0xff]
    %1400 = vmatpush.msra.mxu0 %v313
    %1401 = vmatpush.msra.mxu0 %v310
    %1402 = vmatpush.msra.mxu0 %v307
    %1403 = vmatpush.msra.mxu0 %v304
    %1404 = vmatpush.msra.mxu0 %v301
    %1405 = vmatpush.msra.mxu0 %v298
    %1406 = vmatpush.msra.mxu0 %v295
    %1407 = vmatpush.msra.mxu0 %v292
    %1408 = vmatpush.msra.mxu0 %v289
    %1409 = vmatpush.msra.mxu0 %v286
    %1410 = vmatpush.msra.mxu0 %v283
    %1411 = vmatpush.msra.mxu0 %v280
    %1412 = vmatpush.msra.mxu0 %v277
    %1413 = vmatpush.msra.mxu0 %v274
    %1414 = vmatpush.msra.mxu0 %v271
    %1415 = vmatpush.msra.mxu0 %v268
    %1416 = vmatmul.f32.gmra.mxu0 %v1192
    %v1417 = vpop.f32.mrf.mxu0
    %v1418 = vadd.f32 0.0, %v1417
    %1419 = vdwg.mxu0
    %1420 = vmatpush.msra.mxu0 %v314
    %1421 = vmatpush.msra.mxu0 %v311
    %1422 = vmatpush.msra.mxu0 %v308
    %1423 = vmatpush.msra.mxu0 %v305
    %1424 = vmatpush.msra.mxu0 %v302
    %1425 = vmatpush.msra.mxu0 %v299
    %1426 = vmatpush.msra.mxu0 %v296
    %1427 = vmatpush.msra.mxu0 %v293
    %1428 = vmatpush.msra.mxu0 %v290
    %1429 = vmatpush.msra.mxu0 %v287
    %1430 = vmatpush.msra.mxu0 %v284
    %1431 = vmatpush.msra.mxu0 %v281
    %1432 = vmatpush.msra.mxu0 %v278
    %1433 = vmatpush.msra.mxu0 %v275
    %1434 = vmatpush.msra.mxu0 %v272
    %1435 = vmatpush.msra.mxu0 %v269
    %1436 = vmatmul.f32.gmra.mxu0 %v1192
    %v1437 = vpop.f32.mrf.mxu0
    %v1438 = vadd.f32 0.0, %v1437
    %1439 = vdwg.mxu0
    %1440 = vmatpush.msra.mxu0 %v315
    %1441 = vmatpush.msra.mxu0 %v312
    %1442 = vmatpush.msra.mxu0 %v309
    %1443 = vmatpush.msra.mxu0 %v306
    %1444 = vmatpush.msra.mxu0 %v303
    %1445 = vmatpush.msra.mxu0 %v300
    %1446 = vmatpush.msra.mxu0 %v297
    %1447 = vmatpush.msra.mxu0 %v294
    %1448 = vmatpush.msra.mxu0 %v291
    %1449 = vmatpush.msra.mxu0 %v288
    %1450 = vmatpush.msra.mxu0 %v285
    %1451 = vmatpush.msra.mxu0 %v282
    %1452 = vmatpush.msra.mxu0 %v279
    %1453 = vmatpush.msra.mxu0 %v276
    %1454 = vmatpush.msra.mxu0 %v273
    %1455 = vmatpush.msra.mxu0 %v270
    %1456 = vmatmul.f32.gmra.mxu0 %v1192
    %v1457 = vpop.f32.mrf.mxu0
    %v1458 = vadd.f32 0.0, %v1457
    %1459 = vdwg.mxu0
    %v1460 = vadd.f32 %v1397, %v1418
    %v1461 = vxor.u32 %v1460, 2147483648
    %v1462 = vmul.f32 %v1461, 1.442695
    %v1463 = vpow.pop %v1462
    %v1464 = vadd.f32 %v1463, 1.0
    %v1465 = vrcp.pop %v1464
    %v1466 = vmul.f32 %v1464, %v1465
    %v1467 = vsub.f32 1.0, %v1466
    %v1468 = vmul.f32 %v1465, %v1467
    %v1469 = vadd.f32 %v1465, %v1468
    %vm1470 = vweird.f32 %v1464
    %vm1471 = vweird.f32 %v1465
    %vm1472 = vmor %vm1470, %vm1471
    %v1473 = vsel %vm1472, %v1465, %v1469
    %v1474 = vand.u32 2147483647, %v1464
    %vm1475 = vcmp.eq.f32.partialorder %v1474, 8.507059e+37
    %v1476 = vand.u32 %v1464, 2147483648
    %v1477 = vor.u32 1.1754944e-38, %v1476
    %v1478 = vsel %vm1475, %v1477, %v1473
    %v1479 = vmul.f32 1.0, %v1478
    %v1480 = vadd.f32 %v1398, %v1438
    %v1481 = vxor.u32 %v1480, 2147483648
    %v1482 = vmul.f32 %v1481, 1.442695
    %v1483 = vpow.pop %v1482
    %v1484 = vadd.f32 %v1483, 1.0
    %v1485 = vrcp.pop %v1484
    %v1486 = vmul.f32 %v1484, %v1485
    %v1487 = vsub.f32 1.0, %v1486
    %v1488 = vmul.f32 %v1485, %v1487
    %v1489 = vadd.f32 %v1485, %v1488
    %vm1490 = vweird.f32 %v1484
    %vm1491 = vweird.f32 %v1485
    %vm1492 = vmor %vm1490, %vm1491
    %v1493 = vsel %vm1492, %v1485, %v1489
    %v1494 = vand.u32 2147483647, %v1484
    %vm1495 = vcmp.eq.f32.partialorder %v1494, 8.507059e+37
    %v1496 = vand.u32 %v1484, 2147483648
    %v1497 = vor.u32 1.1754944e-38, %v1496
    %v1498 = vsel %vm1495, %v1497, %v1493
    %v1499 = vmul.f32 1.0, %v1498
    %v1500 = vadd.f32 %v1458, %v418
    %v1501 = vmul.f32 %v1479, %v1500
    %v1502 = vadd.f32 %v1399, %v1501
    %v1503 = vtanh.pop %v1502
    %v1504 = vsub.f32 %v1192, %v1503
    %v1505 = vmul.f32 %v1499, %v1504
    %v1506 = vadd.f32 %v1503, %v1505
    %1507 = vmatpush.msra.mxu0 %v487
    %1508 = vmatpush.msra.mxu0 %v483
    %1509 = vmatpush.msra.mxu0 %v479
    %1510 = vmatpush.msra.mxu0 %v475
    %1511 = vmatpush.msra.mxu0 %v471
    %1512 = vmatpush.msra.mxu0 %v467
    %1513 = vmatpush.msra.mxu0 %v463
    %1514 = vmatpush.msra.mxu0 %v459
    %1515 = vmatpush.msra.mxu0 %v455
    %1516 = vmatpush.msra.mxu0 %v451
    %1517 = vmatpush.msra.mxu0 %v447
    %1518 = vmatpush.msra.mxu0 %v443
    %1519 = vmatpush.msra.mxu0 %v439
    %1520 = vmatpush.msra.mxu0 %v435
    %1521 = vmatpush.msra.mxu0 %v431
    %1522 = vmatpush.msra.mxu0 %v427
    %1523 = vmatmul.f32.gmra.mxu0 %v1506
    %v1524 = vpop.f32.mrf.mxu0
    %v1525 = vadd.f32 %v557, %v1524
    %1526 = vdwg.mxu0
    %1527 = vmatpush.msra.mxu0 %v551
    %1528 = vmatpush.msra.mxu0 %v547
    %1529 = vmatpush.msra.mxu0 %v543
    %1530 = vmatpush.msra.mxu0 %v539
    %1531 = vmatpush.msra.mxu0 %v535
    %1532 = vmatpush.msra.mxu0 %v531
    %1533 = vmatpush.msra.mxu0 %v527
    %1534 = vmatpush.msra.mxu0 %v523
    %1535 = vmatpush.msra.mxu0 %v519
    %1536 = vmatpush.msra.mxu0 %v515
    %1537 = vmatpush.msra.mxu0 %v511
    %1538 = vmatpush.msra.mxu0 %v507
    %1539 = vmatpush.msra.mxu0 %v503
    %1540 = vmatpush.msra.mxu0 %v499
    %1541 = vmatpush.msra.mxu0 %v495
    %1542 = vmatpush.msra.mxu0 %v491
    %1543 = vmatmul.f32.gmra.mxu0 %v1396
    %v1544 = vpop.f32.mrf.mxu0
    %v1545 = vadd.f32 %v1525, %v1544
    %1546 = vdwg.mxu0
    %1547 = vmatpush.msra.mxu0 %v488
    %1548 = vmatpush.msra.mxu0 %v484
    %1549 = vmatpush.msra.mxu0 %v480
    %1550 = vmatpush.msra.mxu0 %v476
    %1551 = vmatpush.msra.mxu0 %v472
    %1552 = vmatpush.msra.mxu0 %v468
    %1553 = vmatpush.msra.mxu0 %v464
    %1554 = vmatpush.msra.mxu0 %v460
    %1555 = vmatpush.msra.mxu0 %v456
    %1556 = vmatpush.msra.mxu0 %v452
    %1557 = vmatpush.msra.mxu0 %v448
    %1558 = vmatpush.msra.mxu0 %v444
    %1559 = vmatpush.msra.mxu0 %v440
    %1560 = vmatpush.msra.mxu0 %v436
    %1561 = vmatpush.msra.mxu0 %v432
    %1562 = vmatpush.msra.mxu0 %v428
    %1563 = vmatmul.f32.gmra.mxu0 %v1506
    %v1564 = vpop.f32.mrf.mxu0
    %v1565 = vadd.f32 %v558, %v1564
    %1566 = vdwg.mxu0
    %1567 = vmatpush.msra.mxu0 %v552
    %1568 = vmatpush.msra.mxu0 %v548
    %1569 = vmatpush.msra.mxu0 %v544
    %1570 = vmatpush.msra.mxu0 %v540
    %1571 = vmatpush.msra.mxu0 %v536
    %1572 = vmatpush.msra.mxu0 %v532
    %1573 = vmatpush.msra.mxu0 %v528
    %1574 = vmatpush.msra.mxu0 %v524
    %1575 = vmatpush.msra.mxu0 %v520
    %1576 = vmatpush.msra.mxu0 %v516
    %1577 = vmatpush.msra.mxu0 %v512
    %1578 = vmatpush.msra.mxu0 %v508
    %1579 = vmatpush.msra.mxu0 %v504
    %1580 = vmatpush.msra.mxu0 %v500
    %1581 = vmatpush.msra.mxu0 %v496
    %1582 = vmatpush.msra.mxu0 %v492
    %1583 = vmatmul.f32.gmra.mxu0 %v1396
    %v1584 = vpop.f32.mrf.mxu0
    %v1585 = vadd.f32 %v1565, %v1584
    %1586 = vdwg.mxu0
    %1587 = vmatpush.msra.mxu0 %v489
    %1588 = vmatpush.msra.mxu0 %v485
    %1589 = vmatpush.msra.mxu0 %v481
    %1590 = vmatpush.msra.mxu0 %v477
    %1591 = vmatpush.msra.mxu0 %v473
    %1592 = vmatpush.msra.mxu0 %v469
    %1593 = vmatpush.msra.mxu0 %v465
    %1594 = vmatpush.msra.mxu0 %v461
    %1595 = vmatpush.msra.mxu0 %v457
    %1596 = vmatpush.msra.mxu0 %v453
    %1597 = vmatpush.msra.mxu0 %v449
    %1598 = vmatpush.msra.mxu0 %v445
    %1599 = vmatpush.msra.mxu0 %v441
    %1600 = vmatpush.msra.mxu0 %v437
    %1601 = vmatpush.msra.mxu0 %v433
    %1602 = vmatpush.msra.mxu0 %v429
    %1603 = vmatmul.f32.gmra.mxu0 %v1506
    %v1604 = vpop.f32.mrf.mxu0
    %v1605 = vadd.f32 %v559, %v1604
    %1606 = vdwg.mxu0
    %1607 = vmatpush.msra.mxu0 %v553
    %1608 = vmatpush.msra.mxu0 %v549
    %1609 = vmatpush.msra.mxu0 %v545
    %1610 = vmatpush.msra.mxu0 %v541
    %1611 = vmatpush.msra.mxu0 %v537
    %1612 = vmatpush.msra.mxu0 %v533
    %1613 = vmatpush.msra.mxu0 %v529
    %1614 = vmatpush.msra.mxu0 %v525
    %1615 = vmatpush.msra.mxu0 %v521
    %1616 = vmatpush.msra.mxu0 %v517
    %1617 = vmatpush.msra.mxu0 %v513
    %1618 = vmatpush.msra.mxu0 %v509
    %1619 = vmatpush.msra.mxu0 %v505
    %1620 = vmatpush.msra.mxu0 %v501
    %1621 = vmatpush.msra.mxu0 %v497
    %1622 = vmatpush.msra.mxu0 %v493
    %1623 = vmatmul.f32.gmra.mxu0 %v1396
    %v1624 = vpop.f32.mrf.mxu0
    %v1625 = vadd.f32 %v1605, %v1624
    %1626 = vdwg.mxu0
    %1627 = vmatpush.msra.mxu0 %v490
    %1628 = vmatpush.msra.mxu0 %v486
    %1629 = vmatpush.msra.mxu0 %v482
    %1630 = vmatpush.msra.mxu0 %v478
    %1631 = vmatpush.msra.mxu0 %v474
    %1632 = vmatpush.msra.mxu0 %v470
    %1633 = vmatpush.msra.mxu0 %v466
    %1634 = vmatpush.msra.mxu0 %v462
    %1635 = vmatpush.msra.mxu0 %v458
    %1636 = vmatpush.msra.mxu0 %v454
    %1637 = vmatpush.msra.mxu0 %v450
    %1638 = vmatpush.msra.mxu0 %v446
    %1639 = vmatpush.msra.mxu0 %v442
    %1640 = vmatpush.msra.mxu0 %v438
    %1641 = vmatpush.msra.mxu0 %v434
    %1642 = vmatpush.msra.mxu0 %v430
    %1643 = vmatmul.f32.gmra.mxu0 %v1506
    %v1644 = vpop.f32.mrf.mxu0
    %v1645 = vadd.f32 %v560, %v1644
    %1646 = vdwg.mxu0
    %1647 = vmatpush.msra.mxu0 %v554
    %1648 = vmatpush.msra.mxu0 %v550
    %1649 = vmatpush.msra.mxu0 %v546
    %1650 = vmatpush.msra.mxu0 %v542
    %1651 = vmatpush.msra.mxu0 %v538
    %1652 = vmatpush.msra.mxu0 %v534
    %1653 = vmatpush.msra.mxu0 %v530
    %1654 = vmatpush.msra.mxu0 %v526
    %1655 = vmatpush.msra.mxu0 %v522
    %1656 = vmatpush.msra.mxu0 %v518
    %1657 = vmatpush.msra.mxu0 %v514
    %1658 = vmatpush.msra.mxu0 %v510
    %1659 = vmatpush.msra.mxu0 %v506
    %1660 = vmatpush.msra.mxu0 %v502
    %1661 = vmatpush.msra.mxu0 %v498
    %1662 = vmatpush.msra.mxu0 %v494
    %1663 = vmatmul.f32.gmra.mxu0 %v1396
    %v1664 = vpop.f32.mrf.mxu0
    %v1665 = vadd.f32 %v1645, %v1664
    %1666 = vdwg.mxu0
    %v1667 = vxor.u32 %v1545, 2147483648
    %v1668 = vmul.f32 %v1667, 1.442695
    %v1669 = vpow.pop %v1668
    %v1670 = vadd.f32 %v1669, 1.0
    %v1671 = vrcp.pop %v1670
    %v1672 = vmul.f32 %v1670, %v1671
    %v1673 = vsub.f32 1.0, %v1672
    %v1674 = vmul.f32 %v1671, %v1673
    %v1675 = vadd.f32 %v1671, %v1674
    %vm1676 = vweird.f32 %v1670
    %vm1677 = vweird.f32 %v1671
    %vm1678 = vmor %vm1676, %vm1677
    %v1679 = vsel %vm1678, %v1671, %v1675
    %v1680 = vand.u32 2147483647, %v1670
    %vm1681 = vcmp.eq.f32.partialorder %v1680, 8.507059e+37
    %v1682 = vand.u32 %v1670, 2147483648
    %v1683 = vor.u32 1.1754944e-38, %v1682
    %v1684 = vsel %vm1681, %v1683, %v1679
    %v1685 = vmul.f32 1.0, %v1684
    %v1686 = vxor.u32 %v1585, 2147483648
    %v1687 = vmul.f32 %v1686, 1.442695
    %v1688 = vpow.pop %v1687
    %v1689 = vadd.f32 %v1688, 1.0
    %v1690 = vrcp.pop %v1689
    %v1691 = vmul.f32 %v1689, %v1690
    %v1692 = vsub.f32 1.0, %v1691
    %v1693 = vmul.f32 %v1690, %v1692
    %v1694 = vadd.f32 %v1690, %v1693
    %vm1695 = vweird.f32 %v1689
    %vm1696 = vweird.f32 %v1690
    %vm1697 = vmor %vm1695, %vm1696
    %v1698 = vsel %vm1697, %v1690, %v1694
    %v1699 = vand.u32 2147483647, %v1689
    %vm1700 = vcmp.eq.f32.partialorder %v1699, 8.507059e+37
    %v1701 = vand.u32 %v1689, 2147483648
    %v1702 = vor.u32 1.1754944e-38, %v1701
    %v1703 = vsel %vm1700, %v1702, %v1698
    %v1704 = vmul.f32 1.0, %v1703
    %v1705 = vmul.f32 %v1685, %v1665
    %v1706 = vadd.f32 %v1625, %v1705
    %v1707 = vtanh.pop %v1706
    %v1708 = vsub.f32 %v1396, %v1707
    %v1709 = vmul.f32 %v1704, %v1708
    %v1710 = vadd.f32 %v1707, %v1709
    %v1711 = vld [vmem:[#allocation2 + $0x60] sm:$0xff]
    %v1712 = vld [vmem:[#allocation2 + $0x68] sm:$0xff]
    %v1713 = vld [vmem:[#allocation2 + $0x70] sm:$0xff]
    %1714 = vmatpush.msra.mxu0 %v313
    %1715 = vmatpush.msra.mxu0 %v310
    %1716 = vmatpush.msra.mxu0 %v307
    %1717 = vmatpush.msra.mxu0 %v304
    %1718 = vmatpush.msra.mxu0 %v301
    %1719 = vmatpush.msra.mxu0 %v298
    %1720 = vmatpush.msra.mxu0 %v295
    %1721 = vmatpush.msra.mxu0 %v292
    %1722 = vmatpush.msra.mxu0 %v289
    %1723 = vmatpush.msra.mxu0 %v286
    %1724 = vmatpush.msra.mxu0 %v283
    %1725 = vmatpush.msra.mxu0 %v280
    %1726 = vmatpush.msra.mxu0 %v277
    %1727 = vmatpush.msra.mxu0 %v274
    %1728 = vmatpush.msra.mxu0 %v271
    %1729 = vmatpush.msra.mxu0 %v268
    %1730 = vmatmul.f32.gmra.mxu0 %v1506
    %v1731 = vpop.f32.mrf.mxu0
    %v1732 = vadd.f32 0.0, %v1731
    %1733 = vdwg.mxu0
    %1734 = vmatpush.msra.mxu0 %v314
    %1735 = vmatpush.msra.mxu0 %v311
    %1736 = vmatpush.msra.mxu0 %v308
    %1737 = vmatpush.msra.mxu0 %v305
    %1738 = vmatpush.msra.mxu0 %v302
    %1739 = vmatpush.msra.mxu0 %v299
    %1740 = vmatpush.msra.mxu0 %v296
    %1741 = vmatpush.msra.mxu0 %v293
    %1742 = vmatpush.msra.mxu0 %v290
    %1743 = vmatpush.msra.mxu0 %v287
    %1744 = vmatpush.msra.mxu0 %v284
    %1745 = vmatpush.msra.mxu0 %v281
    %1746 = vmatpush.msra.mxu0 %v278
    %1747 = vmatpush.msra.mxu0 %v275
    %1748 = vmatpush.msra.mxu0 %v272
    %1749 = vmatpush.msra.mxu0 %v269
    %1750 = vmatmul.f32.gmra.mxu0 %v1506
    %v1751 = vpop.f32.mrf.mxu0
    %v1752 = vadd.f32 0.0, %v1751
    %1753 = vdwg.mxu0
    %1754 = vmatpush.msra.mxu0 %v315
    %1755 = vmatpush.msra.mxu0 %v312
    %1756 = vmatpush.msra.mxu0 %v309
    %1757 = vmatpush.msra.mxu0 %v306
    %1758 = vmatpush.msra.mxu0 %v303
    %1759 = vmatpush.msra.mxu0 %v300
    %1760 = vmatpush.msra.mxu0 %v297
    %1761 = vmatpush.msra.mxu0 %v294
    %1762 = vmatpush.msra.mxu0 %v291
    %1763 = vmatpush.msra.mxu0 %v288
    %1764 = vmatpush.msra.mxu0 %v285
    %1765 = vmatpush.msra.mxu0 %v282
    %1766 = vmatpush.msra.mxu0 %v279
    %1767 = vmatpush.msra.mxu0 %v276
    %1768 = vmatpush.msra.mxu0 %v273
    %1769 = vmatpush.msra.mxu0 %v270
    %1770 = vmatmul.f32.gmra.mxu0 %v1506
    %v1771 = vpop.f32.mrf.mxu0
    %v1772 = vadd.f32 0.0, %v1771
    %1773 = vdwg.mxu0
    %v1774 = vadd.f32 %v1711, %v1732
    %v1775 = vxor.u32 %v1774, 2147483648
    %v1776 = vmul.f32 %v1775, 1.442695
    %v1777 = vpow.pop %v1776
    %v1778 = vadd.f32 %v1777, 1.0
    %v1779 = vrcp.pop %v1778
    %v1780 = vmul.f32 %v1778, %v1779
    %v1781 = vsub.f32 1.0, %v1780
    %v1782 = vmul.f32 %v1779, %v1781
    %v1783 = vadd.f32 %v1779, %v1782
    %vm1784 = vweird.f32 %v1778
    %vm1785 = vweird.f32 %v1779
    %vm1786 = vmor %vm1784, %vm1785
    %v1787 = vsel %vm1786, %v1779, %v1783
    %v1788 = vand.u32 2147483647, %v1778
    %vm1789 = vcmp.eq.f32.partialorder %v1788, 8.507059e+37
    %v1790 = vand.u32 %v1778, 2147483648
    %v1791 = vor.u32 1.1754944e-38, %v1790
    %v1792 = vsel %vm1789, %v1791, %v1787
    %v1793 = vmul.f32 1.0, %v1792
    %v1794 = vadd.f32 %v1712, %v1752
    %v1795 = vxor.u32 %v1794, 2147483648
    %v1796 = vmul.f32 %v1795, 1.442695
    %v1797 = vpow.pop %v1796
    %v1798 = vadd.f32 %v1797, 1.0
    %v1799 = vrcp.pop %v1798
    %v1800 = vmul.f32 %v1798, %v1799
    %v1801 = vsub.f32 1.0, %v1800
    %v1802 = vmul.f32 %v1799, %v1801
    %v1803 = vadd.f32 %v1799, %v1802
    %vm1804 = vweird.f32 %v1798
    %vm1805 = vweird.f32 %v1799
    %vm1806 = vmor %vm1804, %vm1805
    %v1807 = vsel %vm1806, %v1799, %v1803
    %v1808 = vand.u32 2147483647, %v1798
    %vm1809 = vcmp.eq.f32.partialorder %v1808, 8.507059e+37
    %v1810 = vand.u32 %v1798, 2147483648
    %v1811 = vor.u32 1.1754944e-38, %v1810
    %v1812 = vsel %vm1809, %v1811, %v1807
    %v1813 = vmul.f32 1.0, %v1812
    %v1814 = vadd.f32 %v1772, %v418
    %v1815 = vmul.f32 %v1793, %v1814
    %v1816 = vadd.f32 %v1713, %v1815
    %v1817 = vtanh.pop %v1816
    %v1818 = vsub.f32 %v1506, %v1817
    %v1819 = vmul.f32 %v1813, %v1818
    %v1820 = vadd.f32 %v1817, %v1819
    %1821 = vmatpush.msra.mxu0 %v487
    %1822 = vmatpush.msra.mxu0 %v483
    %1823 = vmatpush.msra.mxu0 %v479
    %1824 = vmatpush.msra.mxu0 %v475
    %1825 = vmatpush.msra.mxu0 %v471
    %1826 = vmatpush.msra.mxu0 %v467
    %1827 = vmatpush.msra.mxu0 %v463
    %1828 = vmatpush.msra.mxu0 %v459
    %1829 = vmatpush.msra.mxu0 %v455
    %1830 = vmatpush.msra.mxu0 %v451
    %1831 = vmatpush.msra.mxu0 %v447
    %1832 = vmatpush.msra.mxu0 %v443
    %1833 = vmatpush.msra.mxu0 %v439
    %1834 = vmatpush.msra.mxu0 %v435
    %1835 = vmatpush.msra.mxu0 %v431
    %1836 = vmatpush.msra.mxu0 %v427
    %1837 = vmatmul.f32.gmra.mxu0 %v1820
    %v1838 = vpop.f32.mrf.mxu0
    %v1839 = vadd.f32 %v557, %v1838
    %1840 = vdwg.mxu0
    %1841 = vmatpush.msra.mxu0 %v551
    %1842 = vmatpush.msra.mxu0 %v547
    %1843 = vmatpush.msra.mxu0 %v543
    %1844 = vmatpush.msra.mxu0 %v539
    %1845 = vmatpush.msra.mxu0 %v535
    %1846 = vmatpush.msra.mxu0 %v531
    %1847 = vmatpush.msra.mxu0 %v527
    %1848 = vmatpush.msra.mxu0 %v523
    %1849 = vmatpush.msra.mxu0 %v519
    %1850 = vmatpush.msra.mxu0 %v515
    %1851 = vmatpush.msra.mxu0 %v511
    %1852 = vmatpush.msra.mxu0 %v507
    %1853 = vmatpush.msra.mxu0 %v503
    %1854 = vmatpush.msra.mxu0 %v499
    %1855 = vmatpush.msra.mxu0 %v495
    %1856 = vmatpush.msra.mxu0 %v491
    %1857 = vmatmul.f32.gmra.mxu0 %v1710
    %v1858 = vpop.f32.mrf.mxu0
    %v1859 = vadd.f32 %v1839, %v1858
    %1860 = vdwg.mxu0
    %1861 = vmatpush.msra.mxu0 %v488
    %1862 = vmatpush.msra.mxu0 %v484
    %1863 = vmatpush.msra.mxu0 %v480
    %1864 = vmatpush.msra.mxu0 %v476
    %1865 = vmatpush.msra.mxu0 %v472
    %1866 = vmatpush.msra.mxu0 %v468
    %1867 = vmatpush.msra.mxu0 %v464
    %1868 = vmatpush.msra.mxu0 %v460
    %1869 = vmatpush.msra.mxu0 %v456
    %1870 = vmatpush.msra.mxu0 %v452
    %1871 = vmatpush.msra.mxu0 %v448
    %1872 = vmatpush.msra.mxu0 %v444
    %1873 = vmatpush.msra.mxu0 %v440
    %1874 = vmatpush.msra.mxu0 %v436
    %1875 = vmatpush.msra.mxu0 %v432
    %1876 = vmatpush.msra.mxu0 %v428
    %1877 = vmatmul.f32.gmra.mxu0 %v1820
    %v1878 = vpop.f32.mrf.mxu0
    %v1879 = vadd.f32 %v558, %v1878
    %1880 = vdwg.mxu0
    %1881 = vmatpush.msra.mxu0 %v552
    %1882 = vmatpush.msra.mxu0 %v548
    %1883 = vmatpush.msra.mxu0 %v544
    %1884 = vmatpush.msra.mxu0 %v540
    %1885 = vmatpush.msra.mxu0 %v536
    %1886 = vmatpush.msra.mxu0 %v532
    %1887 = vmatpush.msra.mxu0 %v528
    %1888 = vmatpush.msra.mxu0 %v524
    %1889 = vmatpush.msra.mxu0 %v520
    %1890 = vmatpush.msra.mxu0 %v516
    %1891 = vmatpush.msra.mxu0 %v512
    %1892 = vmatpush.msra.mxu0 %v508
    %1893 = vmatpush.msra.mxu0 %v504
    %1894 = vmatpush.msra.mxu0 %v500
    %1895 = vmatpush.msra.mxu0 %v496
    %1896 = vmatpush.msra.mxu0 %v492
    %1897 = vmatmul.f32.gmra.mxu0 %v1710
    %v1898 = vpop.f32.mrf.mxu0
    %v1899 = vadd.f32 %v1879, %v1898
    %1900 = vdwg.mxu0
    %1901 = vmatpush.msra.mxu0 %v489
    %1902 = vmatpush.msra.mxu0 %v485
    %1903 = vmatpush.msra.mxu0 %v481
    %1904 = vmatpush.msra.mxu0 %v477
    %1905 = vmatpush.msra.mxu0 %v473
    %1906 = vmatpush.msra.mxu0 %v469
    %1907 = vmatpush.msra.mxu0 %v465
    %1908 = vmatpush.msra.mxu0 %v461
    %1909 = vmatpush.msra.mxu0 %v457
    %1910 = vmatpush.msra.mxu0 %v453
    %1911 = vmatpush.msra.mxu0 %v449
    %1912 = vmatpush.msra.mxu0 %v445
    %1913 = vmatpush.msra.mxu0 %v441
    %1914 = vmatpush.msra.mxu0 %v437
    %1915 = vmatpush.msra.mxu0 %v433
    %1916 = vmatpush.msra.mxu0 %v429
    %1917 = vmatmul.f32.gmra.mxu0 %v1820
    %v1918 = vpop.f32.mrf.mxu0
    %v1919 = vadd.f32 %v559, %v1918
    %1920 = vdwg.mxu0
    %1921 = vmatpush.msra.mxu0 %v553
    %1922 = vmatpush.msra.mxu0 %v549
    %1923 = vmatpush.msra.mxu0 %v545
    %1924 = vmatpush.msra.mxu0 %v541
    %1925 = vmatpush.msra.mxu0 %v537
    %1926 = vmatpush.msra.mxu0 %v533
    %1927 = vmatpush.msra.mxu0 %v529
    %1928 = vmatpush.msra.mxu0 %v525
    %1929 = vmatpush.msra.mxu0 %v521
    %1930 = vmatpush.msra.mxu0 %v517
    %1931 = vmatpush.msra.mxu0 %v513
    %1932 = vmatpush.msra.mxu0 %v509
    %1933 = vmatpush.msra.mxu0 %v505
    %1934 = vmatpush.msra.mxu0 %v501
    %1935 = vmatpush.msra.mxu0 %v497
    %1936 = vmatpush.msra.mxu0 %v493
    %1937 = vmatmul.f32.gmra.mxu0 %v1710
    %v1938 = vpop.f32.mrf.mxu0
    %v1939 = vadd.f32 %v1919, %v1938
    %1940 = vdwg.mxu0
    %1941 = vmatpush.msra.mxu0 %v490
    %1942 = vmatpush.msra.mxu0 %v486
    %1943 = vmatpush.msra.mxu0 %v482
    %1944 = vmatpush.msra.mxu0 %v478
    %1945 = vmatpush.msra.mxu0 %v474
    %1946 = vmatpush.msra.mxu0 %v470
    %1947 = vmatpush.msra.mxu0 %v466
    %1948 = vmatpush.msra.mxu0 %v462
    %1949 = vmatpush.msra.mxu0 %v458
    %1950 = vmatpush.msra.mxu0 %v454
    %1951 = vmatpush.msra.mxu0 %v450
    %1952 = vmatpush.msra.mxu0 %v446
    %1953 = vmatpush.msra.mxu0 %v442
    %1954 = vmatpush.msra.mxu0 %v438
    %1955 = vmatpush.msra.mxu0 %v434
    %1956 = vmatpush.msra.mxu0 %v430
    %1957 = vmatmul.f32.gmra.mxu0 %v1820
    %v1958 = vpop.f32.mrf.mxu0
    %v1959 = vadd.f32 %v560, %v1958
    %1960 = vdwg.mxu0
    %1961 = vmatpush.msra.mxu0 %v554
    %1962 = vmatpush.msra.mxu0 %v550
    %1963 = vmatpush.msra.mxu0 %v546
    %1964 = vmatpush.msra.mxu0 %v542
    %1965 = vmatpush.msra.mxu0 %v538
    %1966 = vmatpush.msra.mxu0 %v534
    %1967 = vmatpush.msra.mxu0 %v530
    %1968 = vmatpush.msra.mxu0 %v526
    %1969 = vmatpush.msra.mxu0 %v522
    %1970 = vmatpush.msra.mxu0 %v518
    %1971 = vmatpush.msra.mxu0 %v514
    %1972 = vmatpush.msra.mxu0 %v510
    %1973 = vmatpush.msra.mxu0 %v506
    %1974 = vmatpush.msra.mxu0 %v502
    %1975 = vmatpush.msra.mxu0 %v498
    %1976 = vmatpush.msra.mxu0 %v494
    %1977 = vmatmul.f32.gmra.mxu0 %v1710
    %v1978 = vpop.f32.mrf.mxu0
    %v1979 = vadd.f32 %v1959, %v1978
    %1980 = vdwg.mxu0
    %v1981 = vxor.u32 %v1859, 2147483648
    %v1982 = vmul.f32 %v1981, 1.442695
    %v1983 = vpow.pop %v1982
    %v1984 = vadd.f32 %v1983, 1.0
    %v1985 = vrcp.pop %v1984
    %v1986 = vmul.f32 %v1984, %v1985
    %v1987 = vsub.f32 1.0, %v1986
    %v1988 = vmul.f32 %v1985, %v1987
    %v1989 = vadd.f32 %v1985, %v1988
    %vm1990 = vweird.f32 %v1984
    %vm1991 = vweird.f32 %v1985
    %vm1992 = vmor %vm1990, %vm1991
    %v1993 = vsel %vm1992, %v1985, %v1989
    %v1994 = vand.u32 2147483647, %v1984
    %vm1995 = vcmp.eq.f32.partialorder %v1994, 8.507059e+37
    %v1996 = vand.u32 %v1984, 2147483648
    %v1997 = vor.u32 1.1754944e-38, %v1996
    %v1998 = vsel %vm1995, %v1997, %v1993
    %v1999 = vmul.f32 1.0, %v1998
    %v2000 = vxor.u32 %v1899, 2147483648
    %v2001 = vmul.f32 %v2000, 1.442695
    %v2002 = vpow.pop %v2001
    %v2003 = vadd.f32 %v2002, 1.0
    %v2004 = vrcp.pop %v2003
    %v2005 = vmul.f32 %v2003, %v2004
    %v2006 = vsub.f32 1.0, %v2005
    %v2007 = vmul.f32 %v2004, %v2006
    %v2008 = vadd.f32 %v2004, %v2007
    %vm2009 = vweird.f32 %v2003
    %vm2010 = vweird.f32 %v2004
    %vm2011 = vmor %vm2009, %vm2010
    %v2012 = vsel %vm2011, %v2004, %v2008
    %v2013 = vand.u32 2147483647, %v2003
    %vm2014 = vcmp.eq.f32.partialorder %v2013, 8.507059e+37
    %v2015 = vand.u32 %v2003, 2147483648
    %v2016 = vor.u32 1.1754944e-38, %v2015
    %v2017 = vsel %vm2014, %v2016, %v2012
    %v2018 = vmul.f32 1.0, %v2017
    %v2019 = vmul.f32 %v1999, %v1979
    %v2020 = vadd.f32 %v1939, %v2019
    %v2021 = vtanh.pop %v2020
    %v2022 = vsub.f32 %v1710, %v2021
    %v2023 = vmul.f32 %v2018, %v2022
    %v2024 = vadd.f32 %v2021, %v2023
    %v2025 = vld [vmem:[#allocation2 + $0x78] sm:$0xff]
    %v2026 = vld [vmem:[#allocation2 + $0x80] sm:$0xff]
    %v2027 = vld [vmem:[#allocation2 + $0x88] sm:$0xff]
    %2028 = vmatpush.msra.mxu0 %v313
    %2029 = vmatpush.msra.mxu0 %v310
    %2030 = vmatpush.msra.mxu0 %v307
    %2031 = vmatpush.msra.mxu0 %v304
    %2032 = vmatpush.msra.mxu0 %v301
    %2033 = vmatpush.msra.mxu0 %v298
    %2034 = vmatpush.msra.mxu0 %v295
    %2035 = vmatpush.msra.mxu0 %v292
    %2036 = vmatpush.msra.mxu0 %v289
    %2037 = vmatpush.msra.mxu0 %v286
    %2038 = vmatpush.msra.mxu0 %v283
    %2039 = vmatpush.msra.mxu0 %v280
    %2040 = vmatpush.msra.mxu0 %v277
    %2041 = vmatpush.msra.mxu0 %v274
    %2042 = vmatpush.msra.mxu0 %v271
    %2043 = vmatpush.msra.mxu0 %v268
    %2044 = vmatmul.f32.gmra.mxu0 %v1820
    %v2045 = vpop.f32.mrf.mxu0
    %v2046 = vadd.f32 0.0, %v2045
    %2047 = vdwg.mxu0
    %2048 = vmatpush.msra.mxu0 %v314
    %2049 = vmatpush.msra.mxu0 %v311
    %2050 = vmatpush.msra.mxu0 %v308
    %2051 = vmatpush.msra.mxu0 %v305
    %2052 = vmatpush.msra.mxu0 %v302
    %2053 = vmatpush.msra.mxu0 %v299
    %2054 = vmatpush.msra.mxu0 %v296
    %2055 = vmatpush.msra.mxu0 %v293
    %2056 = vmatpush.msra.mxu0 %v290
    %2057 = vmatpush.msra.mxu0 %v287
    %2058 = vmatpush.msra.mxu0 %v284
    %2059 = vmatpush.msra.mxu0 %v281
    %2060 = vmatpush.msra.mxu0 %v278
    %2061 = vmatpush.msra.mxu0 %v275
    %2062 = vmatpush.msra.mxu0 %v272
    %2063 = vmatpush.msra.mxu0 %v269
    %2064 = vmatmul.f32.gmra.mxu0 %v1820
    %v2065 = vpop.f32.mrf.mxu0
    %v2066 = vadd.f32 0.0, %v2065
    %2067 = vdwg.mxu0
    %2068 = vmatpush.msra.mxu0 %v315
    %2069 = vmatpush.msra.mxu0 %v312
    %2070 = vmatpush.msra.mxu0 %v309
    %2071 = vmatpush.msra.mxu0 %v306
    %2072 = vmatpush.msra.mxu0 %v303
    %2073 = vmatpush.msra.mxu0 %v300
    %2074 = vmatpush.msra.mxu0 %v297
    %2075 = vmatpush.msra.mxu0 %v294
    %2076 = vmatpush.msra.mxu0 %v291
    %2077 = vmatpush.msra.mxu0 %v288
    %2078 = vmatpush.msra.mxu0 %v285
    %2079 = vmatpush.msra.mxu0 %v282
    %2080 = vmatpush.msra.mxu0 %v279
    %2081 = vmatpush.msra.mxu0 %v276
    %2082 = vmatpush.msra.mxu0 %v273
    %2083 = vmatpush.msra.mxu0 %v270
    %2084 = vmatmul.f32.gmra.mxu0 %v1820
    %v2085 = vpop.f32.mrf.mxu0
    %v2086 = vadd.f32 0.0, %v2085
    %2087 = vdwg.mxu0
    %v2088 = vadd.f32 %v2025, %v2046
    %v2089 = vxor.u32 %v2088, 2147483648
    %v2090 = vmul.f32 %v2089, 1.442695
    %v2091 = vpow.pop %v2090
    %v2092 = vadd.f32 %v2091, 1.0
    %v2093 = vrcp.pop %v2092
    %v2094 = vmul.f32 %v2092, %v2093
    %v2095 = vsub.f32 1.0, %v2094
    %v2096 = vmul.f32 %v2093, %v2095
    %v2097 = vadd.f32 %v2093, %v2096
    %vm2098 = vweird.f32 %v2092
    %vm2099 = vweird.f32 %v2093
    %vm2100 = vmor %vm2098, %vm2099
    %v2101 = vsel %vm2100, %v2093, %v2097
    %v2102 = vand.u32 2147483647, %v2092
    %vm2103 = vcmp.eq.f32.partialorder %v2102, 8.507059e+37
    %v2104 = vand.u32 %v2092, 2147483648
    %v2105 = vor.u32 1.1754944e-38, %v2104
    %v2106 = vsel %vm2103, %v2105, %v2101
    %v2107 = vmul.f32 1.0, %v2106
    %v2108 = vadd.f32 %v2026, %v2066
    %v2109 = vxor.u32 %v2108, 2147483648
    %v2110 = vmul.f32 %v2109, 1.442695
    %v2111 = vpow.pop %v2110
    %v2112 = vadd.f32 %v2111, 1.0
    %v2113 = vrcp.pop %v2112
    %v2114 = vmul.f32 %v2112, %v2113
    %v2115 = vsub.f32 1.0, %v2114
    %v2116 = vmul.f32 %v2113, %v2115
    %v2117 = vadd.f32 %v2113, %v2116
    %vm2118 = vweird.f32 %v2112
    %vm2119 = vweird.f32 %v2113
    %vm2120 = vmor %vm2118, %vm2119
    %v2121 = vsel %vm2120, %v2113, %v2117
    %v2122 = vand.u32 2147483647, %v2112
    %vm2123 = vcmp.eq.f32.partialorder %v2122, 8.507059e+37
    %v2124 = vand.u32 %v2112, 2147483648
    %v2125 = vor.u32 1.1754944e-38, %v2124
    %v2126 = vsel %vm2123, %v2125, %v2121
    %v2127 = vmul.f32 1.0, %v2126
    %v2128 = vadd.f32 %v2086, %v418
    %v2129 = vmul.f32 %v2107, %v2128
    %v2130 = vadd.f32 %v2027, %v2129
    %v2131 = vtanh.pop %v2130
    %v2132 = vsub.f32 %v1820, %v2131
    %v2133 = vmul.f32 %v2127, %v2132
    %v2134 = vadd.f32 %v2131, %v2133
    %2135 = vmatpush.msra.mxu0 %v487
    %2136 = vmatpush.msra.mxu0 %v483
    %2137 = vmatpush.msra.mxu0 %v479
    %2138 = vmatpush.msra.mxu0 %v475
    %2139 = vmatpush.msra.mxu0 %v471
    %2140 = vmatpush.msra.mxu0 %v467
    %2141 = vmatpush.msra.mxu0 %v463
    %2142 = vmatpush.msra.mxu0 %v459
    %2143 = vmatpush.msra.mxu0 %v455
    %2144 = vmatpush.msra.mxu0 %v451
    %2145 = vmatpush.msra.mxu0 %v447
    %2146 = vmatpush.msra.mxu0 %v443
    %2147 = vmatpush.msra.mxu0 %v439
    %2148 = vmatpush.msra.mxu0 %v435
    %2149 = vmatpush.msra.mxu0 %v431
    %2150 = vmatpush.msra.mxu0 %v427
    %2151 = vmatmul.f32.gmra.mxu0 %v2134
    %v2152 = vpop.f32.mrf.mxu0
    %v2153 = vadd.f32 %v557, %v2152
    %2154 = vdwg.mxu0
    %2155 = vmatpush.msra.mxu0 %v551
    %2156 = vmatpush.msra.mxu0 %v547
    %2157 = vmatpush.msra.mxu0 %v543
    %2158 = vmatpush.msra.mxu0 %v539
    %2159 = vmatpush.msra.mxu0 %v535
    %2160 = vmatpush.msra.mxu0 %v531
    %2161 = vmatpush.msra.mxu0 %v527
    %2162 = vmatpush.msra.mxu0 %v523
    %2163 = vmatpush.msra.mxu0 %v519
    %2164 = vmatpush.msra.mxu0 %v515
    %2165 = vmatpush.msra.mxu0 %v511
    %2166 = vmatpush.msra.mxu0 %v507
    %2167 = vmatpush.msra.mxu0 %v503
    %2168 = vmatpush.msra.mxu0 %v499
    %2169 = vmatpush.msra.mxu0 %v495
    %2170 = vmatpush.msra.mxu0 %v491
    %2171 = vmatmul.f32.gmra.mxu0 %v2024
    %v2172 = vpop.f32.mrf.mxu0
    %v2173 = vadd.f32 %v2153, %v2172
    %2174 = vdwg.mxu0
    %2175 = vmatpush.msra.mxu0 %v488
    %2176 = vmatpush.msra.mxu0 %v484
    %2177 = vmatpush.msra.mxu0 %v480
    %2178 = vmatpush.msra.mxu0 %v476
    %2179 = vmatpush.msra.mxu0 %v472
    %2180 = vmatpush.msra.mxu0 %v468
    %2181 = vmatpush.msra.mxu0 %v464
    %2182 = vmatpush.msra.mxu0 %v460
    %2183 = vmatpush.msra.mxu0 %v456
    %2184 = vmatpush.msra.mxu0 %v452
    %2185 = vmatpush.msra.mxu0 %v448
    %2186 = vmatpush.msra.mxu0 %v444
    %2187 = vmatpush.msra.mxu0 %v440
    %2188 = vmatpush.msra.mxu0 %v436
    %2189 = vmatpush.msra.mxu0 %v432
    %2190 = vmatpush.msra.mxu0 %v428
    %2191 = vmatmul.f32.gmra.mxu0 %v2134
    %v2192 = vpop.f32.mrf.mxu0
    %v2193 = vadd.f32 %v558, %v2192
    %2194 = vdwg.mxu0
    %2195 = vmatpush.msra.mxu0 %v552
    %2196 = vmatpush.msra.mxu0 %v548
    %2197 = vmatpush.msra.mxu0 %v544
    %2198 = vmatpush.msra.mxu0 %v540
    %2199 = vmatpush.msra.mxu0 %v536
    %2200 = vmatpush.msra.mxu0 %v532
    %2201 = vmatpush.msra.mxu0 %v528
    %2202 = vmatpush.msra.mxu0 %v524
    %2203 = vmatpush.msra.mxu0 %v520
    %2204 = vmatpush.msra.mxu0 %v516
    %2205 = vmatpush.msra.mxu0 %v512
    %2206 = vmatpush.msra.mxu0 %v508
    %2207 = vmatpush.msra.mxu0 %v504
    %2208 = vmatpush.msra.mxu0 %v500
    %2209 = vmatpush.msra.mxu0 %v496
    %2210 = vmatpush.msra.mxu0 %v492
    %2211 = vmatmul.f32.gmra.mxu0 %v2024
    %v2212 = vpop.f32.mrf.mxu0
    %v2213 = vadd.f32 %v2193, %v2212
    %2214 = vdwg.mxu0
    %2215 = vmatpush.msra.mxu0 %v489
    %2216 = vmatpush.msra.mxu0 %v485
    %2217 = vmatpush.msra.mxu0 %v481
    %2218 = vmatpush.msra.mxu0 %v477
    %2219 = vmatpush.msra.mxu0 %v473
    %2220 = vmatpush.msra.mxu0 %v469
    %2221 = vmatpush.msra.mxu0 %v465
    %2222 = vmatpush.msra.mxu0 %v461
    %2223 = vmatpush.msra.mxu0 %v457
    %2224 = vmatpush.msra.mxu0 %v453
    %2225 = vmatpush.msra.mxu0 %v449
    %2226 = vmatpush.msra.mxu0 %v445
    %2227 = vmatpush.msra.mxu0 %v441
    %2228 = vmatpush.msra.mxu0 %v437
    %2229 = vmatpush.msra.mxu0 %v433
    %2230 = vmatpush.msra.mxu0 %v429
    %2231 = vmatmul.f32.gmra.mxu0 %v2134
    %v2232 = vpop.f32.mrf.mxu0
    %v2233 = vadd.f32 %v559, %v2232
    %2234 = vdwg.mxu0
    %2235 = vmatpush.msra.mxu0 %v553
    %2236 = vmatpush.msra.mxu0 %v549
    %2237 = vmatpush.msra.mxu0 %v545
    %2238 = vmatpush.msra.mxu0 %v541
    %2239 = vmatpush.msra.mxu0 %v537
    %2240 = vmatpush.msra.mxu0 %v533
    %2241 = vmatpush.msra.mxu0 %v529
    %2242 = vmatpush.msra.mxu0 %v525
    %2243 = vmatpush.msra.mxu0 %v521
    %2244 = vmatpush.msra.mxu0 %v517
    %2245 = vmatpush.msra.mxu0 %v513
    %2246 = vmatpush.msra.mxu0 %v509
    %2247 = vmatpush.msra.mxu0 %v505
    %2248 = vmatpush.msra.mxu0 %v501
    %2249 = vmatpush.msra.mxu0 %v497
    %2250 = vmatpush.msra.mxu0 %v493
    %2251 = vmatmul.f32.gmra.mxu0 %v2024
    %v2252 = vpop.f32.mrf.mxu0
    %v2253 = vadd.f32 %v2233, %v2252
    %2254 = vdwg.mxu0
    %2255 = vmatpush.msra.mxu0 %v490
    %2256 = vmatpush.msra.mxu0 %v486
    %2257 = vmatpush.msra.mxu0 %v482
    %2258 = vmatpush.msra.mxu0 %v478
    %2259 = vmatpush.msra.mxu0 %v474
    %2260 = vmatpush.msra.mxu0 %v470
    %2261 = vmatpush.msra.mxu0 %v466
    %2262 = vmatpush.msra.mxu0 %v462
    %2263 = vmatpush.msra.mxu0 %v458
    %2264 = vmatpush.msra.mxu0 %v454
    %2265 = vmatpush.msra.mxu0 %v450
    %2266 = vmatpush.msra.mxu0 %v446
    %2267 = vmatpush.msra.mxu0 %v442
    %2268 = vmatpush.msra.mxu0 %v438
    %2269 = vmatpush.msra.mxu0 %v434
    %2270 = vmatpush.msra.mxu0 %v430
    %2271 = vmatmul.f32.gmra.mxu0 %v2134
    %v2272 = vpop.f32.mrf.mxu0
    %v2273 = vadd.f32 %v560, %v2272
    %2274 = vdwg.mxu0
    %2275 = vmatpush.msra.mxu0 %v554
    %2276 = vmatpush.msra.mxu0 %v550
    %2277 = vmatpush.msra.mxu0 %v546
    %2278 = vmatpush.msra.mxu0 %v542
    %2279 = vmatpush.msra.mxu0 %v538
    %2280 = vmatpush.msra.mxu0 %v534
    %2281 = vmatpush.msra.mxu0 %v530
    %2282 = vmatpush.msra.mxu0 %v526
    %2283 = vmatpush.msra.mxu0 %v522
    %2284 = vmatpush.msra.mxu0 %v518
    %2285 = vmatpush.msra.mxu0 %v514
    %2286 = vmatpush.msra.mxu0 %v510
    %2287 = vmatpush.msra.mxu0 %v506
    %2288 = vmatpush.msra.mxu0 %v502
    %2289 = vmatpush.msra.mxu0 %v498
    %2290 = vmatpush.msra.mxu0 %v494
    %2291 = vmatmul.f32.gmra.mxu0 %v2024
    %v2292 = vpop.f32.mrf.mxu0
    %v2293 = vadd.f32 %v2273, %v2292
    %2294 = vdwg.mxu0
    %v2295 = vxor.u32 %v2173, 2147483648
    %v2296 = vmul.f32 %v2295, 1.442695
    %v2297 = vpow.pop %v2296
    %v2298 = vadd.f32 %v2297, 1.0
    %v2299 = vrcp.pop %v2298
    %v2300 = vmul.f32 %v2298, %v2299
    %v2301 = vsub.f32 1.0, %v2300
    %v2302 = vmul.f32 %v2299, %v2301
    %v2303 = vadd.f32 %v2299, %v2302
    %vm2304 = vweird.f32 %v2298
    %vm2305 = vweird.f32 %v2299
    %vm2306 = vmor %vm2304, %vm2305
    %v2307 = vsel %vm2306, %v2299, %v2303
    %v2308 = vand.u32 2147483647, %v2298
    %vm2309 = vcmp.eq.f32.partialorder %v2308, 8.507059e+37
    %v2310 = vand.u32 %v2298, 2147483648
    %v2311 = vor.u32 1.1754944e-38, %v2310
    %v2312 = vsel %vm2309, %v2311, %v2307
    %v2313 = vmul.f32 1.0, %v2312
    %v2314 = vxor.u32 %v2213, 2147483648
    %v2315 = vmul.f32 %v2314, 1.442695
    %v2316 = vpow.pop %v2315
    %v2317 = vadd.f32 %v2316, 1.0
    %v2318 = vrcp.pop %v2317
    %v2319 = vmul.f32 %v2317, %v2318
    %v2320 = vsub.f32 1.0, %v2319
    %v2321 = vmul.f32 %v2318, %v2320
    %v2322 = vadd.f32 %v2318, %v2321
    %vm2323 = vweird.f32 %v2317
    %vm2324 = vweird.f32 %v2318
    %vm2325 = vmor %vm2323, %vm2324
    %v2326 = vsel %vm2325, %v2318, %v2322
    %v2327 = vand.u32 2147483647, %v2317
    %vm2328 = vcmp.eq.f32.partialorder %v2327, 8.507059e+37
    %v2329 = vand.u32 %v2317, 2147483648
    %v2330 = vor.u32 1.1754944e-38, %v2329
    %v2331 = vsel %vm2328, %v2330, %v2326
    %v2332 = vmul.f32 1.0, %v2331
    %v2333 = vmul.f32 %v2313, %v2293
    %v2334 = vadd.f32 %v2253, %v2333
    %v2335 = vtanh.pop %v2334
    %v2336 = vsub.f32 %v2024, %v2335
    %v2337 = vmul.f32 %v2332, %v2336
    %v2338 = vadd.f32 %v2335, %v2337
    %v2339 = vld [vmem:[#allocation2 + $0x90] sm:$0xff]
    %v2340 = vld [vmem:[#allocation2 + $0x98] sm:$0xff]
    %v2341 = vld [vmem:[#allocation2 + $0xa0] sm:$0xff]
    %2342 = vmatpush.msra.mxu0 %v313
    %2343 = vmatpush.msra.mxu0 %v310
    %2344 = vmatpush.msra.mxu0 %v307
    %2345 = vmatpush.msra.mxu0 %v304
    %2346 = vmatpush.msra.mxu0 %v301
    %2347 = vmatpush.msra.mxu0 %v298
    %2348 = vmatpush.msra.mxu0 %v295
    %2349 = vmatpush.msra.mxu0 %v292
    %2350 = vmatpush.msra.mxu0 %v289
    %2351 = vmatpush.msra.mxu0 %v286
    %2352 = vmatpush.msra.mxu0 %v283
    %2353 = vmatpush.msra.mxu0 %v280
    %2354 = vmatpush.msra.mxu0 %v277
    %2355 = vmatpush.msra.mxu0 %v274
    %2356 = vmatpush.msra.mxu0 %v271
    %2357 = vmatpush.msra.mxu0 %v268
    %2358 = vmatmul.f32.gmra.mxu0 %v2134
    %v2359 = vpop.f32.mrf.mxu0
    %v2360 = vadd.f32 0.0, %v2359
    %2361 = vdwg.mxu0
    %2362 = vmatpush.msra.mxu0 %v314
    %2363 = vmatpush.msra.mxu0 %v311
    %2364 = vmatpush.msra.mxu0 %v308
    %2365 = vmatpush.msra.mxu0 %v305
    %2366 = vmatpush.msra.mxu0 %v302
    %2367 = vmatpush.msra.mxu0 %v299
    %2368 = vmatpush.msra.mxu0 %v296
    %2369 = vmatpush.msra.mxu0 %v293
    %2370 = vmatpush.msra.mxu0 %v290
    %2371 = vmatpush.msra.mxu0 %v287
    %2372 = vmatpush.msra.mxu0 %v284
    %2373 = vmatpush.msra.mxu0 %v281
    %2374 = vmatpush.msra.mxu0 %v278
    %2375 = vmatpush.msra.mxu0 %v275
    %2376 = vmatpush.msra.mxu0 %v272
    %2377 = vmatpush.msra.mxu0 %v269
    %2378 = vmatmul.f32.gmra.mxu0 %v2134
    %v2379 = vpop.f32.mrf.mxu0
    %v2380 = vadd.f32 0.0, %v2379
    %2381 = vdwg.mxu0
    %2382 = vmatpush.msra.mxu0 %v315
    %2383 = vmatpush.msra.mxu0 %v312
    %2384 = vmatpush.msra.mxu0 %v309
    %2385 = vmatpush.msra.mxu0 %v306
    %2386 = vmatpush.msra.mxu0 %v303
    %2387 = vmatpush.msra.mxu0 %v300
    %2388 = vmatpush.msra.mxu0 %v297
    %2389 = vmatpush.msra.mxu0 %v294
    %2390 = vmatpush.msra.mxu0 %v291
    %2391 = vmatpush.msra.mxu0 %v288
    %2392 = vmatpush.msra.mxu0 %v285
    %2393 = vmatpush.msra.mxu0 %v282
    %2394 = vmatpush.msra.mxu0 %v279
    %2395 = vmatpush.msra.mxu0 %v276
    %2396 = vmatpush.msra.mxu0 %v273
    %2397 = vmatpush.msra.mxu0 %v270
    %2398 = vmatmul.f32.gmra.mxu0 %v2134
    %v2399 = vpop.f32.mrf.mxu0
    %v2400 = vadd.f32 0.0, %v2399
    %2401 = vdwg.mxu0
    %v2402 = vadd.f32 %v2339, %v2360
    %v2403 = vxor.u32 %v2402, 2147483648
    %v2404 = vmul.f32 %v2403, 1.442695
    %v2405 = vpow.pop %v2404
    %v2406 = vadd.f32 %v2405, 1.0
    %v2407 = vrcp.pop %v2406
    %v2408 = vmul.f32 %v2406, %v2407
    %v2409 = vsub.f32 1.0, %v2408
    %v2410 = vmul.f32 %v2407, %v2409
    %v2411 = vadd.f32 %v2407, %v2410
    %vm2412 = vweird.f32 %v2406
    %vm2413 = vweird.f32 %v2407
    %vm2414 = vmor %vm2412, %vm2413
    %v2415 = vsel %vm2414, %v2407, %v2411
    %v2416 = vand.u32 2147483647, %v2406
    %vm2417 = vcmp.eq.f32.partialorder %v2416, 8.507059e+37
    %v2418 = vand.u32 %v2406, 2147483648
    %v2419 = vor.u32 1.1754944e-38, %v2418
    %v2420 = vsel %vm2417, %v2419, %v2415
    %v2421 = vmul.f32 1.0, %v2420
    %v2422 = vadd.f32 %v2340, %v2380
    %v2423 = vxor.u32 %v2422, 2147483648
    %v2424 = vmul.f32 %v2423, 1.442695
    %v2425 = vpow.pop %v2424
    %v2426 = vadd.f32 %v2425, 1.0
    %v2427 = vrcp.pop %v2426
    %v2428 = vmul.f32 %v2426, %v2427
    %v2429 = vsub.f32 1.0, %v2428
    %v2430 = vmul.f32 %v2427, %v2429
    %v2431 = vadd.f32 %v2427, %v2430
    %vm2432 = vweird.f32 %v2426
    %vm2433 = vweird.f32 %v2427
    %vm2434 = vmor %vm2432, %vm2433
    %v2435 = vsel %vm2434, %v2427, %v2431
    %v2436 = vand.u32 2147483647, %v2426
    %vm2437 = vcmp.eq.f32.partialorder %v2436, 8.507059e+37
    %v2438 = vand.u32 %v2426, 2147483648
    %v2439 = vor.u32 1.1754944e-38, %v2438
    %v2440 = vsel %vm2437, %v2439, %v2435
    %v2441 = vmul.f32 1.0, %v2440
    %v2442 = vadd.f32 %v2400, %v418
    %v2443 = vmul.f32 %v2421, %v2442
    %v2444 = vadd.f32 %v2341, %v2443
    %v2445 = vtanh.pop %v2444
    %v2446 = vsub.f32 %v2134, %v2445
    %v2447 = vmul.f32 %v2441, %v2446
    %v2448 = vadd.f32 %v2445, %v2447
    %2449 = vmatpush.msra.mxu0 %v487
    %2450 = vmatpush.msra.mxu0 %v483
    %2451 = vmatpush.msra.mxu0 %v479
    %2452 = vmatpush.msra.mxu0 %v475
    %2453 = vmatpush.msra.mxu0 %v471
    %2454 = vmatpush.msra.mxu0 %v467
    %2455 = vmatpush.msra.mxu0 %v463
    %2456 = vmatpush.msra.mxu0 %v459
    %2457 = vmatpush.msra.mxu0 %v455
    %2458 = vmatpush.msra.mxu0 %v451
    %2459 = vmatpush.msra.mxu0 %v447
    %2460 = vmatpush.msra.mxu0 %v443
    %2461 = vmatpush.msra.mxu0 %v439
    %2462 = vmatpush.msra.mxu0 %v435
    %2463 = vmatpush.msra.mxu0 %v431
    %2464 = vmatpush.msra.mxu0 %v427
    %2465 = vmatmul.f32.gmra.mxu0 %v2448
    %v2466 = vpop.f32.mrf.mxu0
    %v2467 = vadd.f32 %v557, %v2466
    %2468 = vdwg.mxu0
    %2469 = vmatpush.msra.mxu0 %v551
    %2470 = vmatpush.msra.mxu0 %v547
    %2471 = vmatpush.msra.mxu0 %v543
    %2472 = vmatpush.msra.mxu0 %v539
    %2473 = vmatpush.msra.mxu0 %v535
    %2474 = vmatpush.msra.mxu0 %v531
    %2475 = vmatpush.msra.mxu0 %v527
    %2476 = vmatpush.msra.mxu0 %v523
    %2477 = vmatpush.msra.mxu0 %v519
    %2478 = vmatpush.msra.mxu0 %v515
    %2479 = vmatpush.msra.mxu0 %v511
    %2480 = vmatpush.msra.mxu0 %v507
    %2481 = vmatpush.msra.mxu0 %v503
    %2482 = vmatpush.msra.mxu0 %v499
    %2483 = vmatpush.msra.mxu0 %v495
    %2484 = vmatpush.msra.mxu0 %v491
    %2485 = vmatmul.f32.gmra.mxu0 %v2338
    %v2486 = vpop.f32.mrf.mxu0
    %v2487 = vadd.f32 %v2467, %v2486
    %2488 = vdwg.mxu0
    %2489 = vmatpush.msra.mxu0 %v488
    %2490 = vmatpush.msra.mxu0 %v484
    %2491 = vmatpush.msra.mxu0 %v480
    %2492 = vmatpush.msra.mxu0 %v476
    %2493 = vmatpush.msra.mxu0 %v472
    %2494 = vmatpush.msra.mxu0 %v468
    %2495 = vmatpush.msra.mxu0 %v464
    %2496 = vmatpush.msra.mxu0 %v460
    %2497 = vmatpush.msra.mxu0 %v456
    %2498 = vmatpush.msra.mxu0 %v452
    %2499 = vmatpush.msra.mxu0 %v448
    %2500 = vmatpush.msra.mxu0 %v444
    %2501 = vmatpush.msra.mxu0 %v440
    %2502 = vmatpush.msra.mxu0 %v436
    %2503 = vmatpush.msra.mxu0 %v432
    %2504 = vmatpush.msra.mxu0 %v428
    %2505 = vmatmul.f32.gmra.mxu0 %v2448
    %v2506 = vpop.f32.mrf.mxu0
    %v2507 = vadd.f32 %v558, %v2506
    %2508 = vdwg.mxu0
    %2509 = vmatpush.msra.mxu0 %v552
    %2510 = vmatpush.msra.mxu0 %v548
    %2511 = vmatpush.msra.mxu0 %v544
    %2512 = vmatpush.msra.mxu0 %v540
    %2513 = vmatpush.msra.mxu0 %v536
    %2514 = vmatpush.msra.mxu0 %v532
    %2515 = vmatpush.msra.mxu0 %v528
    %2516 = vmatpush.msra.mxu0 %v524
    %2517 = vmatpush.msra.mxu0 %v520
    %2518 = vmatpush.msra.mxu0 %v516
    %2519 = vmatpush.msra.mxu0 %v512
    %2520 = vmatpush.msra.mxu0 %v508
    %2521 = vmatpush.msra.mxu0 %v504
    %2522 = vmatpush.msra.mxu0 %v500
    %2523 = vmatpush.msra.mxu0 %v496
    %2524 = vmatpush.msra.mxu0 %v492
    %2525 = vmatmul.f32.gmra.mxu0 %v2338
    %v2526 = vpop.f32.mrf.mxu0
    %v2527 = vadd.f32 %v2507, %v2526
    %2528 = vdwg.mxu0
    %2529 = vmatpush.msra.mxu0 %v489
    %2530 = vmatpush.msra.mxu0 %v485
    %2531 = vmatpush.msra.mxu0 %v481
    %2532 = vmatpush.msra.mxu0 %v477
    %2533 = vmatpush.msra.mxu0 %v473
    %2534 = vmatpush.msra.mxu0 %v469
    %2535 = vmatpush.msra.mxu0 %v465
    %2536 = vmatpush.msra.mxu0 %v461
    %2537 = vmatpush.msra.mxu0 %v457
    %2538 = vmatpush.msra.mxu0 %v453
    %2539 = vmatpush.msra.mxu0 %v449
    %2540 = vmatpush.msra.mxu0 %v445
    %2541 = vmatpush.msra.mxu0 %v441
    %2542 = vmatpush.msra.mxu0 %v437
    %2543 = vmatpush.msra.mxu0 %v433
    %2544 = vmatpush.msra.mxu0 %v429
    %2545 = vmatmul.f32.gmra.mxu0 %v2448
    %v2546 = vpop.f32.mrf.mxu0
    %v2547 = vadd.f32 %v559, %v2546
    %2548 = vdwg.mxu0
    %2549 = vmatpush.msra.mxu0 %v553
    %2550 = vmatpush.msra.mxu0 %v549
    %2551 = vmatpush.msra.mxu0 %v545
    %2552 = vmatpush.msra.mxu0 %v541
    %2553 = vmatpush.msra.mxu0 %v537
    %2554 = vmatpush.msra.mxu0 %v533
    %2555 = vmatpush.msra.mxu0 %v529
    %2556 = vmatpush.msra.mxu0 %v525
    %2557 = vmatpush.msra.mxu0 %v521
    %2558 = vmatpush.msra.mxu0 %v517
    %2559 = vmatpush.msra.mxu0 %v513
    %2560 = vmatpush.msra.mxu0 %v509
    %2561 = vmatpush.msra.mxu0 %v505
    %2562 = vmatpush.msra.mxu0 %v501
    %2563 = vmatpush.msra.mxu0 %v497
    %2564 = vmatpush.msra.mxu0 %v493
    %2565 = vmatmul.f32.gmra.mxu0 %v2338
    %v2566 = vpop.f32.mrf.mxu0
    %v2567 = vadd.f32 %v2547, %v2566
    %2568 = vdwg.mxu0
    %2569 = vmatpush.msra.mxu0 %v490
    %2570 = vmatpush.msra.mxu0 %v486
    %2571 = vmatpush.msra.mxu0 %v482
    %2572 = vmatpush.msra.mxu0 %v478
    %2573 = vmatpush.msra.mxu0 %v474
    %2574 = vmatpush.msra.mxu0 %v470
    %2575 = vmatpush.msra.mxu0 %v466
    %2576 = vmatpush.msra.mxu0 %v462
    %2577 = vmatpush.msra.mxu0 %v458
    %2578 = vmatpush.msra.mxu0 %v454
    %2579 = vmatpush.msra.mxu0 %v450
    %2580 = vmatpush.msra.mxu0 %v446
    %2581 = vmatpush.msra.mxu0 %v442
    %2582 = vmatpush.msra.mxu0 %v438
    %2583 = vmatpush.msra.mxu0 %v434
    %2584 = vmatpush.msra.mxu0 %v430
    %2585 = vmatmul.f32.gmra.mxu0 %v2448
    %v2586 = vpop.f32.mrf.mxu0
    %v2587 = vadd.f32 %v560, %v2586
    %2588 = vdwg.mxu0
    %2589 = vmatpush.msra.mxu0 %v554
    %2590 = vmatpush.msra.mxu0 %v550
    %2591 = vmatpush.msra.mxu0 %v546
    %2592 = vmatpush.msra.mxu0 %v542
    %2593 = vmatpush.msra.mxu0 %v538
    %2594 = vmatpush.msra.mxu0 %v534
    %2595 = vmatpush.msra.mxu0 %v530
    %2596 = vmatpush.msra.mxu0 %v526
    %2597 = vmatpush.msra.mxu0 %v522
    %2598 = vmatpush.msra.mxu0 %v518
    %2599 = vmatpush.msra.mxu0 %v514
    %2600 = vmatpush.msra.mxu0 %v510
    %2601 = vmatpush.msra.mxu0 %v506
    %2602 = vmatpush.msra.mxu0 %v502
    %2603 = vmatpush.msra.mxu0 %v498
    %2604 = vmatpush.msra.mxu0 %v494
    %2605 = vmatmul.f32.gmra.mxu0 %v2338
    %v2606 = vpop.f32.mrf.mxu0
    %v2607 = vadd.f32 %v2587, %v2606
    %2608 = vdwg.mxu0
    %v2609 = vxor.u32 %v2487, 2147483648
    %v2610 = vmul.f32 %v2609, 1.442695
    %v2611 = vpow.pop %v2610
    %v2612 = vadd.f32 %v2611, 1.0
    %v2613 = vrcp.pop %v2612
    %v2614 = vmul.f32 %v2612, %v2613
    %v2615 = vsub.f32 1.0, %v2614
    %v2616 = vmul.f32 %v2613, %v2615
    %v2617 = vadd.f32 %v2613, %v2616
    %vm2618 = vweird.f32 %v2612
    %vm2619 = vweird.f32 %v2613
    %vm2620 = vmor %vm2618, %vm2619
    %v2621 = vsel %vm2620, %v2613, %v2617
    %v2622 = vand.u32 2147483647, %v2612
    %vm2623 = vcmp.eq.f32.partialorder %v2622, 8.507059e+37
    %v2624 = vand.u32 %v2612, 2147483648
    %v2625 = vor.u32 1.1754944e-38, %v2624
    %v2626 = vsel %vm2623, %v2625, %v2621
    %v2627 = vmul.f32 1.0, %v2626
    %v2628 = vxor.u32 %v2527, 2147483648
    %v2629 = vmul.f32 %v2628, 1.442695
    %v2630 = vpow.pop %v2629
    %v2631 = vadd.f32 %v2630, 1.0
    %v2632 = vrcp.pop %v2631
    %v2633 = vmul.f32 %v2631, %v2632
    %v2634 = vsub.f32 1.0, %v2633
    %v2635 = vmul.f32 %v2632, %v2634
    %v2636 = vadd.f32 %v2632, %v2635
    %vm2637 = vweird.f32 %v2631
    %vm2638 = vweird.f32 %v2632
    %vm2639 = vmor %vm2637, %vm2638
    %v2640 = vsel %vm2639, %v2632, %v2636
    %v2641 = vand.u32 2147483647, %v2631
    %vm2642 = vcmp.eq.f32.partialorder %v2641, 8.507059e+37
    %v2643 = vand.u32 %v2631, 2147483648
    %v2644 = vor.u32 1.1754944e-38, %v2643
    %v2645 = vsel %vm2642, %v2644, %v2640
    %v2646 = vmul.f32 1.0, %v2645
    %v2647 = vmul.f32 %v2627, %v2607
    %v2648 = vadd.f32 %v2567, %v2647
    %v2649 = vtanh.pop %v2648
    %v2650 = vsub.f32 %v2338, %v2649
    %v2651 = vmul.f32 %v2646, %v2650
    %v2652 = vadd.f32 %v2649, %v2651
    %v2653 = vld [vmem:[#allocation2 + $0xa8] sm:$0xff]
    %v2654 = vld [vmem:[#allocation2 + $0xb0] sm:$0xff]
    %v2655 = vld [vmem:[#allocation2 + $0xb8] sm:$0xff]
    %2656 = vmatpush.msra.mxu0 %v313
    %2657 = vmatpush.msra.mxu0 %v310
    %2658 = vmatpush.msra.mxu0 %v307
    %2659 = vmatpush.msra.mxu0 %v304
    %2660 = vmatpush.msra.mxu0 %v301
    %2661 = vmatpush.msra.mxu0 %v298
    %2662 = vmatpush.msra.mxu0 %v295
    %2663 = vmatpush.msra.mxu0 %v292
    %2664 = vmatpush.msra.mxu0 %v289
    %2665 = vmatpush.msra.mxu0 %v286
    %2666 = vmatpush.msra.mxu0 %v283
    %2667 = vmatpush.msra.mxu0 %v280
    %2668 = vmatpush.msra.mxu0 %v277
    %2669 = vmatpush.msra.mxu0 %v274
    %2670 = vmatpush.msra.mxu0 %v271
    %2671 = vmatpush.msra.mxu0 %v268
    %2672 = vmatmul.f32.gmra.mxu0 %v2448
    %v2673 = vpop.f32.mrf.mxu0
    %v2674 = vadd.f32 0.0, %v2673
    %2675 = vdwg.mxu0
    %2676 = vmatpush.msra.mxu0 %v314
    %2677 = vmatpush.msra.mxu0 %v311
    %2678 = vmatpush.msra.mxu0 %v308
    %2679 = vmatpush.msra.mxu0 %v305
    %2680 = vmatpush.msra.mxu0 %v302
    %2681 = vmatpush.msra.mxu0 %v299
    %2682 = vmatpush.msra.mxu0 %v296
    %2683 = vmatpush.msra.mxu0 %v293
    %2684 = vmatpush.msra.mxu0 %v290
    %2685 = vmatpush.msra.mxu0 %v287
    %2686 = vmatpush.msra.mxu0 %v284
    %2687 = vmatpush.msra.mxu0 %v281
    %2688 = vmatpush.msra.mxu0 %v278
    %2689 = vmatpush.msra.mxu0 %v275
    %2690 = vmatpush.msra.mxu0 %v272
    %2691 = vmatpush.msra.mxu0 %v269
    %2692 = vmatmul.f32.gmra.mxu0 %v2448
    %v2693 = vpop.f32.mrf.mxu0
    %v2694 = vadd.f32 0.0, %v2693
    %2695 = vdwg.mxu0
    %2696 = vmatpush.msra.mxu0 %v315
    %2697 = vmatpush.msra.mxu0 %v312
    %2698 = vmatpush.msra.mxu0 %v309
    %2699 = vmatpush.msra.mxu0 %v306
    %2700 = vmatpush.msra.mxu0 %v303
    %2701 = vmatpush.msra.mxu0 %v300
    %2702 = vmatpush.msra.mxu0 %v297
    %2703 = vmatpush.msra.mxu0 %v294
    %2704 = vmatpush.msra.mxu0 %v291
    %2705 = vmatpush.msra.mxu0 %v288
    %2706 = vmatpush.msra.mxu0 %v285
    %2707 = vmatpush.msra.mxu0 %v282
    %2708 = vmatpush.msra.mxu0 %v279
    %2709 = vmatpush.msra.mxu0 %v276
    %2710 = vmatpush.msra.mxu0 %v273
    %2711 = vmatpush.msra.mxu0 %v270
    %2712 = vmatmul.f32.gmra.mxu0 %v2448
    %v2713 = vpop.f32.mrf.mxu0
    %v2714 = vadd.f32 0.0, %v2713
    %2715 = vdwg.mxu0
    %v2716 = vadd.f32 %v2653, %v2674
    %v2717 = vxor.u32 %v2716, 2147483648
    %v2718 = vmul.f32 %v2717, 1.442695
    %v2719 = vpow.pop %v2718
    %v2720 = vadd.f32 %v2719, 1.0
    %v2721 = vrcp.pop %v2720
    %v2722 = vmul.f32 %v2720, %v2721
    %v2723 = vsub.f32 1.0, %v2722
    %v2724 = vmul.f32 %v2721, %v2723
    %v2725 = vadd.f32 %v2721, %v2724
    %vm2726 = vweird.f32 %v2720
    %vm2727 = vweird.f32 %v2721
    %vm2728 = vmor %vm2726, %vm2727
    %v2729 = vsel %vm2728, %v2721, %v2725
    %v2730 = vand.u32 2147483647, %v2720
    %vm2731 = vcmp.eq.f32.partialorder %v2730, 8.507059e+37
    %v2732 = vand.u32 %v2720, 2147483648
    %v2733 = vor.u32 1.1754944e-38, %v2732
    %v2734 = vsel %vm2731, %v2733, %v2729
    %v2735 = vmul.f32 1.0, %v2734
    %v2736 = vadd.f32 %v2654, %v2694
    %v2737 = vxor.u32 %v2736, 2147483648
    %v2738 = vmul.f32 %v2737, 1.442695
    %v2739 = vpow.pop %v2738
    %v2740 = vadd.f32 %v2739, 1.0
    %v2741 = vrcp.pop %v2740
    %v2742 = vmul.f32 %v2740, %v2741
    %v2743 = vsub.f32 1.0, %v2742
    %v2744 = vmul.f32 %v2741, %v2743
    %v2745 = vadd.f32 %v2741, %v2744
    %vm2746 = vweird.f32 %v2740
    %vm2747 = vweird.f32 %v2741
    %vm2748 = vmor %vm2746, %vm2747
    %v2749 = vsel %vm2748, %v2741, %v2745
    %v2750 = vand.u32 2147483647, %v2740
    %vm2751 = vcmp.eq.f32.partialorder %v2750, 8.507059e+37
    %v2752 = vand.u32 %v2740, 2147483648
    %v2753 = vor.u32 1.1754944e-38, %v2752
    %v2754 = vsel %vm2751, %v2753, %v2749
    %v2755 = vmul.f32 1.0, %v2754
    %v2756 = vadd.f32 %v2714, %v418
    %v2757 = vmul.f32 %v2735, %v2756
    %v2758 = vadd.f32 %v2655, %v2757
    %v2759 = vtanh.pop %v2758
    %v2760 = vsub.f32 %v2448, %v2759
    %v2761 = vmul.f32 %v2755, %v2760
    %v2762 = vadd.f32 %v2759, %v2761
    %2763 = vmatpush.msra.mxu0 %v487
    %2764 = vmatpush.msra.mxu0 %v483
    %2765 = vmatpush.msra.mxu0 %v479
    %2766 = vmatpush.msra.mxu0 %v475
    %2767 = vmatpush.msra.mxu0 %v471
    %2768 = vmatpush.msra.mxu0 %v467
    %2769 = vmatpush.msra.mxu0 %v463
    %2770 = vmatpush.msra.mxu0 %v459
    %2771 = vmatpush.msra.mxu0 %v455
    %2772 = vmatpush.msra.mxu0 %v451
    %2773 = vmatpush.msra.mxu0 %v447
    %2774 = vmatpush.msra.mxu0 %v443
    %2775 = vmatpush.msra.mxu0 %v439
    %2776 = vmatpush.msra.mxu0 %v435
    %2777 = vmatpush.msra.mxu0 %v431
    %2778 = vmatpush.msra.mxu0 %v427
    %2779 = vmatmul.f32.gmra.mxu0 %v2762
    %v2780 = vpop.f32.mrf.mxu0
    %v2781 = vadd.f32 %v557, %v2780
    %2782 = vdwg.mxu0
    %2783 = vmatpush.msra.mxu0 %v551
    %2784 = vmatpush.msra.mxu0 %v547
    %2785 = vmatpush.msra.mxu0 %v543
    %2786 = vmatpush.msra.mxu0 %v539
    %2787 = vmatpush.msra.mxu0 %v535
    %2788 = vmatpush.msra.mxu0 %v531
    %2789 = vmatpush.msra.mxu0 %v527
    %2790 = vmatpush.msra.mxu0 %v523
    %2791 = vmatpush.msra.mxu0 %v519
    %2792 = vmatpush.msra.mxu0 %v515
    %2793 = vmatpush.msra.mxu0 %v511
    %2794 = vmatpush.msra.mxu0 %v507
    %2795 = vmatpush.msra.mxu0 %v503
    %2796 = vmatpush.msra.mxu0 %v499
    %2797 = vmatpush.msra.mxu0 %v495
    %2798 = vmatpush.msra.mxu0 %v491
    %2799 = vmatmul.f32.gmra.mxu0 %v2652
    %v2800 = vpop.f32.mrf.mxu0
    %v2801 = vadd.f32 %v2781, %v2800
    %2802 = vdwg.mxu0
    %2803 = vmatpush.msra.mxu0 %v488
    %2804 = vmatpush.msra.mxu0 %v484
    %2805 = vmatpush.msra.mxu0 %v480
    %2806 = vmatpush.msra.mxu0 %v476
    %2807 = vmatpush.msra.mxu0 %v472
    %2808 = vmatpush.msra.mxu0 %v468
    %2809 = vmatpush.msra.mxu0 %v464
    %2810 = vmatpush.msra.mxu0 %v460
    %2811 = vmatpush.msra.mxu0 %v456
    %2812 = vmatpush.msra.mxu0 %v452
    %2813 = vmatpush.msra.mxu0 %v448
    %2814 = vmatpush.msra.mxu0 %v444
    %2815 = vmatpush.msra.mxu0 %v440
    %2816 = vmatpush.msra.mxu0 %v436
    %2817 = vmatpush.msra.mxu0 %v432
    %2818 = vmatpush.msra.mxu0 %v428
    %2819 = vmatmul.f32.gmra.mxu0 %v2762
    %v2820 = vpop.f32.mrf.mxu0
    %v2821 = vadd.f32 %v558, %v2820
    %2822 = vdwg.mxu0
    %2823 = vmatpush.msra.mxu0 %v552
    %2824 = vmatpush.msra.mxu0 %v548
    %2825 = vmatpush.msra.mxu0 %v544
    %2826 = vmatpush.msra.mxu0 %v540
    %2827 = vmatpush.msra.mxu0 %v536
    %2828 = vmatpush.msra.mxu0 %v532
    %2829 = vmatpush.msra.mxu0 %v528
    %2830 = vmatpush.msra.mxu0 %v524
    %2831 = vmatpush.msra.mxu0 %v520
    %2832 = vmatpush.msra.mxu0 %v516
    %2833 = vmatpush.msra.mxu0 %v512
    %2834 = vmatpush.msra.mxu0 %v508
    %2835 = vmatpush.msra.mxu0 %v504
    %2836 = vmatpush.msra.mxu0 %v500
    %2837 = vmatpush.msra.mxu0 %v496
    %2838 = vmatpush.msra.mxu0 %v492
    %2839 = vmatmul.f32.gmra.mxu0 %v2652
    %v2840 = vpop.f32.mrf.mxu0
    %v2841 = vadd.f32 %v2821, %v2840
    %2842 = vdwg.mxu0
    %2843 = vmatpush.msra.mxu0 %v489
    %2844 = vmatpush.msra.mxu0 %v485
    %2845 = vmatpush.msra.mxu0 %v481
    %2846 = vmatpush.msra.mxu0 %v477
    %2847 = vmatpush.msra.mxu0 %v473
    %2848 = vmatpush.msra.mxu0 %v469
    %2849 = vmatpush.msra.mxu0 %v465
    %2850 = vmatpush.msra.mxu0 %v461
    %2851 = vmatpush.msra.mxu0 %v457
    %2852 = vmatpush.msra.mxu0 %v453
    %2853 = vmatpush.msra.mxu0 %v449
    %2854 = vmatpush.msra.mxu0 %v445
    %2855 = vmatpush.msra.mxu0 %v441
    %2856 = vmatpush.msra.mxu0 %v437
    %2857 = vmatpush.msra.mxu0 %v433
    %2858 = vmatpush.msra.mxu0 %v429
    %2859 = vmatmul.f32.gmra.mxu0 %v2762
    %v2860 = vpop.f32.mrf.mxu0
    %v2861 = vadd.f32 %v559, %v2860
    %2862 = vdwg.mxu0
    %2863 = vmatpush.msra.mxu0 %v553
    %2864 = vmatpush.msra.mxu0 %v549
    %2865 = vmatpush.msra.mxu0 %v545
    %2866 = vmatpush.msra.mxu0 %v541
    %2867 = vmatpush.msra.mxu0 %v537
    %2868 = vmatpush.msra.mxu0 %v533
    %2869 = vmatpush.msra.mxu0 %v529
    %2870 = vmatpush.msra.mxu0 %v525
    %2871 = vmatpush.msra.mxu0 %v521
    %2872 = vmatpush.msra.mxu0 %v517
    %2873 = vmatpush.msra.mxu0 %v513
    %2874 = vmatpush.msra.mxu0 %v509
    %2875 = vmatpush.msra.mxu0 %v505
    %2876 = vmatpush.msra.mxu0 %v501
    %2877 = vmatpush.msra.mxu0 %v497
    %2878 = vmatpush.msra.mxu0 %v493
    %2879 = vmatmul.f32.gmra.mxu0 %v2652
    %v2880 = vpop.f32.mrf.mxu0
    %v2881 = vadd.f32 %v2861, %v2880
    %2882 = vdwg.mxu0
    %2883 = vmatpush.msra.mxu0 %v490
    %2884 = vmatpush.msra.mxu0 %v486
    %2885 = vmatpush.msra.mxu0 %v482
    %2886 = vmatpush.msra.mxu0 %v478
    %2887 = vmatpush.msra.mxu0 %v474
    %2888 = vmatpush.msra.mxu0 %v470
    %2889 = vmatpush.msra.mxu0 %v466
    %2890 = vmatpush.msra.mxu0 %v462
    %2891 = vmatpush.msra.mxu0 %v458
    %2892 = vmatpush.msra.mxu0 %v454
    %2893 = vmatpush.msra.mxu0 %v450
    %2894 = vmatpush.msra.mxu0 %v446
    %2895 = vmatpush.msra.mxu0 %v442
    %2896 = vmatpush.msra.mxu0 %v438
    %2897 = vmatpush.msra.mxu0 %v434
    %2898 = vmatpush.msra.mxu0 %v430
    %2899 = vmatmul.f32.gmra.mxu0 %v2762
    %v2900 = vpop.f32.mrf.mxu0
    %v2901 = vadd.f32 %v560, %v2900
    %2902 = vdwg.mxu0
    %2903 = vmatpush.msra.mxu0 %v554
    %2904 = vmatpush.msra.mxu0 %v550
    %2905 = vmatpush.msra.mxu0 %v546
    %2906 = vmatpush.msra.mxu0 %v542
    %2907 = vmatpush.msra.mxu0 %v538
    %2908 = vmatpush.msra.mxu0 %v534
    %2909 = vmatpush.msra.mxu0 %v530
    %2910 = vmatpush.msra.mxu0 %v526
    %2911 = vmatpush.msra.mxu0 %v522
    %2912 = vmatpush.msra.mxu0 %v518
    %2913 = vmatpush.msra.mxu0 %v514
    %2914 = vmatpush.msra.mxu0 %v510
    %2915 = vmatpush.msra.mxu0 %v506
    %2916 = vmatpush.msra.mxu0 %v502
    %2917 = vmatpush.msra.mxu0 %v498
    %2918 = vmatpush.msra.mxu0 %v494
    %2919 = vmatmul.f32.gmra.mxu0 %v2652
    %v2920 = vpop.f32.mrf.mxu0
    %v2921 = vadd.f32 %v2901, %v2920
    %2922 = vdwg.mxu0
    %v2923 = vxor.u32 %v2801, 2147483648
    %v2924 = vmul.f32 %v2923, 1.442695
    %v2925 = vpow.pop %v2924
    %v2926 = vadd.f32 %v2925, 1.0
    %v2927 = vrcp.pop %v2926
    %v2928 = vmul.f32 %v2926, %v2927
    %v2929 = vsub.f32 1.0, %v2928
    %v2930 = vmul.f32 %v2927, %v2929
    %v2931 = vadd.f32 %v2927, %v2930
    %vm2932 = vweird.f32 %v2926
    %vm2933 = vweird.f32 %v2927
    %vm2934 = vmor %vm2932, %vm2933
    %v2935 = vsel %vm2934, %v2927, %v2931
    %v2936 = vand.u32 2147483647, %v2926
    %vm2937 = vcmp.eq.f32.partialorder %v2936, 8.507059e+37
    %v2938 = vand.u32 %v2926, 2147483648
    %v2939 = vor.u32 1.1754944e-38, %v2938
    %v2940 = vsel %vm2937, %v2939, %v2935
    %v2941 = vmul.f32 1.0, %v2940
    %v2942 = vxor.u32 %v2841, 2147483648
    %v2943 = vmul.f32 %v2942, 1.442695
    %v2944 = vpow.pop %v2943
    %v2945 = vadd.f32 %v2944, 1.0
    %v2946 = vrcp.pop %v2945
    %v2947 = vmul.f32 %v2945, %v2946
    %v2948 = vsub.f32 1.0, %v2947
    %v2949 = vmul.f32 %v2946, %v2948
    %v2950 = vadd.f32 %v2946, %v2949
    %vm2951 = vweird.f32 %v2945
    %vm2952 = vweird.f32 %v2946
    %vm2953 = vmor %vm2951, %vm2952
    %v2954 = vsel %vm2953, %v2946, %v2950
    %v2955 = vand.u32 2147483647, %v2945
    %vm2956 = vcmp.eq.f32.partialorder %v2955, 8.507059e+37
    %v2957 = vand.u32 %v2945, 2147483648
    %v2958 = vor.u32 1.1754944e-38, %v2957
    %v2959 = vsel %vm2956, %v2958, %v2954
    %v2960 = vmul.f32 1.0, %v2959
    %v2961 = vmul.f32 %v2941, %v2921
    %v2962 = vadd.f32 %v2881, %v2961
    %v2963 = vtanh.pop %v2962
    %v2964 = vsub.f32 %v2652, %v2963
    %v2965 = vmul.f32 %v2960, %v2964
    %v2966 = vadd.f32 %v2963, %v2965
    %v2967 = vld [vmem:[%s7] sm:$0xff]
    %v2968 = vld [vmem:[%s7 + $0x8] sm:$0xff]
    %v2969 = vld [vmem:[%s7 + $0x10] sm:$0xff]
    %v2970 = vld [vmem:[%s7 + $0x18] sm:$0xff]
    %v2971 = vld [vmem:[%s7 + $0x20] sm:$0xff]
    %v2972 = vld [vmem:[%s7 + $0x28] sm:$0xff]
    %v2973 = vld [vmem:[%s7 + $0x30] sm:$0xff]
    %v2974 = vld [vmem:[%s7 + $0x38] sm:$0xff]
    %v2975 = vld [vmem:[%s7 + $0x40] sm:$0xff]
    %v2976 = vld [vmem:[%s7 + $0x48] sm:$0xff]
    %v2977 = vld [vmem:[%s7 + $0x50] sm:$0xff]
    %v2978 = vld [vmem:[%s7 + $0x58] sm:$0xff]
    %v2979 = vld [vmem:[%s7 + $0x60] sm:$0xff]
    %v2980 = vld [vmem:[%s7 + $0x68] sm:$0xff]
    %v2981 = vld [vmem:[%s7 + $0x70] sm:$0xff]
    %v2982 = vld [vmem:[%s7 + $0x78] sm:$0xff]
    %v2983 = vld [vmem:[%s8] sm:$0x1]
    %v2985 = vperm.slane %v2983, 0
    %2987 = vmatpush.msra.mxu0 %v2982
    %2988 = vmatpush.msra.mxu0 %v2981
    %2989 = vmatpush.msra.mxu0 %v2980
    %2990 = vmatpush.msra.mxu0 %v2979
    %2991 = vmatpush.msra.mxu0 %v2978
    %2992 = vmatpush.msra.mxu0 %v2977
    %2993 = vmatpush.msra.mxu0 %v2976
    %2994 = vmatpush.msra.mxu0 %v2975
    %2995 = vmatpush.msra.mxu0 %v2974
    %2996 = vmatpush.msra.mxu0 %v2973
    %2997 = vmatpush.msra.mxu0 %v2972
    %2998 = vmatpush.msra.mxu0 %v2971
    %2999 = vmatpush.msra.mxu0 %v2970
    %3000 = vmatpush.msra.mxu0 %v2969
    %3001 = vmatpush.msra.mxu0 %v2968
    %3002 = vmatpush.msra.mxu0 %v2967
    %3003 = vmatmul.f32.gmra.mxu0 %v2966
    %v3004 = vpop.f32.mrf.mxu0
    %v3005 = vadd.f32 %v2985, %v3004
    %3006 = vdwg.mxu0
    %3007 = vst [vmem:[%s9] sm:$0xff] %v3005
    // Predicated region
    $region46: #{gru_model_forward.1} parent=1 // pred_check
      _
    $region47: #{gru_model_forward.1} parent=1 // pred_check_branch
      %3009 = sbr.rel (0) target = $region49
    $region48: #{gru_model_forward.1} parent=1 // pred_region
      _
    $region49: #{gru_model_forward.1} parent=1 // pred_fallthru
      _
    // Predicated region
    $region50: #{gru_model_forward.1} parent=1 // pred_check
      _
    $region51: #{gru_model_forward.1} parent=1 // pred_check_branch
      %3011 = sbr.rel (0) target = $region53
    $region52: #{gru_model_forward.1} parent=1 // pred_region
      _
    $region53: #{gru_model_forward.1} parent=1 // pred_fallthru
      _
    %3012 = vsyncpa [#allocation4], 1
    %3013 = vsyncpa [#allocation6], 1

</llo_original>
